<compile_context>
chip_gen: v5e
topology: v5e:2x2
jax: 0.10.0
libtpu: 0.0.40
codegen_flags: <defaults>
</compile_context>

<pallas_src>
import functools

import jax
import jax.numpy as jnp
import numpy as np
from jax.experimental import pallas as pl
from jax.experimental.pallas import tpu as pltpu

_EPS_ADJ = 1e-7
_EPS_BN = 1e-5


def _round_up(a, b):
    return ((a + b - 1) // b) * b


def _recip(x):
    """1/x via the EUP approximate reciprocal + one Newton step.

    Keeps the divide off the VALU path (EUP slot is otherwise idle) while the
    NR step (2 cheap VPU ops) keeps ~f32 accuracy for the 1e-3 harness check.
    """
    r = pl.reciprocal(x, approx=True)
    return r * (2.0 - x * r)


def _normalize_adj(sym):
    """sgn*sqrt + row-normalize of a node-lane-dense (F, F, TB) adjacency.

    sym[x, y, b]; normalization is over y (axis=1).  No NaN guard needed: the
    +eps denominator already prevents 0/0 for finite inputs (including the
    all-zero padded nodes)."""
    mag = jnp.sqrt(jnp.abs(sym))
    adj = jnp.where(sym < 0.0, -mag, mag)            # sign(sym) * sqrt(|sym|)
    denom = jnp.sum(mag, axis=1, keepdims=True) + _EPS_ADJ   # |adj| == mag
    return adj * _recip(denom)


def _lgl_fused_kernel(x_ref, nb_ref, w1_ref, b1_ref, s1_ref, t1_ref,
                      w2_ref, b2_ref, s2_ref, t2_ref, wc_ref, bc_ref,
                      out_ref, *, co1, fo1):
    """feat1 + acvt1 + feat2 + acvt2 + classifier for TB lane-dense nodes.

    All refs are transposed so the node axis is the minor (lane) axis:
      x_ref  (F0, TB)        nb_ref (M, F0, TB)
      w1_ref (D1, F0)        w2_ref (C3F2, D1)      wc_ref (NCLS_PAD, C3F2)
      b*/s*/t* are (rows, 1) columns; out_ref is (NCLS_PAD, TB).
    """
    f0, tb = x_ref.shape
    m = nb_ref.shape[0]

    xT = x_ref[...]                          # (F0, TB)
    nbT = nb_ref[...]                        # (M, F0, TB)
    w1 = w1_ref[...]
    b1 = b1_ref[...]
    s1 = s1_ref[...]
    t1 = t1_ref[...]

    # ----------------- layer 1: FeatTrans1d + acvt1 ------------------------
    nbsumT = jnp.sum(nbT, axis=0)            # (F0, TB)
    # feature adjacency, nodes on lanes: sym[x, y, b]  (A + A^T via operand swap)
    symT = (xT[:, None, :] * nbsumT[None, :, :]
            + nbsumT[:, None, :] * xT[None, :, :])
    adj1T = _normalize_adj(symT)             # (F0, F0, TB)

    def transform1(vT):                      # (F0, TB) -> (D1, TB)
        # adjacency "matvec" stays on the VPU (K = F0 is far too shallow for
        # the MXU): out[g, b] = sum_f v[f, b] * adj[f, g, b]
        xt = jnp.sum(vT[:, None, :] * adj1T, axis=0)          # (F0, TB)
        # the real matmul on the MXU against the resident W1 block
        z = jnp.dot(w1, xt, preferred_element_type=jnp.float32) + b1
        y = z * s1 + t1                      # folded eval-mode BatchNorm1d
        return y * _recip(1.0 + jnp.abs(y))  # Softsign (EUP reciprocal)

    y1T = transform1(xT)                     # (D1, TB) activated center
    nbsum2T = transform1(nbT[0])             # running sum of activated neighbors
    for mi in range(1, m):                   # static unroll over the degree
        nbsum2T = nbsum2T + transform1(nbT[mi])
    # (the full (M, D1, TB) activated-neighbor tensor never exists; only its
    #  per-node sum is carried into layer 2 — nothing intermediate hits HBM)

    # ------------- layer 2: FeatTrans1d (center only) + acvt2 --------------
    y1r = y1T.reshape(co1, fo1, tb)          # channel-major split (layout-free)
    n2r = nbsum2T.reshape(co1, fo1, tb)
    # K = co1 contraction as an unrolled VPU broadcast-FMA loop (no MXU)
    sym2T = (y1r[0][:, None, :] * n2r[0][None, :, :]
             + n2r[0][:, None, :] * y1r[0][None, :, :])
    for cc in range(1, co1):
        sym2T = (sym2T
                 + y1r[cc][:, None, :] * n2r[cc][None, :, :]
                 + n2r[cc][:, None, :] * y1r[cc][None, :, :])
    adj2T = _normalize_adj(sym2T)            # (Fo1, Fo1, TB)

    # xt2[c, g, b] = sum_f y1[c, f, b] * adj2[f, g, b]   (VPU broadcast-FMA)
    xt2T = jnp.sum(y1r[:, :, None, :] * adj2T[None, :, :, :], axis=1)
    z2 = jnp.dot(w2_ref[...], xt2T.reshape(co1 * fo1, tb),
                 preferred_element_type=jnp.float32) + b2_ref[...]
    y2 = z2 * s2_ref[...] + t2_ref[...]      # folded BN
    y2 = y2 * _recip(1.0 + jnp.abs(y2))      # Softsign

    # classifier — logits stored (classes, nodes): lane-dense node-axis store.
    out_ref[...] = jnp.dot(wc_ref[...], y2,
                           preferred_element_type=jnp.float32) + bc_ref[...]


def _pick_tile(n):
    if n <= 128:
        return _round_up(n, 8)    # single full-width block (block == array dim)
    if n <= 2048:
        return 128                # >=2 grid steps -> both TensorCores on v7x
    return 256                    # amortize per-step overhead on big graphs


@jax.jit
def lgl_forward(x, neighbor, params):
    """x: (N, 1, F0) float32, neighbor: (N, M, 1, F0) float32 (densified)."""
    (w1t, b1, s1, t1, w2t, b2, s2, t2, wct, bc) = params
    n, c1, f0 = x.shape
    m = neighbor.shape[1]
    # TODO(synk): only the LGL configuration (in_channels c[0] == 1) is supported.
    assert c1 == 1, "LGL always has in_channels == 1 for the first FeatTrans1d"
    k1 = c1 * f0
    d1 = w1t.shape[1]             # Co1 * Fo1
    co1 = s1.shape[0]
    fo1 = d1 // co1
    c3f2 = w2t.shape[1]
    num_class = wct.shape[1]
    ncls_pad = _round_up(num_class, 8)

    # ---- re-layout params once, outside the kernel (layout plumbing) -------
    w1n = jnp.transpose(w1t)                                   # (D1, K1)
    b1n = jnp.transpose(b1)                                    # (D1, 1)
    s1n = jnp.broadcast_to(s1, (co1, fo1)).reshape(d1, 1)      # folded BN, flat
    t1n = jnp.broadcast_to(t1, (co1, fo1)).reshape(d1, 1)
    w2n = jnp.transpose(w2t)                                   # (C3F2, D1)
    b2n = jnp.transpose(b2)
    s2n = jnp.transpose(s2)
    t2n = jnp.transpose(t2)
    wcn = jnp.zeros((ncls_pad, c3f2), jnp.float32).at[:num_class].set(
        jnp.transpose(wct))
    bcn = jnp.zeros((ncls_pad, 1), jnp.float32).at[:num_class].set(
        jnp.transpose(bc))

    # ---- node-lane-dense inputs: (F0, N) and (M, F0, N) --------------------
    xT = jnp.transpose(x.reshape(n, k1))                       # (K1, N)
    nbT = jnp.transpose(neighbor.reshape(n, m, k1), (1, 2, 0))  # (M, K1, N)

    tb = _pick_tile(n)
    n_pad = _round_up(n, tb)
    if n_pad != n:                # zero padding is safe (see _normalize_adj)
        xT = jnp.pad(xT, ((0, 0), (0, n_pad - n)))
        nbT = jnp.pad(nbT, ((0, 0), (0, 0), (0, n_pad - n)))

    kernel = functools.partial(_lgl_fused_kernel, co1=co1, fo1=fo1)

    flops_per_node = (2 * (m + 1) * k1 * d1 + 2 * d1 * c3f2
                      + 2 * c3f2 * ncls_pad
                      + 4 * (m + 3) * f0 * f0 + 6 * co1 * fo1 * fo1)
    cost = pl.CostEstimate(
        flops=int(n_pad * flops_per_node),
        transcendentals=int(n_pad * ((m + 1) * d1 + c3f2 + f0 + fo1)),
        bytes_accessed=int(4 * (n_pad * (m + 1) * k1 + n_pad * ncls_pad
                                + k1 * d1 + d1 * c3f2 + c3f2 * ncls_pad)))

    logits_t = pl.pallas_call(
        kernel,
        grid=(n_pad // tb,),
        in_specs=[
            pl.BlockSpec((k1, tb), lambda i: (0, i)),          # x (F0, TB)
            pl.BlockSpec((m, k1, tb), lambda i: (0, 0, i)),    # nb (M, F0, TB)
            pl.BlockSpec((d1, k1), lambda i: (0, 0)),          # W1
            pl.BlockSpec((d1, 1), lambda i: (0, 0)),           # b1
            pl.BlockSpec((d1, 1), lambda i: (0, 0)),           # s1
            pl.BlockSpec((d1, 1), lambda i: (0, 0)),           # t1
            pl.BlockSpec((c3f2, d1), lambda i: (0, 0)),        # W2
            pl.BlockSpec((c3f2, 1), lambda i: (0, 0)),         # b2
            pl.BlockSpec((c3f2, 1), lambda i: (0, 0)),         # s2
            pl.BlockSpec((c3f2, 1), lambda i: (0, 0)),         # t2
            pl.BlockSpec((ncls_pad, c3f2), lambda i: (0, 0)),  # Wc (padded)
            pl.BlockSpec((ncls_pad, 1), lambda i: (0, 0)),     # bc (padded)
        ],
        out_specs=pl.BlockSpec((ncls_pad, tb), lambda i: (0, i)),
        out_shape=jax.ShapeDtypeStruct((ncls_pad, n_pad), jnp.float32),
        compiler_params=pltpu.CompilerParams(
            dimension_semantics=("parallel",)),   # node tiles -> both TCs
        cost_estimate=cost,
    )(xT, nbT, w1n, b1n, s1n, t1n, w2n, b2n, s2n, t2n, wcn, bcn)

    return jnp.transpose(logits_t[:num_class, :n])   # (N, num_class)


def _reference_forward(x, nb, params):
    """Pure-JAX reference mirroring the module semantics (for validation)."""
    w1t, b1, s1, t1, w2t, b2, s2, t2, wct, bc = params
    ph = jax.lax.Precision.HIGHEST
    n, c1, f0 = x.shape
    m = nb.shape[1]
    co1 = s1.shape[0]
    fo1 = w1t.shape[1] // co1

    def adjacency(xb, nbsum):
        adj = jnp.einsum('ncx,ncy->nxy', xb, nbsum, precision=ph)
        adj = adj + jnp.swapaxes(adj, -1, -2)
        adj = jnp.sign(adj) * jnp.sqrt(jnp.abs(adj))
        adj = adj / (jnp.sum(jnp.abs(adj), axis=-1, keepdims=True) + _EPS_ADJ)
        return jnp.where(jnp.isnan(adj), 0.0, adj)

    adj1 = adjacency(x, nb.sum(axis=1))
    xt = jnp.einsum('ncf,nfg->ncg', x, adj1, precision=ph)
    z1 = jnp.einsum('nk,ko->no', xt.reshape(n, c1 * f0), w1t, precision=ph) + b1
    z1 = z1.reshape(n, co1, fo1)
    y1 = z1 * s1.reshape(1, co1, 1) + t1.reshape(1, co1, 1)
    y1 = y1 / (1.0 + jnp.abs(y1))

    nbt = jnp.einsum('nmcf,nfg->nmcg', nb, adj1, precision=ph)
    zn = jnp.einsum('nmk,ko->nmo', nbt.reshape(n, m, c1 * f0), w1t,
                    precision=ph) + b1
    zn = zn.reshape(n, m, co1, fo1)
    yn = zn * s1.reshape(1, 1, co1, 1) + t1.reshape(1, 1, co1, 1)
    yn = yn / (1.0 + jnp.abs(yn))

    adj2 = adjacency(y1, yn.sum(axis=1))
    xt2 = jnp.einsum('ncf,nfg->ncg', y1, adj2, precision=ph)
    z2 = jnp.einsum('nk,ko->no', xt2.reshape(n, co1 * fo1), w2t,
                    precision=ph) + b2
    y2 = z2 * s2 + t2
    y2 = y2 / (1.0 + jnp.abs(y2))
    return jnp.einsum('nk,ko->no', y2, wct, precision=ph) + bc


if __name__ == "__main__":
    key = jax.random.PRNGKey(0)
    N, M = 8, 4                       # nodes, neighbors per node
    feat_len, num_class = 16, 7
    hidden = [64, 32]
    c = [1, 4, hidden[1]]             # channels: [1, 4, 32]
    f = [feat_len, hidden[0] // c[1], 1]   # features: [16, 16, 1]

    ks = jax.random.split(key, 16)

    # feat1 "conv" (Conv1d(in=c0, out=c1*f1, kernel=f0)) as a dense matmul.
    W1 = 0.2 * jax.random.normal(ks[0], (c[1] * f[1], c[0], f[0]), jnp.float32)
    bb1 = 0.1 * jax.random.normal(ks[1], (c[1] * f[1],), jnp.float32)
    w1t = jnp.transpose(W1.reshape(c[1] * f[1], c[0] * f[0]))
    b1 = bb1.reshape(1, -1)

    # acvt1 BatchNorm1d(c1) folded (eval mode) into per-channel scale/shift.
    g1 = 1.0 + 0.1 * jax.random.normal(ks[2], (c[1],), jnp.float32)
    be1 = 0.1 * jax.random.normal(ks[3], (c[1],), jnp.float32)
    rm1 = 0.1 * jax.random.normal(ks[4], (c[1],), jnp.float32)
    rv1 = 1.0 + 0.5 * jax.random.uniform(ks[5], (c[1],), jnp.float32)
    s1v = g1 / jnp.sqrt(rv1 + _EPS_BN)
    s1 = s1v.reshape(c[1], 1)
    t1 = (be1 - rm1 * s1v).reshape(c[1], 1)

    # feat2 conv.
    W2 = 0.2 * jax.random.normal(ks[6], (c[2] * f[2], c[1], f[1]), jnp.float32)
    bb2 = 0.1 * jax.random.normal(ks[7], (c[2] * f[2],), jnp.float32)
    w2t = jnp.transpose(W2.reshape(c[2] * f[2], c[1] * f[1]))
    b2 = bb2.reshape(1, -1)

    # acvt2 BatchNorm1d(c2) folded; repeated per out_feature (f[2] == 1).
    g2 = 1.0 + 0.1 * jax.random.normal(ks[8], (c[2],), jnp.float32)
    be2 = 0.1 * jax.random.normal(ks[9], (c[2],), jnp.float32)
    rm2 = 0.1 * jax.random.normal(ks[10], (c[2],), jnp.float32)
    rv2 = 1.0 + 0.5 * jax.random.uniform(ks[11], (c[2],), jnp.float32)
    s2v = g2 / jnp.sqrt(rv2 + _EPS_BN)
    s2 = jnp.repeat(s2v, f[2]).reshape(1, -1)
    t2 = jnp.repeat(be2 - rm2 * s2v, f[2]).reshape(1, -1)

    # classifier: Flatten + Linear(c2*f2 -> num_class).
    Wc = 0.2 * jax.random.normal(ks[12], (num_class, c[2] * f[2]), jnp.float32)
    bcv = 0.1 * jax.random.normal(ks[13], (num_class,), jnp.float32)
    wct = jnp.transpose(Wc)
    bc = bcv.reshape(1, -1)

    params = (w1t, b1, s1, t1, w2t, b2, s2, t2, wct, bc)

    x = jax.random.normal(ks[14], (N, c[0], feat_len), jnp.float32)
    neighbor = jax.random.normal(ks[15], (N, M, c[0], feat_len), jnp.float32)

    logits = jax.block_until_ready(lgl_forward(x, neighbor, params))
    ref = jax.block_until_ready(_reference_forward(x, neighbor, params))

    assert logits.shape == (N, num_class)
    np.testing.assert_allclose(np.asarray(logits), np.asarray(ref),
                               rtol=1e-3, atol=1e-3)
    print("KERNEL_OK")
</pallas_src>

<mosaic_0001>
module attributes {stable_mosaic.version = 11 : i64} {
  func.func @_lgl_fused_kernel(%arg0: i32, %arg1: memref<16x8xf32, #tpu.memory_space<vmem>>, %arg2: memref<4x16x8xf32, #tpu.memory_space<vmem>>, %arg3: memref<64x16xf32, #tpu.memory_space<vmem>>, %arg4: memref<64x1xf32, #tpu.memory_space<vmem>>, %arg5: memref<64x1xf32, #tpu.memory_space<vmem>>, %arg6: memref<64x1xf32, #tpu.memory_space<vmem>>, %arg7: memref<32x64xf32, #tpu.memory_space<vmem>>, %arg8: memref<32x1xf32, #tpu.memory_space<vmem>>, %arg9: memref<32x1xf32, #tpu.memory_space<vmem>>, %arg10: memref<32x1xf32, #tpu.memory_space<vmem>>, %arg11: memref<8x32xf32, #tpu.memory_space<vmem>>, %arg12: memref<8x1xf32, #tpu.memory_space<vmem>>, %arg13: memref<8x8xf32, #tpu.memory_space<vmem>>) attributes {dimension_semantics = [#tpu.dimension_semantics<parallel>], iteration_bounds = array<i64: 1>, scalar_prefetch = 0 : i64, scratch_operands = 0 : i64, tpu.core_type = #tpu.core_type<tc>, window_params = [{transform_indices = @transform_0, window_bounds = array<i64: 16, 8>}, {transform_indices = @transform_1, window_bounds = array<i64: 4, 16, 8>}, {pipeline_mode = #tpu.pipeline_mode<synchronous>, transform_indices = @transform_2, window_bounds = array<i64: 64, 16>}, {pipeline_mode = #tpu.pipeline_mode<synchronous>, transform_indices = @transform_3, window_bounds = array<i64: 64, 1>}, {pipeline_mode = #tpu.pipeline_mode<synchronous>, transform_indices = @transform_4, window_bounds = array<i64: 64, 1>}, {pipeline_mode = #tpu.pipeline_mode<synchronous>, transform_indices = @transform_5, window_bounds = array<i64: 64, 1>}, {pipeline_mode = #tpu.pipeline_mode<synchronous>, transform_indices = @transform_6, window_bounds = array<i64: 32, 64>}, {pipeline_mode = #tpu.pipeline_mode<synchronous>, transform_indices = @transform_7, window_bounds = array<i64: 32, 1>}, {pipeline_mode = #tpu.pipeline_mode<synchronous>, transform_indices = @transform_8, window_bounds = array<i64: 32, 1>}, {pipeline_mode = #tpu.pipeline_mode<synchronous>, transform_indices = @transform_9, window_bounds = array<i64: 32, 1>}, {pipeline_mode = #tpu.pipeline_mode<synchronous>, transform_indices = @transform_10, window_bounds = array<i64: 8, 32>}, {pipeline_mode = #tpu.pipeline_mode<synchronous>, transform_indices = @transform_11, window_bounds = array<i64: 8, 1>}, {transform_indices = @transform_12, window_bounds = array<i64: 8, 8>}]} {
    %c0 = arith.constant 0 : index
    %c0_0 = arith.constant 0 : index
    %0 = vector.load %arg1[%c0, %c0_0] : memref<16x8xf32, #tpu.memory_space<vmem>>, vector<16x8xf32>
    %c0_1 = arith.constant 0 : index
    %c0_2 = arith.constant 0 : index
    %c0_3 = arith.constant 0 : index
    %1 = vector.load %arg2[%c0_1, %c0_2, %c0_3] : memref<4x16x8xf32, #tpu.memory_space<vmem>>, vector<4x16x8xf32>
    %c0_4 = arith.constant 0 : index
    %c0_5 = arith.constant 0 : index
    %2 = vector.load %arg3[%c0_4, %c0_5] : memref<64x16xf32, #tpu.memory_space<vmem>>, vector<64x16xf32>
    %c0_6 = arith.constant 0 : index
    %c0_7 = arith.constant 0 : index
    %3 = vector.load %arg4[%c0_6, %c0_7] : memref<64x1xf32, #tpu.memory_space<vmem>>, vector<64x1xf32>
    %c0_8 = arith.constant 0 : index
    %c0_9 = arith.constant 0 : index
    %4 = vector.load %arg5[%c0_8, %c0_9] : memref<64x1xf32, #tpu.memory_space<vmem>>, vector<64x1xf32>
    %c0_10 = arith.constant 0 : index
    %c0_11 = arith.constant 0 : index
    %5 = vector.load %arg6[%c0_10, %c0_11] : memref<64x1xf32, #tpu.memory_space<vmem>>, vector<64x1xf32>
    %cst = arith.constant dense<0.000000e+00> : vector<16x8xf32>
    %6 = vector.multi_reduction <add>, %1, %cst [0] : vector<4x16x8xf32> to vector<16x8xf32>
    %7 = vector.shape_cast %0 : vector<16x8xf32> to vector<16x1x8xf32>
    %8 = vector.shape_cast %6 : vector<16x8xf32> to vector<1x16x8xf32>
    %9 = vector.broadcast %7 : vector<16x1x8xf32> to vector<16x16x8xf32>
    %10 = vector.broadcast %8 : vector<1x16x8xf32> to vector<16x16x8xf32>
    %11 = arith.mulf %9, %10 : vector<16x16x8xf32>
    %12 = vector.shape_cast %6 : vector<16x8xf32> to vector<16x1x8xf32>
    %13 = vector.shape_cast %0 : vector<16x8xf32> to vector<1x16x8xf32>
    %14 = vector.broadcast %12 : vector<16x1x8xf32> to vector<16x16x8xf32>
    %15 = vector.broadcast %13 : vector<1x16x8xf32> to vector<16x16x8xf32>
    %16 = arith.mulf %14, %15 : vector<16x16x8xf32>
    %17 = arith.addf %11, %16 : vector<16x16x8xf32>
    %18 = math.absf %17 : vector<16x16x8xf32>
    %19 = math.sqrt %18 : vector<16x16x8xf32>
    %cst_12 = arith.constant 0.000000e+00 : f32
    %20 = vector.broadcast %cst_12 : f32 to vector<16x16x8xf32>
    %21 = arith.cmpf olt, %17, %20 : vector<16x16x8xf32>
    %cst_13 = arith.constant 0.000000e+00 : f32
    %22 = vector.broadcast %cst_13 : f32 to vector<16x16x8xf32>
    %23 = arith.subf %22, %19 : vector<16x16x8xf32>
    %24 = arith.select %21, %23, %19 : vector<16x16x8xi1>, vector<16x16x8xf32>
    %cst_14 = arith.constant dense<0.000000e+00> : vector<16x8xf32>
    %25 = vector.multi_reduction <add>, %19, %cst_14 [1] : vector<16x16x8xf32> to vector<16x8xf32>
    %26 = vector.shape_cast %25 : vector<16x8xf32> to vector<16x1x8xf32>
    %cst_15 = arith.constant 1.000000e-07 : f32
    %27 = vector.broadcast %cst_15 : f32 to vector<16x1x8xf32>
    %28 = arith.addf %26, %27 : vector<16x1x8xf32>
    %29 = tpu.reciprocal %28 {approx = true} : vector<16x1x8xf32> -> vector<16x1x8xf32>
    %30 = arith.mulf %28, %29 : vector<16x1x8xf32>
    %cst_16 = arith.constant 2.000000e+00 : f32
    %31 = vector.broadcast %cst_16 : f32 to vector<16x1x8xf32>
    %32 = arith.subf %31, %30 : vector<16x1x8xf32>
    %33 = arith.mulf %29, %32 : vector<16x1x8xf32>
    %34 = vector.broadcast %33 : vector<16x1x8xf32> to vector<16x16x8xf32>
    %35 = arith.mulf %24, %34 : vector<16x16x8xf32>
    %36 = vector.shape_cast %0 : vector<16x8xf32> to vector<16x1x8xf32>
    %37 = vector.broadcast %36 : vector<16x1x8xf32> to vector<16x16x8xf32>
    %38 = arith.mulf %37, %35 : vector<16x16x8xf32>
    %cst_17 = arith.constant dense<0.000000e+00> : vector<16x8xf32>
    %39 = vector.multi_reduction <add>, %38, %cst_17 [0] : vector<16x16x8xf32> to vector<16x8xf32>
    %cst_18 = arith.constant dense<0.000000e+00> : vector<64x8xf32>
    %40 = tpu.matmul %2, %39, %cst_18 {dimension_numbers = #tpu.dot_dimension_numbers<[1], [0], [0], [1], [0, 0, 1, 1], [], []>} : vector<64x16xf32>, vector<16x8xf32>, vector<64x8xf32> -> vector<64x8xf32>
    %41 = vector.broadcast %3 : vector<64x1xf32> to vector<64x8xf32>
    %42 = arith.addf %40, %41 : vector<64x8xf32>
    %43 = vector.broadcast %4 : vector<64x1xf32> to vector<64x8xf32>
    %44 = arith.mulf %42, %43 : vector<64x8xf32>
    %45 = vector.broadcast %5 : vector<64x1xf32> to vector<64x8xf32>
    %46 = arith.addf %44, %45 : vector<64x8xf32>
    %47 = math.absf %46 : vector<64x8xf32>
    %cst_19 = arith.constant 1.000000e+00 : f32
    %48 = vector.broadcast %cst_19 : f32 to vector<64x8xf32>
    %49 = arith.addf %48, %47 : vector<64x8xf32>
    %50 = tpu.reciprocal %49 {approx = true} : vector<64x8xf32> -> vector<64x8xf32>
    %51 = arith.mulf %49, %50 : vector<64x8xf32>
    %cst_20 = arith.constant 2.000000e+00 : f32
    %52 = vector.broadcast %cst_20 : f32 to vector<64x8xf32>
    %53 = arith.subf %52, %51 : vector<64x8xf32>
    %54 = arith.mulf %50, %53 : vector<64x8xf32>
    %55 = arith.mulf %46, %54 : vector<64x8xf32>
    %56 = vector.extract_strided_slice %1 {offsets = [0, 0, 0], sizes = [1, 16, 8], strides = [1, 1, 1]} : vector<4x16x8xf32> to vector<1x16x8xf32>
    %57 = vector.shape_cast %56 : vector<1x16x8xf32> to vector<16x8xf32>
    %58 = vector.shape_cast %57 : vector<16x8xf32> to vector<16x1x8xf32>
    %59 = vector.broadcast %58 : vector<16x1x8xf32> to vector<16x16x8xf32>
    %60 = arith.mulf %59, %35 : vector<16x16x8xf32>
    %cst_21 = arith.constant dense<0.000000e+00> : vector<16x8xf32>
    %61 = vector.multi_reduction <add>, %60, %cst_21 [0] : vector<16x16x8xf32> to vector<16x8xf32>
    %cst_22 = arith.constant dense<0.000000e+00> : vector<64x8xf32>
    %62 = tpu.matmul %2, %61, %cst_22 {dimension_numbers = #tpu.dot_dimension_numbers<[1], [0], [0], [1], [0, 0, 1, 1], [], []>} : vector<64x16xf32>, vector<16x8xf32>, vector<64x8xf32> -> vector<64x8xf32>
    %63 = vector.broadcast %3 : vector<64x1xf32> to vector<64x8xf32>
    %64 = arith.addf %62, %63 : vector<64x8xf32>
    %65 = vector.broadcast %4 : vector<64x1xf32> to vector<64x8xf32>
    %66 = arith.mulf %64, %65 : vector<64x8xf32>
    %67 = vector.broadcast %5 : vector<64x1xf32> to vector<64x8xf32>
    %68 = arith.addf %66, %67 : vector<64x8xf32>
    %69 = math.absf %68 : vector<64x8xf32>
    %cst_23 = arith.constant 1.000000e+00 : f32
    %70 = vector.broadcast %cst_23 : f32 to vector<64x8xf32>
    %71 = arith.addf %70, %69 : vector<64x8xf32>
    %72 = tpu.reciprocal %71 {approx = true} : vector<64x8xf32> -> vector<64x8xf32>
    %73 = arith.mulf %71, %72 : vector<64x8xf32>
    %cst_24 = arith.constant 2.000000e+00 : f32
    %74 = vector.broadcast %cst_24 : f32 to vector<64x8xf32>
    %75 = arith.subf %74, %73 : vector<64x8xf32>
    %76 = arith.mulf %72, %75 : vector<64x8xf32>
    %77 = arith.mulf %68, %76 : vector<64x8xf32>
    %78 = vector.extract_strided_slice %1 {offsets = [1, 0, 0], sizes = [1, 16, 8], strides = [1, 1, 1]} : vector<4x16x8xf32> to vector<1x16x8xf32>
    %79 = vector.shape_cast %78 : vector<1x16x8xf32> to vector<16x8xf32>
    %80 = vector.shape_cast %79 : vector<16x8xf32> to vector<16x1x8xf32>
    %81 = vector.broadcast %80 : vector<16x1x8xf32> to vector<16x16x8xf32>
    %82 = arith.mulf %81, %35 : vector<16x16x8xf32>
    %cst_25 = arith.constant dense<0.000000e+00> : vector<16x8xf32>
    %83 = vector.multi_reduction <add>, %82, %cst_25 [0] : vector<16x16x8xf32> to vector<16x8xf32>
    %cst_26 = arith.constant dense<0.000000e+00> : vector<64x8xf32>
    %84 = tpu.matmul %2, %83, %cst_26 {dimension_numbers = #tpu.dot_dimension_numbers<[1], [0], [0], [1], [0, 0, 1, 1], [], []>} : vector<64x16xf32>, vector<16x8xf32>, vector<64x8xf32> -> vector<64x8xf32>
    %85 = vector.broadcast %3 : vector<64x1xf32> to vector<64x8xf32>
    %86 = arith.addf %84, %85 : vector<64x8xf32>
    %87 = vector.broadcast %4 : vector<64x1xf32> to vector<64x8xf32>
    %88 = arith.mulf %86, %87 : vector<64x8xf32>
    %89 = vector.broadcast %5 : vector<64x1xf32> to vector<64x8xf32>
    %90 = arith.addf %88, %89 : vector<64x8xf32>
    %91 = math.absf %90 : vector<64x8xf32>
    %cst_27 = arith.constant 1.000000e+00 : f32
    %92 = vector.broadcast %cst_27 : f32 to vector<64x8xf32>
    %93 = arith.addf %92, %91 : vector<64x8xf32>
    %94 = tpu.reciprocal %93 {approx = true} : vector<64x8xf32> -> vector<64x8xf32>
    %95 = arith.mulf %93, %94 : vector<64x8xf32>
    %cst_28 = arith.constant 2.000000e+00 : f32
    %96 = vector.broadcast %cst_28 : f32 to vector<64x8xf32>
    %97 = arith.subf %96, %95 : vector<64x8xf32>
    %98 = arith.mulf %94, %97 : vector<64x8xf32>
    %99 = arith.mulf %90, %98 : vector<64x8xf32>
    %100 = arith.addf %77, %99 : vector<64x8xf32>
    %101 = vector.extract_strided_slice %1 {offsets = [2, 0, 0], sizes = [1, 16, 8], strides = [1, 1, 1]} : vector<4x16x8xf32> to vector<1x16x8xf32>
    %102 = vector.shape_cast %101 : vector<1x16x8xf32> to vector<16x8xf32>
    %103 = vector.shape_cast %102 : vector<16x8xf32> to vector<16x1x8xf32>
    %104 = vector.broadcast %103 : vector<16x1x8xf32> to vector<16x16x8xf32>
    %105 = arith.mulf %104, %35 : vector<16x16x8xf32>
    %cst_29 = arith.constant dense<0.000000e+00> : vector<16x8xf32>
    %106 = vector.multi_reduction <add>, %105, %cst_29 [0] : vector<16x16x8xf32> to vector<16x8xf32>
    %cst_30 = arith.constant dense<0.000000e+00> : vector<64x8xf32>
    %107 = tpu.matmul %2, %106, %cst_30 {dimension_numbers = #tpu.dot_dimension_numbers<[1], [0], [0], [1], [0, 0, 1, 1], [], []>} : vector<64x16xf32>, vector<16x8xf32>, vector<64x8xf32> -> vector<64x8xf32>
    %108 = vector.broadcast %3 : vector<64x1xf32> to vector<64x8xf32>
    %109 = arith.addf %107, %108 : vector<64x8xf32>
    %110 = vector.broadcast %4 : vector<64x1xf32> to vector<64x8xf32>
    %111 = arith.mulf %109, %110 : vector<64x8xf32>
    %112 = vector.broadcast %5 : vector<64x1xf32> to vector<64x8xf32>
    %113 = arith.addf %111, %112 : vector<64x8xf32>
    %114 = math.absf %113 : vector<64x8xf32>
    %cst_31 = arith.constant 1.000000e+00 : f32
    %115 = vector.broadcast %cst_31 : f32 to vector<64x8xf32>
    %116 = arith.addf %115, %114 : vector<64x8xf32>
    %117 = tpu.reciprocal %116 {approx = true} : vector<64x8xf32> -> vector<64x8xf32>
    %118 = arith.mulf %116, %117 : vector<64x8xf32>
    %cst_32 = arith.constant 2.000000e+00 : f32
    %119 = vector.broadcast %cst_32 : f32 to vector<64x8xf32>
    %120 = arith.subf %119, %118 : vector<64x8xf32>
    %121 = arith.mulf %117, %120 : vector<64x8xf32>
    %122 = arith.mulf %113, %121 : vector<64x8xf32>
    %123 = arith.addf %100, %122 : vector<64x8xf32>
    %124 = vector.extract_strided_slice %1 {offsets = [3, 0, 0], sizes = [1, 16, 8], strides = [1, 1, 1]} : vector<4x16x8xf32> to vector<1x16x8xf32>
    %125 = vector.shape_cast %124 : vector<1x16x8xf32> to vector<16x8xf32>
    %126 = vector.shape_cast %125 : vector<16x8xf32> to vector<16x1x8xf32>
    %127 = vector.broadcast %126 : vector<16x1x8xf32> to vector<16x16x8xf32>
    %128 = arith.mulf %127, %35 : vector<16x16x8xf32>
    %cst_33 = arith.constant dense<0.000000e+00> : vector<16x8xf32>
    %129 = vector.multi_reduction <add>, %128, %cst_33 [0] : vector<16x16x8xf32> to vector<16x8xf32>
    %cst_34 = arith.constant dense<0.000000e+00> : vector<64x8xf32>
    %130 = tpu.matmul %2, %129, %cst_34 {dimension_numbers = #tpu.dot_dimension_numbers<[1], [0], [0], [1], [0, 0, 1, 1], [], []>} : vector<64x16xf32>, vector<16x8xf32>, vector<64x8xf32> -> vector<64x8xf32>
    %131 = vector.broadcast %3 : vector<64x1xf32> to vector<64x8xf32>
    %132 = arith.addf %130, %131 : vector<64x8xf32>
    %133 = vector.broadcast %4 : vector<64x1xf32> to vector<64x8xf32>
    %134 = arith.mulf %132, %133 : vector<64x8xf32>
    %135 = vector.broadcast %5 : vector<64x1xf32> to vector<64x8xf32>
    %136 = arith.addf %134, %135 : vector<64x8xf32>
    %137 = math.absf %136 : vector<64x8xf32>
    %cst_35 = arith.constant 1.000000e+00 : f32
    %138 = vector.broadcast %cst_35 : f32 to vector<64x8xf32>
    %139 = arith.addf %138, %137 : vector<64x8xf32>
    %140 = tpu.reciprocal %139 {approx = true} : vector<64x8xf32> -> vector<64x8xf32>
    %141 = arith.mulf %139, %140 : vector<64x8xf32>
    %cst_36 = arith.constant 2.000000e+00 : f32
    %142 = vector.broadcast %cst_36 : f32 to vector<64x8xf32>
    %143 = arith.subf %142, %141 : vector<64x8xf32>
    %144 = arith.mulf %140, %143 : vector<64x8xf32>
    %145 = arith.mulf %136, %144 : vector<64x8xf32>
    %146 = arith.addf %123, %145 : vector<64x8xf32>
    %147 = vector.shape_cast %55 : vector<64x8xf32> to vector<4x16x8xf32>
    %148 = vector.shape_cast %146 : vector<64x8xf32> to vector<4x16x8xf32>
    %149 = vector.extract_strided_slice %147 {offsets = [0, 0, 0], sizes = [1, 16, 8], strides = [1, 1, 1]} : vector<4x16x8xf32> to vector<1x16x8xf32>
    %150 = vector.shape_cast %149 : vector<1x16x8xf32> to vector<16x8xf32>
    %151 = vector.shape_cast %150 : vector<16x8xf32> to vector<16x1x8xf32>
    %152 = vector.extract_strided_slice %148 {offsets = [0, 0, 0], sizes = [1, 16, 8], strides = [1, 1, 1]} : vector<4x16x8xf32> to vector<1x16x8xf32>
    %153 = vector.shape_cast %152 : vector<1x16x8xf32> to vector<16x8xf32>
    %154 = vector.shape_cast %153 : vector<16x8xf32> to vector<1x16x8xf32>
    %155 = vector.broadcast %151 : vector<16x1x8xf32> to vector<16x16x8xf32>
    %156 = vector.broadcast %154 : vector<1x16x8xf32> to vector<16x16x8xf32>
    %157 = arith.mulf %155, %156 : vector<16x16x8xf32>
    %158 = vector.extract_strided_slice %148 {offsets = [0, 0, 0], sizes = [1, 16, 8], strides = [1, 1, 1]} : vector<4x16x8xf32> to vector<1x16x8xf32>
    %159 = vector.shape_cast %158 : vector<1x16x8xf32> to vector<16x8xf32>
    %160 = vector.shape_cast %159 : vector<16x8xf32> to vector<16x1x8xf32>
    %161 = vector.extract_strided_slice %147 {offsets = [0, 0, 0], sizes = [1, 16, 8], strides = [1, 1, 1]} : vector<4x16x8xf32> to vector<1x16x8xf32>
    %162 = vector.shape_cast %161 : vector<1x16x8xf32> to vector<16x8xf32>
    %163 = vector.shape_cast %162 : vector<16x8xf32> to vector<1x16x8xf32>
    %164 = vector.broadcast %160 : vector<16x1x8xf32> to vector<16x16x8xf32>
    %165 = vector.broadcast %163 : vector<1x16x8xf32> to vector<16x16x8xf32>
    %166 = arith.mulf %164, %165 : vector<16x16x8xf32>
    %167 = arith.addf %157, %166 : vector<16x16x8xf32>
    %168 = vector.extract_strided_slice %147 {offsets = [1, 0, 0], sizes = [1, 16, 8], strides = [1, 1, 1]} : vector<4x16x8xf32> to vector<1x16x8xf32>
    %169 = vector.shape_cast %168 : vector<1x16x8xf32> to vector<16x8xf32>
    %170 = vector.shape_cast %169 : vector<16x8xf32> to vector<16x1x8xf32>
    %171 = vector.extract_strided_slice %148 {offsets = [1, 0, 0], sizes = [1, 16, 8], strides = [1, 1, 1]} : vector<4x16x8xf32> to vector<1x16x8xf32>
    %172 = vector.shape_cast %171 : vector<1x16x8xf32> to vector<16x8xf32>
    %173 = vector.shape_cast %172 : vector<16x8xf32> to vector<1x16x8xf32>
    %174 = vector.broadcast %170 : vector<16x1x8xf32> to vector<16x16x8xf32>
    %175 = vector.broadcast %173 : vector<1x16x8xf32> to vector<16x16x8xf32>
    %176 = arith.mulf %174, %175 : vector<16x16x8xf32>
    %177 = arith.addf %167, %176 : vector<16x16x8xf32>
    %178 = vector.extract_strided_slice %148 {offsets = [1, 0, 0], sizes = [1, 16, 8], strides = [1, 1, 1]} : vector<4x16x8xf32> to vector<1x16x8xf32>
    %179 = vector.shape_cast %178 : vector<1x16x8xf32> to vector<16x8xf32>
    %180 = vector.shape_cast %179 : vector<16x8xf32> to vector<16x1x8xf32>
    %181 = vector.extract_strided_slice %147 {offsets = [1, 0, 0], sizes = [1, 16, 8], strides = [1, 1, 1]} : vector<4x16x8xf32> to vector<1x16x8xf32>
    %182 = vector.shape_cast %181 : vector<1x16x8xf32> to vector<16x8xf32>
    %183 = vector.shape_cast %182 : vector<16x8xf32> to vector<1x16x8xf32>
    %184 = vector.broadcast %180 : vector<16x1x8xf32> to vector<16x16x8xf32>
    %185 = vector.broadcast %183 : vector<1x16x8xf32> to vector<16x16x8xf32>
    %186 = arith.mulf %184, %185 : vector<16x16x8xf32>
    %187 = arith.addf %177, %186 : vector<16x16x8xf32>
    %188 = vector.extract_strided_slice %147 {offsets = [2, 0, 0], sizes = [1, 16, 8], strides = [1, 1, 1]} : vector<4x16x8xf32> to vector<1x16x8xf32>
    %189 = vector.shape_cast %188 : vector<1x16x8xf32> to vector<16x8xf32>
    %190 = vector.shape_cast %189 : vector<16x8xf32> to vector<16x1x8xf32>
    %191 = vector.extract_strided_slice %148 {offsets = [2, 0, 0], sizes = [1, 16, 8], strides = [1, 1, 1]} : vector<4x16x8xf32> to vector<1x16x8xf32>
    %192 = vector.shape_cast %191 : vector<1x16x8xf32> to vector<16x8xf32>
    %193 = vector.shape_cast %192 : vector<16x8xf32> to vector<1x16x8xf32>
    %194 = vector.broadcast %190 : vector<16x1x8xf32> to vector<16x16x8xf32>
    %195 = vector.broadcast %193 : vector<1x16x8xf32> to vector<16x16x8xf32>
    %196 = arith.mulf %194, %195 : vector<16x16x8xf32>
    %197 = arith.addf %187, %196 : vector<16x16x8xf32>
    %198 = vector.extract_strided_slice %148 {offsets = [2, 0, 0], sizes = [1, 16, 8], strides = [1, 1, 1]} : vector<4x16x8xf32> to vector<1x16x8xf32>
    %199 = vector.shape_cast %198 : vector<1x16x8xf32> to vector<16x8xf32>
    %200 = vector.shape_cast %199 : vector<16x8xf32> to vector<16x1x8xf32>
    %201 = vector.extract_strided_slice %147 {offsets = [2, 0, 0], sizes = [1, 16, 8], strides = [1, 1, 1]} : vector<4x16x8xf32> to vector<1x16x8xf32>
    %202 = vector.shape_cast %201 : vector<1x16x8xf32> to vector<16x8xf32>
    %203 = vector.shape_cast %202 : vector<16x8xf32> to vector<1x16x8xf32>
    %204 = vector.broadcast %200 : vector<16x1x8xf32> to vector<16x16x8xf32>
    %205 = vector.broadcast %203 : vector<1x16x8xf32> to vector<16x16x8xf32>
    %206 = arith.mulf %204, %205 : vector<16x16x8xf32>
    %207 = arith.addf %197, %206 : vector<16x16x8xf32>
    %208 = vector.extract_strided_slice %147 {offsets = [3, 0, 0], sizes = [1, 16, 8], strides = [1, 1, 1]} : vector<4x16x8xf32> to vector<1x16x8xf32>
    %209 = vector.shape_cast %208 : vector<1x16x8xf32> to vector<16x8xf32>
    %210 = vector.shape_cast %209 : vector<16x8xf32> to vector<16x1x8xf32>
    %211 = vector.extract_strided_slice %148 {offsets = [3, 0, 0], sizes = [1, 16, 8], strides = [1, 1, 1]} : vector<4x16x8xf32> to vector<1x16x8xf32>
    %212 = vector.shape_cast %211 : vector<1x16x8xf32> to vector<16x8xf32>
    %213 = vector.shape_cast %212 : vector<16x8xf32> to vector<1x16x8xf32>
    %214 = vector.broadcast %210 : vector<16x1x8xf32> to vector<16x16x8xf32>
    %215 = vector.broadcast %213 : vector<1x16x8xf32> to vector<16x16x8xf32>
    %216 = arith.mulf %214, %215 : vector<16x16x8xf32>
    %217 = arith.addf %207, %216 : vector<16x16x8xf32>
    %218 = vector.extract_strided_slice %148 {offsets = [3, 0, 0], sizes = [1, 16, 8], strides = [1, 1, 1]} : vector<4x16x8xf32> to vector<1x16x8xf32>
    %219 = vector.shape_cast %218 : vector<1x16x8xf32> to vector<16x8xf32>
    %220 = vector.shape_cast %219 : vector<16x8xf32> to vector<16x1x8xf32>
    %221 = vector.extract_strided_slice %147 {offsets = [3, 0, 0], sizes = [1, 16, 8], strides = [1, 1, 1]} : vector<4x16x8xf32> to vector<1x16x8xf32>
    %222 = vector.shape_cast %221 : vector<1x16x8xf32> to vector<16x8xf32>
    %223 = vector.shape_cast %222 : vector<16x8xf32> to vector<1x16x8xf32>
    %224 = vector.broadcast %220 : vector<16x1x8xf32> to vector<16x16x8xf32>
    %225 = vector.broadcast %223 : vector<1x16x8xf32> to vector<16x16x8xf32>
    %226 = arith.mulf %224, %225 : vector<16x16x8xf32>
    %227 = arith.addf %217, %226 : vector<16x16x8xf32>
    %228 = math.absf %227 : vector<16x16x8xf32>
    %229 = math.sqrt %228 : vector<16x16x8xf32>
    %cst_37 = arith.constant 0.000000e+00 : f32
    %230 = vector.broadcast %cst_37 : f32 to vector<16x16x8xf32>
    %231 = arith.cmpf olt, %227, %230 : vector<16x16x8xf32>
    %cst_38 = arith.constant 0.000000e+00 : f32
    %232 = vector.broadcast %cst_38 : f32 to vector<16x16x8xf32>
    %233 = arith.subf %232, %229 : vector<16x16x8xf32>
    %234 = arith.select %231, %233, %229 : vector<16x16x8xi1>, vector<16x16x8xf32>
    %cst_39 = arith.constant dense<0.000000e+00> : vector<16x8xf32>
    %235 = vector.multi_reduction <add>, %229, %cst_39 [1] : vector<16x16x8xf32> to vector<16x8xf32>
    %236 = vector.shape_cast %235 : vector<16x8xf32> to vector<16x1x8xf32>
    %cst_40 = arith.constant 1.000000e-07 : f32
    %237 = vector.broadcast %cst_40 : f32 to vector<16x1x8xf32>
    %238 = arith.addf %236, %237 : vector<16x1x8xf32>
    %239 = tpu.reciprocal %238 {approx = true} : vector<16x1x8xf32> -> vector<16x1x8xf32>
    %240 = arith.mulf %238, %239 : vector<16x1x8xf32>
    %cst_41 = arith.constant 2.000000e+00 : f32
    %241 = vector.broadcast %cst_41 : f32 to vector<16x1x8xf32>
    %242 = arith.subf %241, %240 : vector<16x1x8xf32>
    %243 = arith.mulf %239, %242 : vector<16x1x8xf32>
    %244 = vector.broadcast %243 : vector<16x1x8xf32> to vector<16x16x8xf32>
    %245 = arith.mulf %234, %244 : vector<16x16x8xf32>
    %246 = vector.shape_cast %147 : vector<4x16x8xf32> to vector<4x16x1x8xf32>
    %247 = vector.shape_cast %245 : vector<16x16x8xf32> to vector<1x16x16x8xf32>
    %248 = vector.broadcast %246 : vector<4x16x1x8xf32> to vector<4x16x16x8xf32>
    %249 = vector.broadcast %247 : vector<1x16x16x8xf32> to vector<4x16x16x8xf32>
    %250 = arith.mulf %248, %249 : vector<4x16x16x8xf32>
    %cst_42 = arith.constant dense<0.000000e+00> : vector<4x16x8xf32>
    %251 = vector.multi_reduction <add>, %250, %cst_42 [1] : vector<4x16x16x8xf32> to vector<4x16x8xf32>
    %c0_43 = arith.constant 0 : index
    %c0_44 = arith.constant 0 : index
    %252 = vector.load %arg7[%c0_43, %c0_44] : memref<32x64xf32, #tpu.memory_space<vmem>>, vector<32x64xf32>
    %253 = vector.shape_cast %251 : vector<4x16x8xf32> to vector<64x8xf32>
    %cst_45 = arith.constant dense<0.000000e+00> : vector<32x8xf32>
    %254 = tpu.matmul %252, %253, %cst_45 {dimension_numbers = #tpu.dot_dimension_numbers<[1], [0], [0], [1], [0, 0, 1, 1], [], []>} : vector<32x64xf32>, vector<64x8xf32>, vector<32x8xf32> -> vector<32x8xf32>
    %c0_46 = arith.constant 0 : index
    %c0_47 = arith.constant 0 : index
    %255 = vector.load %arg8[%c0_46, %c0_47] : memref<32x1xf32, #tpu.memory_space<vmem>>, vector<32x1xf32>
    %256 = vector.broadcast %255 : vector<32x1xf32> to vector<32x8xf32>
    %257 = arith.addf %254, %256 : vector<32x8xf32>
    %c0_48 = arith.constant 0 : index
    %c0_49 = arith.constant 0 : index
    %258 = vector.load %arg9[%c0_48, %c0_49] : memref<32x1xf32, #tpu.memory_space<vmem>>, vector<32x1xf32>
    %259 = vector.broadcast %258 : vector<32x1xf32> to vector<32x8xf32>
    %260 = arith.mulf %257, %259 : vector<32x8xf32>
    %c0_50 = arith.constant 0 : index
    %c0_51 = arith.constant 0 : index
    %261 = vector.load %arg10[%c0_50, %c0_51] : memref<32x1xf32, #tpu.memory_space<vmem>>, vector<32x1xf32>
    %262 = vector.broadcast %261 : vector<32x1xf32> to vector<32x8xf32>
    %263 = arith.addf %260, %262 : vector<32x8xf32>
    %264 = math.absf %263 : vector<32x8xf32>
    %cst_52 = arith.constant 1.000000e+00 : f32
    %265 = vector.broadcast %cst_52 : f32 to vector<32x8xf32>
    %266 = arith.addf %265, %264 : vector<32x8xf32>
    %267 = tpu.reciprocal %266 {approx = true} : vector<32x8xf32> -> vector<32x8xf32>
    %268 = arith.mulf %266, %267 : vector<32x8xf32>
    %cst_53 = arith.constant 2.000000e+00 : f32
    %269 = vector.broadcast %cst_53 : f32 to vector<32x8xf32>
    %270 = arith.subf %269, %268 : vector<32x8xf32>
    %271 = arith.mulf %267, %270 : vector<32x8xf32>
    %272 = arith.mulf %263, %271 : vector<32x8xf32>
    %c0_54 = arith.constant 0 : index
    %c0_55 = arith.constant 0 : index
    %273 = vector.load %arg11[%c0_54, %c0_55] : memref<8x32xf32, #tpu.memory_space<vmem>>, vector<8x32xf32>
    %cst_56 = arith.constant dense<0.000000e+00> : vector<8x8xf32>
    %274 = tpu.matmul %273, %272, %cst_56 {dimension_numbers = #tpu.dot_dimension_numbers<[1], [0], [0], [1], [0, 0, 1, 1], [], []>} : vector<8x32xf32>, vector<32x8xf32>, vector<8x8xf32> -> vector<8x8xf32>
    %c0_57 = arith.constant 0 : index
    %c0_58 = arith.constant 0 : index
    %275 = vector.load %arg12[%c0_57, %c0_58] : memref<8x1xf32, #tpu.memory_space<vmem>>, vector<8x1xf32>
    %276 = vector.broadcast %275 : vector<8x1xf32> to vector<8x8xf32>
    %277 = arith.addf %274, %276 : vector<8x8xf32>
    %c0_59 = arith.constant 0 : index
    %c0_60 = arith.constant 0 : index
    %278 = vector.load %arg13[%c0_59, %c0_60] : memref<8x8xf32, #tpu.memory_space<vmem>>, vector<8x8xf32>
    tpu.vector_store %arg13[%c0_59, %c0_60], %277 {strides = array<i32>} : memref<8x8xf32, #tpu.memory_space<vmem>>, vector<8x8xf32>,
    return
  }
  func.func @transform_0(%arg0: i32) -> (i32, i32) {
    %c0_i32 = arith.constant 0 : i32
    %c0_i32_0 = arith.constant 0 : i32
    return %c0_i32, %arg0 : i32, i32
  }
  func.func @transform_1(%arg0: i32) -> (i32, i32, i32) {
    %c0_i32 = arith.constant 0 : i32
    %c0_i32_0 = arith.constant 0 : i32
    %c0_i32_1 = arith.constant 0 : i32
    return %c0_i32, %c0_i32_0, %arg0 : i32, i32, i32
  }
  func.func @transform_2(%arg0: i32) -> (i32, i32) {
    %c0_i32 = arith.constant 0 : i32
    %c0_i32_0 = arith.constant 0 : i32
    %c0_i32_1 = arith.constant 0 : i32
    return %c0_i32, %c0_i32_0 : i32, i32
  }
  func.func @transform_3(%arg0: i32) -> (i32, i32) {
    %c0_i32 = arith.constant 0 : i32
    %c0_i32_0 = arith.constant 0 : i32
    %c0_i32_1 = arith.constant 0 : i32
    return %c0_i32, %c0_i32_0 : i32, i32
  }
  func.func @transform_4(%arg0: i32) -> (i32, i32) {
    %c0_i32 = arith.constant 0 : i32
    %c0_i32_0 = arith.constant 0 : i32
    %c0_i32_1 = arith.constant 0 : i32
    return %c0_i32, %c0_i32_0 : i32, i32
  }
  func.func @transform_5(%arg0: i32) -> (i32, i32) {
    %c0_i32 = arith.constant 0 : i32
    %c0_i32_0 = arith.constant 0 : i32
    %c0_i32_1 = arith.constant 0 : i32
    return %c0_i32, %c0_i32_0 : i32, i32
  }
  func.func @transform_6(%arg0: i32) -> (i32, i32) {
    %c0_i32 = arith.constant 0 : i32
    %c0_i32_0 = arith.constant 0 : i32
    %c0_i32_1 = arith.constant 0 : i32
    return %c0_i32, %c0_i32_0 : i32, i32
  }
  func.func @transform_7(%arg0: i32) -> (i32, i32) {
    %c0_i32 = arith.constant 0 : i32
    %c0_i32_0 = arith.constant 0 : i32
    %c0_i32_1 = arith.constant 0 : i32
    return %c0_i32, %c0_i32_0 : i32, i32
  }
  func.func @transform_8(%arg0: i32) -> (i32, i32) {
    %c0_i32 = arith.constant 0 : i32
    %c0_i32_0 = arith.constant 0 : i32
    %c0_i32_1 = arith.constant 0 : i32
    return %c0_i32, %c0_i32_0 : i32, i32
  }
  func.func @transform_9(%arg0: i32) -> (i32, i32) {
    %c0_i32 = arith.constant 0 : i32
    %c0_i32_0 = arith.constant 0 : i32
    %c0_i32_1 = arith.constant 0 : i32
    return %c0_i32, %c0_i32_0 : i32, i32
  }
  func.func @transform_10(%arg0: i32) -> (i32, i32) {
    %c0_i32 = arith.constant 0 : i32
    %c0_i32_0 = arith.constant 0 : i32
    %c0_i32_1 = arith.constant 0 : i32
    return %c0_i32, %c0_i32_0 : i32, i32
  }
  func.func @transform_11(%arg0: i32) -> (i32, i32) {
    %c0_i32 = arith.constant 0 : i32
    %c0_i32_0 = arith.constant 0 : i32
    %c0_i32_1 = arith.constant 0 : i32
    return %c0_i32, %c0_i32_0 : i32, i32
  }
  func.func @transform_12(%arg0: i32) -> (i32, i32) {
    %c0_i32 = arith.constant 0 : i32
    %c0_i32_0 = arith.constant 0 : i32
    return %c0_i32, %arg0 : i32, i32
  }
}

</mosaic_0001>

<llo_original>
// kernel: lgl_forward.1
$region0: #{lgl_forward.1}
  #allocation0 [shape = 'u32[]', space=smem, size = 0x4, offset = 0x4, fixed_abs, tag = 'smem constant byte address 0x4 - core index']
  #allocation1 [shape = 'u32[72,128]{1,0:T(1,128)}', space=vmem, size = 0x9000, scoped, tag = 'internal scratch']
  %s0 = inlined_call_operand.vmem [shape: f32[16,8], index: 0, kind: input, shape index: {}]
  %s1 = inlined_call_operand.vmem [shape: f32[4,16,8], index: 1, kind: input, shape index: {}]
  %s2 = inlined_call_operand.vmem [shape: f32[64,16], index: 2, kind: input, shape index: {}]
  %s3 = inlined_call_operand.vmem [shape: f32[64,1], index: 3, kind: input, shape index: {}]
  %s4 = inlined_call_operand.vmem [shape: f32[64,1], index: 4, kind: input, shape index: {}]
  %s5 = inlined_call_operand.vmem [shape: f32[64,1], index: 5, kind: input, shape index: {}]
  %s6 = inlined_call_operand.vmem [shape: f32[32,64], index: 6, kind: input, shape index: {}]
  %s7 = inlined_call_operand.vmem [shape: f32[32,1], index: 7, kind: input, shape index: {}]
  %s8 = inlined_call_operand.vmem [shape: f32[32,1], index: 8, kind: input, shape index: {}]
  %s9 = inlined_call_operand.vmem [shape: f32[32,1], index: 9, kind: input, shape index: {}]
  %s10 = inlined_call_operand.vmem [shape: f32[8,32], index: 10, kind: input, shape index: {}]
  %s11 = inlined_call_operand.vmem [shape: f32[8,1], index: 11, kind: input, shape index: {}]
  %s12 = inlined_call_operand.vmem [shape: f32[8,8], index: 12, kind: output, shape index: {}]
  %s13 = sld [smem:[#allocation0]]
  $region58: #{lgl_forward.1} parent=0
    _
  %s15 = ssub.s32 1, %s13
  %s16 = scalar_select 0, %s15, %s13
  // Predicated region
  $region2: #{lgl_forward.1} parent=0 // pred_check
    _
  $region3: #{lgl_forward.1} parent=0 // pred_check_branch
    %18 = sbr.rel (0) target = $region5
  $region4: #{lgl_forward.1} parent=0 // pred_region
    _
  $region5: #{lgl_forward.1} parent=0 // pred_fallthru
    _
  // Predicated region
  $region6: #{lgl_forward.1} parent=0 // pred_check
    _
  $region7: #{lgl_forward.1} parent=0 // pred_check_branch
    %20 = sbr.rel (0) target = $region9
  $region8: #{lgl_forward.1} parent=0 // pred_region
    _
  $region9: #{lgl_forward.1} parent=0 // pred_fallthru
    _
  // Predicated region
  $region10: #{lgl_forward.1} parent=0 // pred_check
    _
  $region11: #{lgl_forward.1} parent=0 // pred_check_branch
    %22 = sbr.rel (0) target = $region13
  $region12: #{lgl_forward.1} parent=0 // pred_region
    _
  $region13: #{lgl_forward.1} parent=0 // pred_fallthru
    _
  // Predicated region
  $region14: #{lgl_forward.1} parent=0 // pred_check
    _
  $region15: #{lgl_forward.1} parent=0 // pred_check_branch
    %24 = sbr.rel (0) target = $region17
  $region16: #{lgl_forward.1} parent=0 // pred_region
    _
  $region17: #{lgl_forward.1} parent=0 // pred_fallthru
    _
  // Predicated region
  $region18: #{lgl_forward.1} parent=0 // pred_check
    _
  $region19: #{lgl_forward.1} parent=0 // pred_check_branch
    %26 = sbr.rel (0) target = $region21
  $region20: #{lgl_forward.1} parent=0 // pred_region
    _
  $region21: #{lgl_forward.1} parent=0 // pred_fallthru
    _
  // Predicated region
  $region22: #{lgl_forward.1} parent=0 // pred_check
    _
  $region23: #{lgl_forward.1} parent=0 // pred_check_branch
    %28 = sbr.rel (0) target = $region25
  $region24: #{lgl_forward.1} parent=0 // pred_region
    _
  $region25: #{lgl_forward.1} parent=0 // pred_fallthru
    _
  // Predicated region
  $region26: #{lgl_forward.1} parent=0 // pred_check
    _
  $region27: #{lgl_forward.1} parent=0 // pred_check_branch
    %30 = sbr.rel (0) target = $region29
  $region28: #{lgl_forward.1} parent=0 // pred_region
    _
  $region29: #{lgl_forward.1} parent=0 // pred_fallthru
    _
  // Predicated region
  $region30: #{lgl_forward.1} parent=0 // pred_check
    _
  $region31: #{lgl_forward.1} parent=0 // pred_check_branch
    %32 = sbr.rel (0) target = $region33
  $region32: #{lgl_forward.1} parent=0 // pred_region
    _
  $region33: #{lgl_forward.1} parent=0 // pred_fallthru
    _
  // Predicated region
  $region34: #{lgl_forward.1} parent=0 // pred_check
    _
  $region35: #{lgl_forward.1} parent=0 // pred_check_branch
    %34 = sbr.rel (0) target = $region37
  $region36: #{lgl_forward.1} parent=0 // pred_region
    _
  $region37: #{lgl_forward.1} parent=0 // pred_fallthru
    _
  // Predicated region
  $region38: #{lgl_forward.1} parent=0 // pred_check
    _
  $region39: #{lgl_forward.1} parent=0 // pred_check_branch
    %36 = sbr.rel (0) target = $region41
  $region40: #{lgl_forward.1} parent=0 // pred_region
    _
  $region41: #{lgl_forward.1} parent=0 // pred_fallthru
    _
  // Predicated region
  $region42: #{lgl_forward.1} parent=0 // pred_check
    _
  $region43: #{lgl_forward.1} parent=0 // pred_check_branch
    %38 = sbr.rel (0) target = $region45
  $region44: #{lgl_forward.1} parent=0 // pred_region
    _
  $region45: #{lgl_forward.1} parent=0 // pred_fallthru
    _
  // Predicated region
  $region46: #{lgl_forward.1} parent=0 // pred_check
    _
  $region47: #{lgl_forward.1} parent=0 // pred_check_branch
    %40 = sbr.rel (0) target = $region49
  $region48: #{lgl_forward.1} parent=0 // pred_region
    _
  $region49: #{lgl_forward.1} parent=0 // pred_fallthru
    _
  %v41 = vld [vmem:[%s0] sm:$0xff]
  %v42 = vld [vmem:[%s0 + $0x8] sm:$0xff]
  %v43 = vld [vmem:[%s1] sm:$0xff]
  %v44 = vld [vmem:[%s1 + $0x8] sm:$0xff]
  %v45 = vld [vmem:[%s1 + $0x10] sm:$0xff]
  %v46 = vld [vmem:[%s1 + $0x18] sm:$0xff]
  %v47 = vld [vmem:[%s1 + $0x20] sm:$0xff]
  %v48 = vld [vmem:[%s1 + $0x28] sm:$0xff]
  %v49 = vld [vmem:[%s1 + $0x30] sm:$0xff]
  %v50 = vld [vmem:[%s1 + $0x38] sm:$0xff]
  %v51 = vld [vmem:[%s2] sm:$0xff]
  %v52 = vld [vmem:[%s2 + $0x8] sm:$0xff]
  %v53 = vld [vmem:[%s2 + $0x10] sm:$0xff]
  %v54 = vld [vmem:[%s2 + $0x18] sm:$0xff]
  %v55 = vld [vmem:[%s2 + $0x20] sm:$0xff]
  %v56 = vld [vmem:[%s2 + $0x28] sm:$0xff]
  %v57 = vld [vmem:[%s2 + $0x30] sm:$0xff]
  %v58 = vld [vmem:[%s2 + $0x38] sm:$0xff]
  %v59 = vld [vmem:[%s3] sm:$0xff]
  %v60 = vld [vmem:[%s3 + $0x8] sm:$0xff]
  %v61 = vld [vmem:[%s3 + $0x10] sm:$0xff]
  %v62 = vld [vmem:[%s3 + $0x18] sm:$0xff]
  %v63 = vld [vmem:[%s3 + $0x20] sm:$0xff]
  %v64 = vld [vmem:[%s3 + $0x28] sm:$0xff]
  %v65 = vld [vmem:[%s3 + $0x30] sm:$0xff]
  %v66 = vld [vmem:[%s3 + $0x38] sm:$0xff]
  %v67 = vld [vmem:[%s4] sm:$0xff]
  %v68 = vld [vmem:[%s4 + $0x8] sm:$0xff]
  %v69 = vld [vmem:[%s4 + $0x10] sm:$0xff]
  %v70 = vld [vmem:[%s4 + $0x18] sm:$0xff]
  %v71 = vld [vmem:[%s4 + $0x20] sm:$0xff]
  %v72 = vld [vmem:[%s4 + $0x28] sm:$0xff]
  %v73 = vld [vmem:[%s4 + $0x30] sm:$0xff]
  %v74 = vld [vmem:[%s4 + $0x38] sm:$0xff]
  %v75 = vld [vmem:[%s5] sm:$0xff]
  %v76 = vld [vmem:[%s5 + $0x8] sm:$0xff]
  %v77 = vld [vmem:[%s5 + $0x10] sm:$0xff]
  %v78 = vld [vmem:[%s5 + $0x18] sm:$0xff]
  %v79 = vld [vmem:[%s5 + $0x20] sm:$0xff]
  %v80 = vld [vmem:[%s5 + $0x28] sm:$0xff]
  %v81 = vld [vmem:[%s5 + $0x30] sm:$0xff]
  %v82 = vld [vmem:[%s5 + $0x38] sm:$0xff]
  %vm83 = vcmask 64512
  %v84 = vsel %vm83, %v43, 0.0
  %v85 = vsel %vm83, %v45, 0.0
  %v86 = vadd.f32 %v84, %v85
  %v87 = vsel %vm83, %v47, 0.0
  %v88 = vadd.f32 %v86, %v87
  %v89 = vsel %vm83, %v49, 0.0
  %v90 = vadd.f32 %v88, %v89
  %v91 = vsel %vm83, %v44, 0.0
  %v92 = vsel %vm83, %v46, 0.0
  %v93 = vadd.f32 %v91, %v92
  %v94 = vsel %vm83, %v48, 0.0
  %v95 = vadd.f32 %v93, %v94
  %v96 = vsel %vm83, %v50, 0.0
  %v97 = vadd.f32 %v95, %v96
  %v100 = vrot.slane %v41, 1
  %v101 = vrot.slane %v41, 2
  %v102 = vrot.slane %v41, 3
  %v103 = vrot.slane %v41, 4
  %v104 = vrot.slane %v41, 5
  %v105 = vrot.slane %v41, 6
  %v106 = vrot.slane %v41, 7
  %v107 = vrot.slane %v42, 1
  %v108 = vrot.slane %v42, 2
  %v109 = vrot.slane %v42, 3
  %v110 = vrot.slane %v42, 4
  %v111 = vrot.slane %v42, 5
  %v112 = vrot.slane %v42, 6
  %v113 = vrot.slane %v42, 7
  %v114 = vperm.slane %v41, 0
  %v115 = vperm.slane %v100, 0
  %v116 = vperm.slane %v101, 0
  %v117 = vperm.slane %v102, 0
  %v118 = vperm.slane %v103, 0
  %v119 = vperm.slane %v104, 0
  %v120 = vperm.slane %v105, 0
  %v121 = vperm.slane %v106, 0
  %v122 = vperm.slane %v42, 0
  %v123 = vperm.slane %v107, 0
  %v124 = vperm.slane %v108, 0
  %v125 = vperm.slane %v109, 0
  %v126 = vperm.slane %v110, 0
  %v127 = vperm.slane %v111, 0
  %v128 = vperm.slane %v112, 0
  %v129 = vperm.slane %v113, 0
  %v146 = vmul.f32 %v114, %v90
  %v147 = vmul.f32 %v114, %v97
  %v148 = vmul.f32 %v115, %v90
  %v149 = vmul.f32 %v115, %v97
  %v150 = vmul.f32 %v116, %v90
  %v151 = vmul.f32 %v116, %v97
  %v152 = vmul.f32 %v117, %v90
  %v153 = vmul.f32 %v117, %v97
  %v154 = vmul.f32 %v118, %v90
  %v155 = vmul.f32 %v118, %v97
  %v156 = vmul.f32 %v119, %v90
  %v157 = vmul.f32 %v119, %v97
  %v158 = vmul.f32 %v120, %v90
  %v159 = vmul.f32 %v120, %v97
  %v160 = vmul.f32 %v121, %v90
  %v161 = vmul.f32 %v121, %v97
  %v162 = vmul.f32 %v122, %v90
  %v163 = vmul.f32 %v122, %v97
  %v164 = vmul.f32 %v123, %v90
  %v165 = vmul.f32 %v123, %v97
  %v166 = vmul.f32 %v124, %v90
  %v167 = vmul.f32 %v124, %v97
  %v168 = vmul.f32 %v125, %v90
  %v169 = vmul.f32 %v125, %v97
  %v170 = vmul.f32 %v126, %v90
  %v171 = vmul.f32 %v126, %v97
  %v172 = vmul.f32 %v127, %v90
  %v173 = vmul.f32 %v127, %v97
  %v174 = vmul.f32 %v128, %v90
  %v175 = vmul.f32 %v128, %v97
  %v176 = vmul.f32 %v129, %v90
  %v177 = vmul.f32 %v129, %v97
  %v180 = vrot.slane %v90, 1
  %v181 = vrot.slane %v90, 2
  %v182 = vrot.slane %v90, 3
  %v183 = vrot.slane %v90, 4
  %v184 = vrot.slane %v90, 5
  %v185 = vrot.slane %v90, 6
  %v186 = vrot.slane %v90, 7
  %v187 = vrot.slane %v97, 1
  %v188 = vrot.slane %v97, 2
  %v189 = vrot.slane %v97, 3
  %v190 = vrot.slane %v97, 4
  %v191 = vrot.slane %v97, 5
  %v192 = vrot.slane %v97, 6
  %v193 = vrot.slane %v97, 7
  %v194 = vperm.slane %v90, 0
  %v195 = vperm.slane %v180, 0
  %v196 = vperm.slane %v181, 0
  %v197 = vperm.slane %v182, 0
  %v198 = vperm.slane %v183, 0
  %v199 = vperm.slane %v184, 0
  %v200 = vperm.slane %v185, 0
  %v201 = vperm.slane %v186, 0
  %v202 = vperm.slane %v97, 0
  %v203 = vperm.slane %v187, 0
  %v204 = vperm.slane %v188, 0
  %v205 = vperm.slane %v189, 0
  %v206 = vperm.slane %v190, 0
  %v207 = vperm.slane %v191, 0
  %v208 = vperm.slane %v192, 0
  %v209 = vperm.slane %v193, 0
  %v226 = vmul.f32 %v194, %v41
  %v227 = vmul.f32 %v194, %v42
  %v228 = vmul.f32 %v195, %v41
  %v229 = vmul.f32 %v195, %v42
  %v230 = vmul.f32 %v196, %v41
  %v231 = vmul.f32 %v196, %v42
  %v232 = vmul.f32 %v197, %v41
  %v233 = vmul.f32 %v197, %v42
  %v234 = vmul.f32 %v198, %v41
  %v235 = vmul.f32 %v198, %v42
  %v236 = vmul.f32 %v199, %v41
  %v237 = vmul.f32 %v199, %v42
  %v238 = vmul.f32 %v200, %v41
  %v239 = vmul.f32 %v200, %v42
  %v240 = vmul.f32 %v201, %v41
  %v241 = vmul.f32 %v201, %v42
  %v242 = vmul.f32 %v202, %v41
  %v243 = vmul.f32 %v202, %v42
  %v244 = vmul.f32 %v203, %v41
  %v245 = vmul.f32 %v203, %v42
  %v246 = vmul.f32 %v204, %v41
  %v247 = vmul.f32 %v204, %v42
  %v248 = vmul.f32 %v205, %v41
  %v249 = vmul.f32 %v205, %v42
  %v250 = vmul.f32 %v206, %v41
  %v251 = vmul.f32 %v206, %v42
  %v252 = vmul.f32 %v207, %v41
  %v253 = vmul.f32 %v207, %v42
  %v254 = vmul.f32 %v208, %v41
  %v255 = vmul.f32 %v208, %v42
  %v256 = vmul.f32 %v209, %v41
  %v257 = vmul.f32 %v209, %v42
  %v258 = vadd.f32 %v146, %v226
  %v259 = vadd.f32 %v147, %v227
  %v260 = vadd.f32 %v148, %v228
  %v261 = vadd.f32 %v149, %v229
  %v262 = vadd.f32 %v150, %v230
  %v263 = vadd.f32 %v151, %v231
  %v264 = vadd.f32 %v152, %v232
  %v265 = vadd.f32 %v153, %v233
  %v266 = vadd.f32 %v154, %v234
  %v267 = vadd.f32 %v155, %v235
  %v268 = vadd.f32 %v156, %v236
  %v269 = vadd.f32 %v157, %v237
  %v270 = vadd.f32 %v158, %v238
  %v271 = vadd.f32 %v159, %v239
  %v272 = vadd.f32 %v160, %v240
  %v273 = vadd.f32 %v161, %v241
  %v274 = vadd.f32 %v162, %v242
  %v275 = vadd.f32 %v163, %v243
  %v276 = vadd.f32 %v164, %v244
  %v277 = vadd.f32 %v165, %v245
  %v278 = vadd.f32 %v166, %v246
  %v279 = vadd.f32 %v167, %v247
  %v280 = vadd.f32 %v168, %v248
  %v281 = vadd.f32 %v169, %v249
  %v282 = vadd.f32 %v170, %v250
  %v283 = vadd.f32 %v171, %v251
  %v284 = vadd.f32 %v172, %v252
  %v285 = vadd.f32 %v173, %v253
  %v286 = vadd.f32 %v174, %v254
  %v287 = vadd.f32 %v175, %v255
  %v288 = vadd.f32 %v176, %v256
  %v289 = vadd.f32 %v177, %v257
  %v290 = vand.u32 2147483647, %v258
  %v291 = vand.u32 2147483647, %v259
  %v292 = vand.u32 2147483647, %v260
  %v293 = vand.u32 2147483647, %v261
  %v294 = vand.u32 2147483647, %v262
  %v295 = vand.u32 2147483647, %v263
  %v296 = vand.u32 2147483647, %v264
  %v297 = vand.u32 2147483647, %v265
  %v298 = vand.u32 2147483647, %v266
  %v299 = vand.u32 2147483647, %v267
  %v300 = vand.u32 2147483647, %v268
  %v301 = vand.u32 2147483647, %v269
  %v302 = vand.u32 2147483647, %v270
  %v303 = vand.u32 2147483647, %v271
  %v304 = vand.u32 2147483647, %v272
  %v305 = vand.u32 2147483647, %v273
  %v306 = vand.u32 2147483647, %v274
  %v307 = vand.u32 2147483647, %v275
  %v308 = vand.u32 2147483647, %v276
  %v309 = vand.u32 2147483647, %v277
  %v310 = vand.u32 2147483647, %v278
  %v311 = vand.u32 2147483647, %v279
  %v312 = vand.u32 2147483647, %v280
  %v313 = vand.u32 2147483647, %v281
  %v314 = vand.u32 2147483647, %v282
  %v315 = vand.u32 2147483647, %v283
  %v316 = vand.u32 2147483647, %v284
  %v317 = vand.u32 2147483647, %v285
  %v318 = vand.u32 2147483647, %v286
  %v319 = vand.u32 2147483647, %v287
  %v320 = vand.u32 2147483647, %v288
  %v321 = vand.u32 2147483647, %v289
  %v322 = vrsqrt.pop %v290
  %v323 = vmul.f32 %v322, %v290
  %v324 = vmul.f32 %v323, %v322
  %v325 = vmul.f32 0.5, %v324
  %v326 = vsub.f32 1.5, %v325
  %v327 = vmul.f32 %v322, %v326
  %v328 = vmul.f32 %v290, %v327
  %vm329 = vcmp.eq.f32.partialorder %v290, inf
  %v330 = vsel %vm329, %v290, %v328
  %vm331 = vcmp.eq.f32.partialorder %v290, 0.0
  %v332 = vand.u32 %v290, 2147483648
  %v333 = vsel %vm331, %v332, %v330
  %v334 = vrsqrt.pop %v291
  %v335 = vmul.f32 %v334, %v291
  %v336 = vmul.f32 %v335, %v334
  %v337 = vmul.f32 0.5, %v336
  %v338 = vsub.f32 1.5, %v337
  %v339 = vmul.f32 %v334, %v338
  %v340 = vmul.f32 %v291, %v339
  %vm341 = vcmp.eq.f32.partialorder %v291, inf
  %v342 = vsel %vm341, %v291, %v340
  %vm343 = vcmp.eq.f32.partialorder %v291, 0.0
  %v344 = vand.u32 %v291, 2147483648
  %v345 = vsel %vm343, %v344, %v342
  %v346 = vrsqrt.pop %v292
  %v347 = vmul.f32 %v346, %v292
  %v348 = vmul.f32 %v347, %v346
  %v349 = vmul.f32 0.5, %v348
  %v350 = vsub.f32 1.5, %v349
  %v351 = vmul.f32 %v346, %v350
  %v352 = vmul.f32 %v292, %v351
  %vm353 = vcmp.eq.f32.partialorder %v292, inf
  %v354 = vsel %vm353, %v292, %v352
  %vm355 = vcmp.eq.f32.partialorder %v292, 0.0
  %v356 = vand.u32 %v292, 2147483648
  %v357 = vsel %vm355, %v356, %v354
  %v358 = vrsqrt.pop %v293
  %v359 = vmul.f32 %v358, %v293
  %v360 = vmul.f32 %v359, %v358
  %v361 = vmul.f32 0.5, %v360
  %v362 = vsub.f32 1.5, %v361
  %v363 = vmul.f32 %v358, %v362
  %v364 = vmul.f32 %v293, %v363
  %vm365 = vcmp.eq.f32.partialorder %v293, inf
  %v366 = vsel %vm365, %v293, %v364
  %vm367 = vcmp.eq.f32.partialorder %v293, 0.0
  %v368 = vand.u32 %v293, 2147483648
  %v369 = vsel %vm367, %v368, %v366
  %v370 = vrsqrt.pop %v294
  %v371 = vmul.f32 %v370, %v294
  %v372 = vmul.f32 %v371, %v370
  %v373 = vmul.f32 0.5, %v372
  %v374 = vsub.f32 1.5, %v373
  %v375 = vmul.f32 %v370, %v374
  %v376 = vmul.f32 %v294, %v375
  %vm377 = vcmp.eq.f32.partialorder %v294, inf
  %v378 = vsel %vm377, %v294, %v376
  %vm379 = vcmp.eq.f32.partialorder %v294, 0.0
  %v380 = vand.u32 %v294, 2147483648
  %v381 = vsel %vm379, %v380, %v378
  %v382 = vrsqrt.pop %v295
  %v383 = vmul.f32 %v382, %v295
  %v384 = vmul.f32 %v383, %v382
  %v385 = vmul.f32 0.5, %v384
  %v386 = vsub.f32 1.5, %v385
  %v387 = vmul.f32 %v382, %v386
  %v388 = vmul.f32 %v295, %v387
  %vm389 = vcmp.eq.f32.partialorder %v295, inf
  %v390 = vsel %vm389, %v295, %v388
  %vm391 = vcmp.eq.f32.partialorder %v295, 0.0
  %v392 = vand.u32 %v295, 2147483648
  %v393 = vsel %vm391, %v392, %v390
  %v394 = vrsqrt.pop %v296
  %v395 = vmul.f32 %v394, %v296
  %v396 = vmul.f32 %v395, %v394
  %v397 = vmul.f32 0.5, %v396
  %v398 = vsub.f32 1.5, %v397
  %v399 = vmul.f32 %v394, %v398
  %v400 = vmul.f32 %v296, %v399
  %vm401 = vcmp.eq.f32.partialorder %v296, inf
  %v402 = vsel %vm401, %v296, %v400
  %vm403 = vcmp.eq.f32.partialorder %v296, 0.0
  %v404 = vand.u32 %v296, 2147483648
  %v405 = vsel %vm403, %v404, %v402
  %v406 = vrsqrt.pop %v297
  %v407 = vmul.f32 %v406, %v297
  %v408 = vmul.f32 %v407, %v406
  %v409 = vmul.f32 0.5, %v408
  %v410 = vsub.f32 1.5, %v409
  %v411 = vmul.f32 %v406, %v410
  %v412 = vmul.f32 %v297, %v411
  %vm413 = vcmp.eq.f32.partialorder %v297, inf
  %v414 = vsel %vm413, %v297, %v412
  %vm415 = vcmp.eq.f32.partialorder %v297, 0.0
  %v416 = vand.u32 %v297, 2147483648
  %v417 = vsel %vm415, %v416, %v414
  %v418 = vrsqrt.pop %v298
  %v419 = vmul.f32 %v418, %v298
  %v420 = vmul.f32 %v419, %v418
  %v421 = vmul.f32 0.5, %v420
  %v422 = vsub.f32 1.5, %v421
  %v423 = vmul.f32 %v418, %v422
  %v424 = vmul.f32 %v298, %v423
  %vm425 = vcmp.eq.f32.partialorder %v298, inf
  %v426 = vsel %vm425, %v298, %v424
  %vm427 = vcmp.eq.f32.partialorder %v298, 0.0
  %v428 = vand.u32 %v298, 2147483648
  %v429 = vsel %vm427, %v428, %v426
  %v430 = vrsqrt.pop %v299
  %v431 = vmul.f32 %v430, %v299
  %v432 = vmul.f32 %v431, %v430
  %v433 = vmul.f32 0.5, %v432
  %v434 = vsub.f32 1.5, %v433
  %v435 = vmul.f32 %v430, %v434
  %v436 = vmul.f32 %v299, %v435
  %vm437 = vcmp.eq.f32.partialorder %v299, inf
  %v438 = vsel %vm437, %v299, %v436
  %vm439 = vcmp.eq.f32.partialorder %v299, 0.0
  %v440 = vand.u32 %v299, 2147483648
  %v441 = vsel %vm439, %v440, %v438
  %v442 = vrsqrt.pop %v300
  %v443 = vmul.f32 %v442, %v300
  %v444 = vmul.f32 %v443, %v442
  %v445 = vmul.f32 0.5, %v444
  %v446 = vsub.f32 1.5, %v445
  %v447 = vmul.f32 %v442, %v446
  %v448 = vmul.f32 %v300, %v447
  %vm449 = vcmp.eq.f32.partialorder %v300, inf
  %v450 = vsel %vm449, %v300, %v448
  %vm451 = vcmp.eq.f32.partialorder %v300, 0.0
  %v452 = vand.u32 %v300, 2147483648
  %v453 = vsel %vm451, %v452, %v450
  %v454 = vrsqrt.pop %v301
  %v455 = vmul.f32 %v454, %v301
  %v456 = vmul.f32 %v455, %v454
  %v457 = vmul.f32 0.5, %v456
  %v458 = vsub.f32 1.5, %v457
  %v459 = vmul.f32 %v454, %v458
  %v460 = vmul.f32 %v301, %v459
  %vm461 = vcmp.eq.f32.partialorder %v301, inf
  %v462 = vsel %vm461, %v301, %v460
  %vm463 = vcmp.eq.f32.partialorder %v301, 0.0
  %v464 = vand.u32 %v301, 2147483648
  %v465 = vsel %vm463, %v464, %v462
  %v466 = vrsqrt.pop %v302
  %v467 = vmul.f32 %v466, %v302
  %v468 = vmul.f32 %v467, %v466
  %v469 = vmul.f32 0.5, %v468
  %v470 = vsub.f32 1.5, %v469
  %v471 = vmul.f32 %v466, %v470
  %v472 = vmul.f32 %v302, %v471
  %vm473 = vcmp.eq.f32.partialorder %v302, inf
  %v474 = vsel %vm473, %v302, %v472
  %vm475 = vcmp.eq.f32.partialorder %v302, 0.0
  %v476 = vand.u32 %v302, 2147483648
  %v477 = vsel %vm475, %v476, %v474
  %v478 = vrsqrt.pop %v303
  %v479 = vmul.f32 %v478, %v303
  %v480 = vmul.f32 %v479, %v478
  %v481 = vmul.f32 0.5, %v480
  %v482 = vsub.f32 1.5, %v481
  %v483 = vmul.f32 %v478, %v482
  %v484 = vmul.f32 %v303, %v483
  %vm485 = vcmp.eq.f32.partialorder %v303, inf
  %v486 = vsel %vm485, %v303, %v484
  %vm487 = vcmp.eq.f32.partialorder %v303, 0.0
  %v488 = vand.u32 %v303, 2147483648
  %v489 = vsel %vm487, %v488, %v486
  %v490 = vrsqrt.pop %v304
  %v491 = vmul.f32 %v490, %v304
  %v492 = vmul.f32 %v491, %v490
  %v493 = vmul.f32 0.5, %v492
  %v494 = vsub.f32 1.5, %v493
  %v495 = vmul.f32 %v490, %v494
  %v496 = vmul.f32 %v304, %v495
  %vm497 = vcmp.eq.f32.partialorder %v304, inf
  %v498 = vsel %vm497, %v304, %v496
  %vm499 = vcmp.eq.f32.partialorder %v304, 0.0
  %v500 = vand.u32 %v304, 2147483648
  %v501 = vsel %vm499, %v500, %v498
  %v502 = vrsqrt.pop %v305
  %v503 = vmul.f32 %v502, %v305
  %v504 = vmul.f32 %v503, %v502
  %v505 = vmul.f32 0.5, %v504
  %v506 = vsub.f32 1.5, %v505
  %v507 = vmul.f32 %v502, %v506
  %v508 = vmul.f32 %v305, %v507
  %vm509 = vcmp.eq.f32.partialorder %v305, inf
  %v510 = vsel %vm509, %v305, %v508
  %vm511 = vcmp.eq.f32.partialorder %v305, 0.0
  %v512 = vand.u32 %v305, 2147483648
  %v513 = vsel %vm511, %v512, %v510
  %v514 = vrsqrt.pop %v306
  %v515 = vmul.f32 %v514, %v306
  %v516 = vmul.f32 %v515, %v514
  %v517 = vmul.f32 0.5, %v516
  %v518 = vsub.f32 1.5, %v517
  %v519 = vmul.f32 %v514, %v518
  %v520 = vmul.f32 %v306, %v519
  %vm521 = vcmp.eq.f32.partialorder %v306, inf
  %v522 = vsel %vm521, %v306, %v520
  %vm523 = vcmp.eq.f32.partialorder %v306, 0.0
  %v524 = vand.u32 %v306, 2147483648
  %v525 = vsel %vm523, %v524, %v522
  %v526 = vrsqrt.pop %v307
  %v527 = vmul.f32 %v526, %v307
  %v528 = vmul.f32 %v527, %v526
  %v529 = vmul.f32 0.5, %v528
  %v530 = vsub.f32 1.5, %v529
  %v531 = vmul.f32 %v526, %v530
  %v532 = vmul.f32 %v307, %v531
  %vm533 = vcmp.eq.f32.partialorder %v307, inf
  %v534 = vsel %vm533, %v307, %v532
  %vm535 = vcmp.eq.f32.partialorder %v307, 0.0
  %v536 = vand.u32 %v307, 2147483648
  %v537 = vsel %vm535, %v536, %v534
  %v538 = vrsqrt.pop %v308
  %v539 = vmul.f32 %v538, %v308
  %v540 = vmul.f32 %v539, %v538
  %v541 = vmul.f32 0.5, %v540
  %v542 = vsub.f32 1.5, %v541
  %v543 = vmul.f32 %v538, %v542
  %v544 = vmul.f32 %v308, %v543
  %vm545 = vcmp.eq.f32.partialorder %v308, inf
  %v546 = vsel %vm545, %v308, %v544
  %vm547 = vcmp.eq.f32.partialorder %v308, 0.0
  %v548 = vand.u32 %v308, 2147483648
  %v549 = vsel %vm547, %v548, %v546
  %v550 = vrsqrt.pop %v309
  %v551 = vmul.f32 %v550, %v309
  %v552 = vmul.f32 %v551, %v550
  %v553 = vmul.f32 0.5, %v552
  %v554 = vsub.f32 1.5, %v553
  %v555 = vmul.f32 %v550, %v554
  %v556 = vmul.f32 %v309, %v555
  %vm557 = vcmp.eq.f32.partialorder %v309, inf
  %v558 = vsel %vm557, %v309, %v556
  %vm559 = vcmp.eq.f32.partialorder %v309, 0.0
  %v560 = vand.u32 %v309, 2147483648
  %v561 = vsel %vm559, %v560, %v558
  %v562 = vrsqrt.pop %v310
  %v563 = vmul.f32 %v562, %v310
  %v564 = vmul.f32 %v563, %v562
  %v565 = vmul.f32 0.5, %v564
  %v566 = vsub.f32 1.5, %v565
  %v567 = vmul.f32 %v562, %v566
  %v568 = vmul.f32 %v310, %v567
  %vm569 = vcmp.eq.f32.partialorder %v310, inf
  %v570 = vsel %vm569, %v310, %v568
  %vm571 = vcmp.eq.f32.partialorder %v310, 0.0
  %v572 = vand.u32 %v310, 2147483648
  %v573 = vsel %vm571, %v572, %v570
  %v574 = vrsqrt.pop %v311
  %v575 = vmul.f32 %v574, %v311
  %v576 = vmul.f32 %v575, %v574
  %v577 = vmul.f32 0.5, %v576
  %v578 = vsub.f32 1.5, %v577
  %v579 = vmul.f32 %v574, %v578
  %v580 = vmul.f32 %v311, %v579
  %vm581 = vcmp.eq.f32.partialorder %v311, inf
  %v582 = vsel %vm581, %v311, %v580
  %vm583 = vcmp.eq.f32.partialorder %v311, 0.0
  %v584 = vand.u32 %v311, 2147483648
  %v585 = vsel %vm583, %v584, %v582
  %v586 = vrsqrt.pop %v312
  %v587 = vmul.f32 %v586, %v312
  %v588 = vmul.f32 %v587, %v586
  %v589 = vmul.f32 0.5, %v588
  %v590 = vsub.f32 1.5, %v589
  %v591 = vmul.f32 %v586, %v590
  %v592 = vmul.f32 %v312, %v591
  %vm593 = vcmp.eq.f32.partialorder %v312, inf
  %v594 = vsel %vm593, %v312, %v592
  %vm595 = vcmp.eq.f32.partialorder %v312, 0.0
  %v596 = vand.u32 %v312, 2147483648
  %v597 = vsel %vm595, %v596, %v594
  %v598 = vrsqrt.pop %v313
  %v599 = vmul.f32 %v598, %v313
  %v600 = vmul.f32 %v599, %v598
  %v601 = vmul.f32 0.5, %v600
  %v602 = vsub.f32 1.5, %v601
  %v603 = vmul.f32 %v598, %v602
  %v604 = vmul.f32 %v313, %v603
  %vm605 = vcmp.eq.f32.partialorder %v313, inf
  %v606 = vsel %vm605, %v313, %v604
  %vm607 = vcmp.eq.f32.partialorder %v313, 0.0
  %v608 = vand.u32 %v313, 2147483648
  %v609 = vsel %vm607, %v608, %v606
  %v610 = vrsqrt.pop %v314
  %v611 = vmul.f32 %v610, %v314
  %v612 = vmul.f32 %v611, %v610
  %v613 = vmul.f32 0.5, %v612
  %v614 = vsub.f32 1.5, %v613
  %v615 = vmul.f32 %v610, %v614
  %v616 = vmul.f32 %v314, %v615
  %vm617 = vcmp.eq.f32.partialorder %v314, inf
  %v618 = vsel %vm617, %v314, %v616
  %vm619 = vcmp.eq.f32.partialorder %v314, 0.0
  %v620 = vand.u32 %v314, 2147483648
  %v621 = vsel %vm619, %v620, %v618
  %v622 = vrsqrt.pop %v315
  %v623 = vmul.f32 %v622, %v315
  %v624 = vmul.f32 %v623, %v622
  %v625 = vmul.f32 0.5, %v624
  %v626 = vsub.f32 1.5, %v625
  %v627 = vmul.f32 %v622, %v626
  %v628 = vmul.f32 %v315, %v627
  %vm629 = vcmp.eq.f32.partialorder %v315, inf
  %v630 = vsel %vm629, %v315, %v628
  %vm631 = vcmp.eq.f32.partialorder %v315, 0.0
  %v632 = vand.u32 %v315, 2147483648
  %v633 = vsel %vm631, %v632, %v630
  %v634 = vrsqrt.pop %v316
  %v635 = vmul.f32 %v634, %v316
  %v636 = vmul.f32 %v635, %v634
  %v637 = vmul.f32 0.5, %v636
  %v638 = vsub.f32 1.5, %v637
  %v639 = vmul.f32 %v634, %v638
  %v640 = vmul.f32 %v316, %v639
  %vm641 = vcmp.eq.f32.partialorder %v316, inf
  %v642 = vsel %vm641, %v316, %v640
  %vm643 = vcmp.eq.f32.partialorder %v316, 0.0
  %v644 = vand.u32 %v316, 2147483648
  %v645 = vsel %vm643, %v644, %v642
  %v646 = vrsqrt.pop %v317
  %v647 = vmul.f32 %v646, %v317
  %v648 = vmul.f32 %v647, %v646
  %v649 = vmul.f32 0.5, %v648
  %v650 = vsub.f32 1.5, %v649
  %v651 = vmul.f32 %v646, %v650
  %v652 = vmul.f32 %v317, %v651
  %vm653 = vcmp.eq.f32.partialorder %v317, inf
  %v654 = vsel %vm653, %v317, %v652
  %vm655 = vcmp.eq.f32.partialorder %v317, 0.0
  %v656 = vand.u32 %v317, 2147483648
  %v657 = vsel %vm655, %v656, %v654
  %v658 = vrsqrt.pop %v318
  %v659 = vmul.f32 %v658, %v318
  %v660 = vmul.f32 %v659, %v658
  %v661 = vmul.f32 0.5, %v660
  %v662 = vsub.f32 1.5, %v661
  %v663 = vmul.f32 %v658, %v662
  %v664 = vmul.f32 %v318, %v663
  %vm665 = vcmp.eq.f32.partialorder %v318, inf
  %v666 = vsel %vm665, %v318, %v664
  %vm667 = vcmp.eq.f32.partialorder %v318, 0.0
  %v668 = vand.u32 %v318, 2147483648
  %v669 = vsel %vm667, %v668, %v666
  %v670 = vrsqrt.pop %v319
  %v671 = vmul.f32 %v670, %v319
  %v672 = vmul.f32 %v671, %v670
  %v673 = vmul.f32 0.5, %v672
  %v674 = vsub.f32 1.5, %v673
  %v675 = vmul.f32 %v670, %v674
  %v676 = vmul.f32 %v319, %v675
  %vm677 = vcmp.eq.f32.partialorder %v319, inf
  %v678 = vsel %vm677, %v319, %v676
  %vm679 = vcmp.eq.f32.partialorder %v319, 0.0
  %v680 = vand.u32 %v319, 2147483648
  %v681 = vsel %vm679, %v680, %v678
  %v682 = vrsqrt.pop %v320
  %v683 = vmul.f32 %v682, %v320
  %v684 = vmul.f32 %v683, %v682
  %v685 = vmul.f32 0.5, %v684
  %v686 = vsub.f32 1.5, %v685
  %v687 = vmul.f32 %v682, %v686
  %v688 = vmul.f32 %v320, %v687
  %vm689 = vcmp.eq.f32.partialorder %v320, inf
  %v690 = vsel %vm689, %v320, %v688
  %vm691 = vcmp.eq.f32.partialorder %v320, 0.0
  %v692 = vand.u32 %v320, 2147483648
  %v693 = vsel %vm691, %v692, %v690
  %v694 = vrsqrt.pop %v321
  %v695 = vmul.f32 %v694, %v321
  %v696 = vmul.f32 %v695, %v694
  %v697 = vmul.f32 0.5, %v696
  %v698 = vsub.f32 1.5, %v697
  %v699 = vmul.f32 %v694, %v698
  %v700 = vmul.f32 %v321, %v699
  %vm701 = vcmp.eq.f32.partialorder %v321, inf
  %v702 = vsel %vm701, %v321, %v700
  %vm703 = vcmp.eq.f32.partialorder %v321, 0.0
  %v704 = vand.u32 %v321, 2147483648
  %v705 = vsel %vm703, %v704, %v702
  %vm706 = vcmp.lt.f32.partialorder %v258, 0.0
  %vm707 = vcmp.lt.f32.partialorder %v259, 0.0
  %vm708 = vcmp.lt.f32.partialorder %v260, 0.0
  %vm709 = vcmp.lt.f32.partialorder %v261, 0.0
  %vm710 = vcmp.lt.f32.partialorder %v262, 0.0
  %vm711 = vcmp.lt.f32.partialorder %v263, 0.0
  %vm712 = vcmp.lt.f32.partialorder %v264, 0.0
  %vm713 = vcmp.lt.f32.partialorder %v265, 0.0
  %vm714 = vcmp.lt.f32.partialorder %v266, 0.0
  %vm715 = vcmp.lt.f32.partialorder %v267, 0.0
  %vm716 = vcmp.lt.f32.partialorder %v268, 0.0
  %vm717 = vcmp.lt.f32.partialorder %v269, 0.0
  %vm718 = vcmp.lt.f32.partialorder %v270, 0.0
  %vm719 = vcmp.lt.f32.partialorder %v271, 0.0
  %vm720 = vcmp.lt.f32.partialorder %v272, 0.0
  %vm721 = vcmp.lt.f32.partialorder %v273, 0.0
  %vm722 = vcmp.lt.f32.partialorder %v274, 0.0
  %vm723 = vcmp.lt.f32.partialorder %v275, 0.0
  %vm724 = vcmp.lt.f32.partialorder %v276, 0.0
  %vm725 = vcmp.lt.f32.partialorder %v277, 0.0
  %vm726 = vcmp.lt.f32.partialorder %v278, 0.0
  %vm727 = vcmp.lt.f32.partialorder %v279, 0.0
  %vm728 = vcmp.lt.f32.partialorder %v280, 0.0
  %vm729 = vcmp.lt.f32.partialorder %v281, 0.0
  %vm730 = vcmp.lt.f32.partialorder %v282, 0.0
  %vm731 = vcmp.lt.f32.partialorder %v283, 0.0
  %vm732 = vcmp.lt.f32.partialorder %v284, 0.0
  %vm733 = vcmp.lt.f32.partialorder %v285, 0.0
  %vm734 = vcmp.lt.f32.partialorder %v286, 0.0
  %vm735 = vcmp.lt.f32.partialorder %v287, 0.0
  %vm736 = vcmp.lt.f32.partialorder %v288, 0.0
  %vm737 = vcmp.lt.f32.partialorder %v289, 0.0
  %v738 = vsub.f32 0.0, %v333
  %v739 = vsub.f32 0.0, %v345
  %v740 = vsub.f32 0.0, %v357
  %v741 = vsub.f32 0.0, %v369
  %v742 = vsub.f32 0.0, %v381
  %v743 = vsub.f32 0.0, %v393
  %v744 = vsub.f32 0.0, %v405
  %v745 = vsub.f32 0.0, %v417
  %v746 = vsub.f32 0.0, %v429
  %v747 = vsub.f32 0.0, %v441
  %v748 = vsub.f32 0.0, %v453
  %v749 = vsub.f32 0.0, %v465
  %v750 = vsub.f32 0.0, %v477
  %v751 = vsub.f32 0.0, %v489
  %v752 = vsub.f32 0.0, %v501
  %v753 = vsub.f32 0.0, %v513
  %v754 = vsub.f32 0.0, %v525
  %v755 = vsub.f32 0.0, %v537
  %v756 = vsub.f32 0.0, %v549
  %v757 = vsub.f32 0.0, %v561
  %v758 = vsub.f32 0.0, %v573
  %v759 = vsub.f32 0.0, %v585
  %v760 = vsub.f32 0.0, %v597
  %v761 = vsub.f32 0.0, %v609
  %v762 = vsub.f32 0.0, %v621
  %v763 = vsub.f32 0.0, %v633
  %v764 = vsub.f32 0.0, %v645
  %v765 = vsub.f32 0.0, %v657
  %v766 = vsub.f32 0.0, %v669
  %v767 = vsub.f32 0.0, %v681
  %v768 = vsub.f32 0.0, %v693
  %v769 = vsub.f32 0.0, %v705
  %v770 = vsel %vm706, %v738, %v333
  %v771 = vsel %vm707, %v739, %v345
  %v772 = vsel %vm708, %v740, %v357
  %v773 = vsel %vm709, %v741, %v369
  %v774 = vsel %vm710, %v742, %v381
  %v775 = vsel %vm711, %v743, %v393
  %v776 = vsel %vm712, %v744, %v405
  %v777 = vsel %vm713, %v745, %v417
  %v778 = vsel %vm714, %v746, %v429
  %v779 = vsel %vm715, %v747, %v441
  %v780 = vsel %vm716, %v748, %v453
  %v781 = vsel %vm717, %v749, %v465
  %v782 = vsel %vm718, %v750, %v477
  %v783 = vsel %vm719, %v751, %v489
  %v784 = vsel %vm720, %v752, %v501
  %v785 = vsel %vm721, %v753, %v513
  %v786 = vsel %vm722, %v754, %v525
  %v787 = vsel %vm723, %v755, %v537
  %v788 = vsel %vm724, %v756, %v549
  %v789 = vsel %vm725, %v757, %v561
  %v790 = vsel %vm726, %v758, %v573
  %v791 = vsel %vm727, %v759, %v585
  %v792 = vsel %vm728, %v760, %v597
  %v793 = vsel %vm729, %v761, %v609
  %v794 = vsel %vm730, %v762, %v621
  %v795 = vsel %vm731, %v763, %v633
  %v796 = vsel %vm732, %v764, %v645
  %v797 = vsel %vm733, %v765, %v657
  %v798 = vsel %vm734, %v766, %v669
  %v799 = vsel %vm735, %v767, %v681
  %v800 = vsel %vm736, %v768, %v693
  %v801 = vsel %vm737, %v769, %v705
  %v802 = vsel %vm83, %v333, 0.0
  %v803 = vsel %vm83, %v345, 0.0
  %v804 = vadd.f32 %v802, %v803
  %v805 = vrot.slane %v804, 4
  %v806 = vadd.f32 %v804, %v805
  %v807 = vrot.slane %v806, 2
  %v808 = vadd.f32 %v806, %v807
  %v809 = vrot.slane %v808, 1
  %v810 = vadd.f32 %v808, %v809
  %v811 = vsel %vm83, %v357, 0.0
  %v812 = vsel %vm83, %v369, 0.0
  %v813 = vadd.f32 %v811, %v812
  %v814 = vrot.slane %v813, 4
  %v815 = vadd.f32 %v813, %v814
  %v816 = vrot.slane %v815, 2
  %v817 = vadd.f32 %v815, %v816
  %v818 = vrot.slane %v817, 1
  %v819 = vadd.f32 %v817, %v818
  %v820 = vsel %vm83, %v381, 0.0
  %v821 = vsel %vm83, %v393, 0.0
  %v822 = vadd.f32 %v820, %v821
  %v823 = vrot.slane %v822, 4
  %v824 = vadd.f32 %v822, %v823
  %v825 = vrot.slane %v824, 2
  %v826 = vadd.f32 %v824, %v825
  %v827 = vrot.slane %v826, 1
  %v828 = vadd.f32 %v826, %v827
  %v829 = vsel %vm83, %v405, 0.0
  %v830 = vsel %vm83, %v417, 0.0
  %v831 = vadd.f32 %v829, %v830
  %v832 = vrot.slane %v831, 4
  %v833 = vadd.f32 %v831, %v832
  %v834 = vrot.slane %v833, 2
  %v835 = vadd.f32 %v833, %v834
  %v836 = vrot.slane %v835, 1
  %v837 = vadd.f32 %v835, %v836
  %v838 = vsel %vm83, %v429, 0.0
  %v839 = vsel %vm83, %v441, 0.0
  %v840 = vadd.f32 %v838, %v839
  %v841 = vrot.slane %v840, 4
  %v842 = vadd.f32 %v840, %v841
  %v843 = vrot.slane %v842, 2
  %v844 = vadd.f32 %v842, %v843
  %v845 = vrot.slane %v844, 1
  %v846 = vadd.f32 %v844, %v845
  %v847 = vsel %vm83, %v453, 0.0
  %v848 = vsel %vm83, %v465, 0.0
  %v849 = vadd.f32 %v847, %v848
  %v850 = vrot.slane %v849, 4
  %v851 = vadd.f32 %v849, %v850
  %v852 = vrot.slane %v851, 2
  %v853 = vadd.f32 %v851, %v852
  %v854 = vrot.slane %v853, 1
  %v855 = vadd.f32 %v853, %v854
  %v856 = vsel %vm83, %v477, 0.0
  %v857 = vsel %vm83, %v489, 0.0
  %v858 = vadd.f32 %v856, %v857
  %v859 = vrot.slane %v858, 4
  %v860 = vadd.f32 %v858, %v859
  %v861 = vrot.slane %v860, 2
  %v862 = vadd.f32 %v860, %v861
  %v863 = vrot.slane %v862, 1
  %v864 = vadd.f32 %v862, %v863
  %v865 = vsel %vm83, %v501, 0.0
  %v866 = vsel %vm83, %v513, 0.0
  %v867 = vadd.f32 %v865, %v866
  %v868 = vrot.slane %v867, 4
  %v869 = vadd.f32 %v867, %v868
  %v870 = vrot.slane %v869, 2
  %v871 = vadd.f32 %v869, %v870
  %v872 = vrot.slane %v871, 1
  %v873 = vadd.f32 %v871, %v872
  %v874 = vsel %vm83, %v525, 0.0
  %v875 = vsel %vm83, %v537, 0.0
  %v876 = vadd.f32 %v874, %v875
  %v877 = vrot.slane %v876, 4
  %v878 = vadd.f32 %v876, %v877
  %v879 = vrot.slane %v878, 2
  %v880 = vadd.f32 %v878, %v879
  %v881 = vrot.slane %v880, 1
  %v882 = vadd.f32 %v880, %v881
  %v883 = vsel %vm83, %v549, 0.0
  %v884 = vsel %vm83, %v561, 0.0
  %v885 = vadd.f32 %v883, %v884
  %v886 = vrot.slane %v885, 4
  %v887 = vadd.f32 %v885, %v886
  %v888 = vrot.slane %v887, 2
  %v889 = vadd.f32 %v887, %v888
  %v890 = vrot.slane %v889, 1
  %v891 = vadd.f32 %v889, %v890
  %v892 = vsel %vm83, %v573, 0.0
  %v893 = vsel %vm83, %v585, 0.0
  %v894 = vadd.f32 %v892, %v893
  %v895 = vrot.slane %v894, 4
  %v896 = vadd.f32 %v894, %v895
  %v897 = vrot.slane %v896, 2
  %v898 = vadd.f32 %v896, %v897
  %v899 = vrot.slane %v898, 1
  %v900 = vadd.f32 %v898, %v899
  %v901 = vsel %vm83, %v597, 0.0
  %v902 = vsel %vm83, %v609, 0.0
  %v903 = vadd.f32 %v901, %v902
  %v904 = vrot.slane %v903, 4
  %v905 = vadd.f32 %v903, %v904
  %v906 = vrot.slane %v905, 2
  %v907 = vadd.f32 %v905, %v906
  %v908 = vrot.slane %v907, 1
  %v909 = vadd.f32 %v907, %v908
  %v910 = vsel %vm83, %v621, 0.0
  %v911 = vsel %vm83, %v633, 0.0
  %v912 = vadd.f32 %v910, %v911
  %v913 = vrot.slane %v912, 4
  %v914 = vadd.f32 %v912, %v913
  %v915 = vrot.slane %v914, 2
  %v916 = vadd.f32 %v914, %v915
  %v917 = vrot.slane %v916, 1
  %v918 = vadd.f32 %v916, %v917
  %v919 = vsel %vm83, %v645, 0.0
  %v920 = vsel %vm83, %v657, 0.0
  %v921 = vadd.f32 %v919, %v920
  %v922 = vrot.slane %v921, 4
  %v923 = vadd.f32 %v921, %v922
  %v924 = vrot.slane %v923, 2
  %v925 = vadd.f32 %v923, %v924
  %v926 = vrot.slane %v925, 1
  %v927 = vadd.f32 %v925, %v926
  %v928 = vsel %vm83, %v669, 0.0
  %v929 = vsel %vm83, %v681, 0.0
  %v930 = vadd.f32 %v928, %v929
  %v931 = vrot.slane %v930, 4
  %v932 = vadd.f32 %v930, %v931
  %v933 = vrot.slane %v932, 2
  %v934 = vadd.f32 %v932, %v933
  %v935 = vrot.slane %v934, 1
  %v936 = vadd.f32 %v934, %v935
  %v937 = vsel %vm83, %v693, 0.0
  %v938 = vsel %vm83, %v705, 0.0
  %v939 = vadd.f32 %v937, %v938
  %v940 = vrot.slane %v939, 4
  %v941 = vadd.f32 %v939, %v940
  %v942 = vrot.slane %v941, 2
  %v943 = vadd.f32 %v941, %v942
  %v944 = vrot.slane %v943, 1
  %v945 = vadd.f32 %v943, %v944
  %v946 = vadd.f32 %v810, 1e-07
  %v947 = vadd.f32 %v819, 1e-07
  %v948 = vadd.f32 %v828, 1e-07
  %v949 = vadd.f32 %v837, 1e-07
  %v950 = vadd.f32 %v846, 1e-07
  %v951 = vadd.f32 %v855, 1e-07
  %v952 = vadd.f32 %v864, 1e-07
  %v953 = vadd.f32 %v873, 1e-07
  %v954 = vadd.f32 %v882, 1e-07
  %v955 = vadd.f32 %v891, 1e-07
  %v956 = vadd.f32 %v900, 1e-07
  %v957 = vadd.f32 %v909, 1e-07
  %v958 = vadd.f32 %v918, 1e-07
  %v959 = vadd.f32 %v927, 1e-07
  %v960 = vadd.f32 %v936, 1e-07
  %v961 = vadd.f32 %v945, 1e-07
  %v962 = vrcp.pop %v946
  %v963 = vrcp.pop %v947
  %v964 = vrcp.pop %v948
  %v965 = vrcp.pop %v949
  %v966 = vrcp.pop %v950
  %v967 = vrcp.pop %v951
  %v968 = vrcp.pop %v952
  %v969 = vrcp.pop %v953
  %v970 = vrcp.pop %v954
  %v971 = vrcp.pop %v955
  %v972 = vrcp.pop %v956
  %v973 = vrcp.pop %v957
  %v974 = vrcp.pop %v958
  %v975 = vrcp.pop %v959
  %v976 = vrcp.pop %v960
  %v977 = vrcp.pop %v961
  %v978 = vmul.f32 %v946, %v962
  %v979 = vmul.f32 %v947, %v963
  %v980 = vmul.f32 %v948, %v964
  %v981 = vmul.f32 %v949, %v965
  %v982 = vmul.f32 %v950, %v966
  %v983 = vmul.f32 %v951, %v967
  %v984 = vmul.f32 %v952, %v968
  %v985 = vmul.f32 %v953, %v969
  %v986 = vmul.f32 %v954, %v970
  %v987 = vmul.f32 %v955, %v971
  %v988 = vmul.f32 %v956, %v972
  %v989 = vmul.f32 %v957, %v973
  %v990 = vmul.f32 %v958, %v974
  %v991 = vmul.f32 %v959, %v975
  %v992 = vmul.f32 %v960, %v976
  %v993 = vmul.f32 %v961, %v977
  %v994 = vsub.f32 2.0, %v978
  %v995 = vsub.f32 2.0, %v979
  %v996 = vsub.f32 2.0, %v980
  %v997 = vsub.f32 2.0, %v981
  %v998 = vsub.f32 2.0, %v982
  %v999 = vsub.f32 2.0, %v983
  %v1000 = vsub.f32 2.0, %v984
  %v1001 = vsub.f32 2.0, %v985
  %v1002 = vsub.f32 2.0, %v986
  %v1003 = vsub.f32 2.0, %v987
  %v1004 = vsub.f32 2.0, %v988
  %v1005 = vsub.f32 2.0, %v989
  %v1006 = vsub.f32 2.0, %v990
  %v1007 = vsub.f32 2.0, %v991
  %v1008 = vsub.f32 2.0, %v992
  %v1009 = vsub.f32 2.0, %v993
  %v1010 = vmul.f32 %v962, %v994
  %v1011 = vmul.f32 %v963, %v995
  %v1012 = vmul.f32 %v964, %v996
  %v1013 = vmul.f32 %v965, %v997
  %v1014 = vmul.f32 %v966, %v998
  %v1015 = vmul.f32 %v967, %v999
  %v1016 = vmul.f32 %v968, %v1000
  %v1017 = vmul.f32 %v969, %v1001
  %v1018 = vmul.f32 %v970, %v1002
  %v1019 = vmul.f32 %v971, %v1003
  %v1020 = vmul.f32 %v972, %v1004
  %v1021 = vmul.f32 %v973, %v1005
  %v1022 = vmul.f32 %v974, %v1006
  %v1023 = vmul.f32 %v975, %v1007
  %v1024 = vmul.f32 %v976, %v1008
  %v1025 = vmul.f32 %v977, %v1009
  %v1026 = vmul.f32 %v770, %v1010
  %v1027 = vmul.f32 %v771, %v1010
  %v1028 = vmul.f32 %v772, %v1011
  %v1029 = vmul.f32 %v773, %v1011
  %v1030 = vmul.f32 %v774, %v1012
  %v1031 = vmul.f32 %v775, %v1012
  %v1032 = vmul.f32 %v776, %v1013
  %v1033 = vmul.f32 %v777, %v1013
  %v1034 = vmul.f32 %v778, %v1014
  %v1035 = vmul.f32 %v779, %v1014
  %v1036 = vmul.f32 %v780, %v1015
  %v1037 = vmul.f32 %v781, %v1015
  %v1038 = vmul.f32 %v782, %v1016
  %v1039 = vmul.f32 %v783, %v1016
  %v1040 = vmul.f32 %v784, %v1017
  %v1041 = vmul.f32 %v785, %v1017
  %v1042 = vmul.f32 %v786, %v1018
  %v1043 = vmul.f32 %v787, %v1018
  %v1044 = vmul.f32 %v788, %v1019
  %v1045 = vmul.f32 %v789, %v1019
  %v1046 = vmul.f32 %v790, %v1020
  %v1047 = vmul.f32 %v791, %v1020
  %v1048 = vmul.f32 %v792, %v1021
  %v1049 = vmul.f32 %v793, %v1021
  %v1050 = vmul.f32 %v794, %v1022
  %v1051 = vmul.f32 %v795, %v1022
  %v1052 = vmul.f32 %v796, %v1023
  %v1053 = vmul.f32 %v797, %v1023
  %v1054 = vmul.f32 %v798, %v1024
  %v1055 = vmul.f32 %v799, %v1024
  %v1056 = vmul.f32 %v800, %v1025
  %v1057 = vmul.f32 %v801, %v1025
  %v1058 = vmul.f32 %v114, %v1026
  %v1059 = vmul.f32 %v114, %v1027
  %v1060 = vmul.f32 %v115, %v1028
  %v1061 = vmul.f32 %v115, %v1029
  %v1062 = vmul.f32 %v116, %v1030
  %v1063 = vmul.f32 %v116, %v1031
  %v1064 = vmul.f32 %v117, %v1032
  %v1065 = vmul.f32 %v117, %v1033
  %v1066 = vmul.f32 %v118, %v1034
  %v1067 = vmul.f32 %v118, %v1035
  %v1068 = vmul.f32 %v119, %v1036
  %v1069 = vmul.f32 %v119, %v1037
  %v1070 = vmul.f32 %v120, %v1038
  %v1071 = vmul.f32 %v120, %v1039
  %v1072 = vmul.f32 %v121, %v1040
  %v1073 = vmul.f32 %v121, %v1041
  %v1074 = vmul.f32 %v122, %v1042
  %v1075 = vmul.f32 %v122, %v1043
  %v1076 = vmul.f32 %v123, %v1044
  %v1077 = vmul.f32 %v123, %v1045
  %v1078 = vmul.f32 %v124, %v1046
  %v1079 = vmul.f32 %v124, %v1047
  %v1080 = vmul.f32 %v125, %v1048
  %v1081 = vmul.f32 %v125, %v1049
  %v1082 = vmul.f32 %v126, %v1050
  %v1083 = vmul.f32 %v126, %v1051
  %v1084 = vmul.f32 %v127, %v1052
  %v1085 = vmul.f32 %v127, %v1053
  %v1086 = vmul.f32 %v128, %v1054
  %v1087 = vmul.f32 %v128, %v1055
  %v1088 = vmul.f32 %v129, %v1056
  %v1089 = vmul.f32 %v129, %v1057
  %v1090 = vsel %vm83, %v1058, 0.0
  %v1091 = vsel %vm83, %v1060, 0.0
  %v1092 = vadd.f32 %v1090, %v1091
  %v1093 = vsel %vm83, %v1062, 0.0
  %v1094 = vadd.f32 %v1092, %v1093
  %v1095 = vsel %vm83, %v1064, 0.0
  %v1096 = vadd.f32 %v1094, %v1095
  %v1097 = vsel %vm83, %v1066, 0.0
  %v1098 = vadd.f32 %v1096, %v1097
  %v1099 = vsel %vm83, %v1068, 0.0
  %v1100 = vadd.f32 %v1098, %v1099
  %v1101 = vsel %vm83, %v1070, 0.0
  %v1102 = vadd.f32 %v1100, %v1101
  %v1103 = vsel %vm83, %v1072, 0.0
  %v1104 = vadd.f32 %v1102, %v1103
  %v1105 = vsel %vm83, %v1074, 0.0
  %v1106 = vadd.f32 %v1104, %v1105
  %v1107 = vsel %vm83, %v1076, 0.0
  %v1108 = vadd.f32 %v1106, %v1107
  %v1109 = vsel %vm83, %v1078, 0.0
  %v1110 = vadd.f32 %v1108, %v1109
  %v1111 = vsel %vm83, %v1080, 0.0
  %v1112 = vadd.f32 %v1110, %v1111
  %v1113 = vsel %vm83, %v1082, 0.0
  %v1114 = vadd.f32 %v1112, %v1113
  %v1115 = vsel %vm83, %v1084, 0.0
  %v1116 = vadd.f32 %v1114, %v1115
  %v1117 = vsel %vm83, %v1086, 0.0
  %v1118 = vadd.f32 %v1116, %v1117
  %v1119 = vsel %vm83, %v1088, 0.0
  %v1120 = vadd.f32 %v1118, %v1119
  %v1121 = vsel %vm83, %v1059, 0.0
  %v1122 = vsel %vm83, %v1061, 0.0
  %v1123 = vadd.f32 %v1121, %v1122
  %v1124 = vsel %vm83, %v1063, 0.0
  %v1125 = vadd.f32 %v1123, %v1124
  %v1126 = vsel %vm83, %v1065, 0.0
  %v1127 = vadd.f32 %v1125, %v1126
  %v1128 = vsel %vm83, %v1067, 0.0
  %v1129 = vadd.f32 %v1127, %v1128
  %v1130 = vsel %vm83, %v1069, 0.0
  %v1131 = vadd.f32 %v1129, %v1130
  %v1132 = vsel %vm83, %v1071, 0.0
  %v1133 = vadd.f32 %v1131, %v1132
  %v1134 = vsel %vm83, %v1073, 0.0
  %v1135 = vadd.f32 %v1133, %v1134
  %v1136 = vsel %vm83, %v1075, 0.0
  %v1137 = vadd.f32 %v1135, %v1136
  %v1138 = vsel %vm83, %v1077, 0.0
  %v1139 = vadd.f32 %v1137, %v1138
  %v1140 = vsel %vm83, %v1079, 0.0
  %v1141 = vadd.f32 %v1139, %v1140
  %v1142 = vsel %vm83, %v1081, 0.0
  %v1143 = vadd.f32 %v1141, %v1142
  %v1144 = vsel %vm83, %v1083, 0.0
  %v1145 = vadd.f32 %v1143, %v1144
  %v1146 = vsel %vm83, %v1085, 0.0
  %v1147 = vadd.f32 %v1145, %v1146
  %v1148 = vsel %vm83, %v1087, 0.0
  %v1149 = vadd.f32 %v1147, %v1148
  %v1150 = vsel %vm83, %v1089, 0.0
  %v1151 = vadd.f32 %v1149, %v1150
  %1153 = vset.pattern.permute.xlu0 0
  %1154 = vperm.xlu0 %1153, %v59
  %v1155 = vpop.permute.xlu0 %1154
  %1158 = vset.pattern.permute.xlu0 0
  %1159 = vperm.xlu0 %1158, %v60
  %v1160 = vpop.permute.xlu0 %1159
  %1163 = vset.pattern.permute.xlu0 0
  %1164 = vperm.xlu0 %1163, %v61
  %v1165 = vpop.permute.xlu0 %1164
  %1168 = vset.pattern.permute.xlu0 0
  %1169 = vperm.xlu0 %1168, %v62
  %v1170 = vpop.permute.xlu0 %1169
  %1173 = vset.pattern.permute.xlu0 0
  %1174 = vperm.xlu0 %1173, %v63
  %v1175 = vpop.permute.xlu0 %1174
  %1178 = vset.pattern.permute.xlu0 0
  %1179 = vperm.xlu0 %1178, %v64
  %v1180 = vpop.permute.xlu0 %1179
  %1183 = vset.pattern.permute.xlu0 0
  %1184 = vperm.xlu0 %1183, %v65
  %v1185 = vpop.permute.xlu0 %1184
  %1188 = vset.pattern.permute.xlu0 0
  %1189 = vperm.xlu0 %1188, %v66
  %v1190 = vpop.permute.xlu0 %1189
  %vm1192 = vcmask 130048
  %v1194 = vsel %vm1192, %v51, 0
  %v1197 = vsel %vm1192, %v52, 0
  %v1200 = vsel %vm1192, %v53, 0
  %v1203 = vsel %vm1192, %v54, 0
  %v1206 = vsel %vm1192, %v55, 0
  %v1209 = vsel %vm1192, %v56, 0
  %v1212 = vsel %vm1192, %v57, 0
  %v1215 = vsel %vm1192, %v58, 0
  %1217 = vmatpush.msra.mxu0 0.0
  %1218 = vmatpush.msra.mxu0 0.0
  %1219 = vmatpush.msra.mxu0 0.0
  %1220 = vmatpush.msra.mxu0 0.0
  %1221 = vmatpush.msra.mxu0 0.0
  %1222 = vmatpush.msra.mxu0 0.0
  %1223 = vmatpush.msra.mxu0 0.0
  %1224 = vmatpush.msra.mxu0 0.0
  %1225 = vmatpush.msra.mxu0 0.0
  %1226 = vmatpush.msra.mxu0 0.0
  %1227 = vmatpush.msra.mxu0 0.0
  %1228 = vmatpush.msra.mxu0 0.0
  %1229 = vmatpush.msra.mxu0 0.0
  %1230 = vmatpush.msra.mxu0 0.0
  %1231 = vmatpush.msra.mxu0 %v1151
  %1232 = vmatpush.msra.mxu0 %v1120
  %1233 = vmatmul.f32.gmra.mxu0 %v1194
  %v1234 = vpop.f32.mrf.mxu0
  %v1235 = vadd.f32 %v1155, %v1234
  %1236 = vmatmul.f32.gmra.mxu0 %v1197
  %v1237 = vpop.f32.mrf.mxu0
  %v1238 = vadd.f32 %v1160, %v1237
  %1239 = vmatmul.f32.gmra.mxu0 %v1200
  %v1240 = vpop.f32.mrf.mxu0
  %v1241 = vadd.f32 %v1165, %v1240
  %1242 = vmatmul.f32.gmra.mxu0 %v1203
  %v1243 = vpop.f32.mrf.mxu0
  %v1244 = vadd.f32 %v1170, %v1243
  %1245 = vmatmul.f32.gmra.mxu0 %v1206
  %v1246 = vpop.f32.mrf.mxu0
  %v1247 = vadd.f32 %v1175, %v1246
  %1248 = vmatmul.f32.gmra.mxu0 %v1209
  %v1249 = vpop.f32.mrf.mxu0
  %v1250 = vadd.f32 %v1180, %v1249
  %1251 = vmatmul.f32.gmra.mxu0 %v1212
  %v1252 = vpop.f32.mrf.mxu0
  %v1253 = vadd.f32 %v1185, %v1252
  %1254 = vmatmul.f32.gmra.mxu0 %v1215
  %v1255 = vpop.f32.mrf.mxu0
  %v1256 = vadd.f32 %v1190, %v1255
  %1257 = vdwg.mxu0
  %1259 = vset.pattern.permute.xlu0 0
  %1260 = vperm.xlu0 %1259, %v67
  %v1261 = vpop.permute.xlu0 %1260
  %1264 = vset.pattern.permute.xlu0 0
  %1265 = vperm.xlu0 %1264, %v68
  %v1266 = vpop.permute.xlu0 %1265
  %1269 = vset.pattern.permute.xlu0 0
  %1270 = vperm.xlu0 %1269, %v69
  %v1271 = vpop.permute.xlu0 %1270
  %1274 = vset.pattern.permute.xlu0 0
  %1275 = vperm.xlu0 %1274, %v70
  %v1276 = vpop.permute.xlu0 %1275
  %1279 = vset.pattern.permute.xlu0 0
  %1280 = vperm.xlu0 %1279, %v71
  %v1281 = vpop.permute.xlu0 %1280
  %1284 = vset.pattern.permute.xlu0 0
  %1285 = vperm.xlu0 %1284, %v72
  %v1286 = vpop.permute.xlu0 %1285
  %1289 = vset.pattern.permute.xlu0 0
  %1290 = vperm.xlu0 %1289, %v73
  %v1291 = vpop.permute.xlu0 %1290
  %1294 = vset.pattern.permute.xlu0 0
  %1295 = vperm.xlu0 %1294, %v74
  %v1296 = vpop.permute.xlu0 %1295
  %v1298 = vmul.f32 %v1235, %v1261
  %v1299 = vmul.f32 %v1238, %v1266
  %v1300 = vmul.f32 %v1241, %v1271
  %v1301 = vmul.f32 %v1244, %v1276
  %v1302 = vmul.f32 %v1247, %v1281
  %v1303 = vmul.f32 %v1250, %v1286
  %v1304 = vmul.f32 %v1253, %v1291
  %v1305 = vmul.f32 %v1256, %v1296
  %1307 = vset.pattern.permute.xlu0 0
  %1308 = vperm.xlu0 %1307, %v75
  %v1309 = vpop.permute.xlu0 %1308
  %1312 = vset.pattern.permute.xlu0 0
  %1313 = vperm.xlu0 %1312, %v76
  %v1314 = vpop.permute.xlu0 %1313
  %1317 = vset.pattern.permute.xlu0 0
  %1318 = vperm.xlu0 %1317, %v77
  %v1319 = vpop.permute.xlu0 %1318
  %1322 = vset.pattern.permute.xlu0 0
  %1323 = vperm.xlu0 %1322, %v78
  %v1324 = vpop.permute.xlu0 %1323
  %1327 = vset.pattern.permute.xlu0 0
  %1328 = vperm.xlu0 %1327, %v79
  %v1329 = vpop.permute.xlu0 %1328
  %1332 = vset.pattern.permute.xlu0 0
  %1333 = vperm.xlu0 %1332, %v80
  %v1334 = vpop.permute.xlu0 %1333
  %1337 = vset.pattern.permute.xlu0 0
  %1338 = vperm.xlu0 %1337, %v81
  %v1339 = vpop.permute.xlu0 %1338
  %1342 = vset.pattern.permute.xlu0 0
  %1343 = vperm.xlu0 %1342, %v82
  %v1344 = vpop.permute.xlu0 %1343
  %v1346 = vadd.f32 %v1298, %v1309
  %v1347 = vadd.f32 %v1299, %v1314
  %v1348 = vadd.f32 %v1300, %v1319
  %v1349 = vadd.f32 %v1301, %v1324
  %v1350 = vadd.f32 %v1302, %v1329
  %v1351 = vadd.f32 %v1303, %v1334
  %v1352 = vadd.f32 %v1304, %v1339
  %v1353 = vadd.f32 %v1305, %v1344
  %v1354 = vand.u32 2147483647, %v1346
  %v1355 = vand.u32 2147483647, %v1347
  %v1356 = vand.u32 2147483647, %v1348
  %v1357 = vand.u32 2147483647, %v1349
  %v1358 = vand.u32 2147483647, %v1350
  %v1359 = vand.u32 2147483647, %v1351
  %v1360 = vand.u32 2147483647, %v1352
  %v1361 = vand.u32 2147483647, %v1353
  %v1362 = vadd.f32 %v1354, 1.0
  %v1363 = vadd.f32 %v1355, 1.0
  %v1364 = vadd.f32 %v1356, 1.0
  %v1365 = vadd.f32 %v1357, 1.0
  %v1366 = vadd.f32 %v1358, 1.0
  %v1367 = vadd.f32 %v1359, 1.0
  %v1368 = vadd.f32 %v1360, 1.0
  %v1369 = vadd.f32 %v1361, 1.0
  %v1370 = vrcp.pop %v1362
  %v1371 = vrcp.pop %v1363
  %v1372 = vrcp.pop %v1364
  %v1373 = vrcp.pop %v1365
  %v1374 = vrcp.pop %v1366
  %v1375 = vrcp.pop %v1367
  %v1376 = vrcp.pop %v1368
  %v1377 = vrcp.pop %v1369
  %v1378 = vmul.f32 %v1362, %v1370
  %v1379 = vmul.f32 %v1363, %v1371
  %v1380 = vmul.f32 %v1364, %v1372
  %v1381 = vmul.f32 %v1365, %v1373
  %v1382 = vmul.f32 %v1366, %v1374
  %v1383 = vmul.f32 %v1367, %v1375
  %v1384 = vmul.f32 %v1368, %v1376
  %v1385 = vmul.f32 %v1369, %v1377
  %v1386 = vsub.f32 2.0, %v1378
  %v1387 = vsub.f32 2.0, %v1379
  %v1388 = vsub.f32 2.0, %v1380
  %v1389 = vsub.f32 2.0, %v1381
  %v1390 = vsub.f32 2.0, %v1382
  %v1391 = vsub.f32 2.0, %v1383
  %v1392 = vsub.f32 2.0, %v1384
  %v1393 = vsub.f32 2.0, %v1385
  %v1394 = vmul.f32 %v1370, %v1386
  %v1395 = vmul.f32 %v1371, %v1387
  %v1396 = vmul.f32 %v1372, %v1388
  %v1397 = vmul.f32 %v1373, %v1389
  %v1398 = vmul.f32 %v1374, %v1390
  %v1399 = vmul.f32 %v1375, %v1391
  %v1400 = vmul.f32 %v1376, %v1392
  %v1401 = vmul.f32 %v1377, %v1393
  %v1402 = vmul.f32 %v1346, %v1394
  %v1403 = vmul.f32 %v1347, %v1395
  %v1404 = vmul.f32 %v1348, %v1396
  %v1405 = vmul.f32 %v1349, %v1397
  %v1406 = vmul.f32 %v1350, %v1398
  %v1407 = vmul.f32 %v1351, %v1399
  %v1408 = vmul.f32 %v1352, %v1400
  %v1409 = vmul.f32 %v1353, %v1401
  %v1412 = vrot.slane %v43, 1
  %v1413 = vrot.slane %v43, 2
  %v1414 = vrot.slane %v43, 3
  %v1415 = vrot.slane %v43, 4
  %v1416 = vrot.slane %v43, 5
  %v1417 = vrot.slane %v43, 6
  %v1418 = vrot.slane %v43, 7
  %v1419 = vrot.slane %v44, 1
  %v1420 = vrot.slane %v44, 2
  %v1421 = vrot.slane %v44, 3
  %v1422 = vrot.slane %v44, 4
  %v1423 = vrot.slane %v44, 5
  %v1424 = vrot.slane %v44, 6
  %v1425 = vrot.slane %v44, 7
  %v1426 = vperm.slane %v43, 0
  %v1427 = vperm.slane %v1412, 0
  %v1428 = vperm.slane %v1413, 0
  %v1429 = vperm.slane %v1414, 0
  %v1430 = vperm.slane %v1415, 0
  %v1431 = vperm.slane %v1416, 0
  %v1432 = vperm.slane %v1417, 0
  %v1433 = vperm.slane %v1418, 0
  %v1434 = vperm.slane %v44, 0
  %v1435 = vperm.slane %v1419, 0
  %v1436 = vperm.slane %v1420, 0
  %v1437 = vperm.slane %v1421, 0
  %v1438 = vperm.slane %v1422, 0
  %v1439 = vperm.slane %v1423, 0
  %v1440 = vperm.slane %v1424, 0
  %v1441 = vperm.slane %v1425, 0
  %v1458 = vmul.f32 %v1426, %v1026
  %v1459 = vmul.f32 %v1426, %v1027
  %v1460 = vmul.f32 %v1427, %v1028
  %v1461 = vmul.f32 %v1427, %v1029
  %v1462 = vmul.f32 %v1428, %v1030
  %v1463 = vmul.f32 %v1428, %v1031
  %v1464 = vmul.f32 %v1429, %v1032
  %v1465 = vmul.f32 %v1429, %v1033
  %v1466 = vmul.f32 %v1430, %v1034
  %v1467 = vmul.f32 %v1430, %v1035
  %v1468 = vmul.f32 %v1431, %v1036
  %v1469 = vmul.f32 %v1431, %v1037
  %v1470 = vmul.f32 %v1432, %v1038
  %v1471 = vmul.f32 %v1432, %v1039
  %v1472 = vmul.f32 %v1433, %v1040
  %v1473 = vmul.f32 %v1433, %v1041
  %v1474 = vmul.f32 %v1434, %v1042
  %v1475 = vmul.f32 %v1434, %v1043
  %v1476 = vmul.f32 %v1435, %v1044
  %v1477 = vmul.f32 %v1435, %v1045
  %v1478 = vmul.f32 %v1436, %v1046
  %v1479 = vmul.f32 %v1436, %v1047
  %v1480 = vmul.f32 %v1437, %v1048
  %v1481 = vmul.f32 %v1437, %v1049
  %v1482 = vmul.f32 %v1438, %v1050
  %v1483 = vmul.f32 %v1438, %v1051
  %v1484 = vmul.f32 %v1439, %v1052
  %v1485 = vmul.f32 %v1439, %v1053
  %v1486 = vmul.f32 %v1440, %v1054
  %v1487 = vmul.f32 %v1440, %v1055
  %v1488 = vmul.f32 %v1441, %v1056
  %v1489 = vmul.f32 %v1441, %v1057
  %v1490 = vsel %vm83, %v1458, 0.0
  %v1491 = vsel %vm83, %v1460, 0.0
  %v1492 = vadd.f32 %v1490, %v1491
  %v1493 = vsel %vm83, %v1462, 0.0
  %v1494 = vadd.f32 %v1492, %v1493
  %v1495 = vsel %vm83, %v1464, 0.0
  %v1496 = vadd.f32 %v1494, %v1495
  %v1497 = vsel %vm83, %v1466, 0.0
  %v1498 = vadd.f32 %v1496, %v1497
  %v1499 = vsel %vm83, %v1468, 0.0
  %v1500 = vadd.f32 %v1498, %v1499
  %v1501 = vsel %vm83, %v1470, 0.0
  %v1502 = vadd.f32 %v1500, %v1501
  %v1503 = vsel %vm83, %v1472, 0.0
  %v1504 = vadd.f32 %v1502, %v1503
  %v1505 = vsel %vm83, %v1474, 0.0
  %v1506 = vadd.f32 %v1504, %v1505
  %v1507 = vsel %vm83, %v1476, 0.0
  %v1508 = vadd.f32 %v1506, %v1507
  %v1509 = vsel %vm83, %v1478, 0.0
  %v1510 = vadd.f32 %v1508, %v1509
  %v1511 = vsel %vm83, %v1480, 0.0
  %v1512 = vadd.f32 %v1510, %v1511
  %v1513 = vsel %vm83, %v1482, 0.0
  %v1514 = vadd.f32 %v1512, %v1513
  %v1515 = vsel %vm83, %v1484, 0.0
  %v1516 = vadd.f32 %v1514, %v1515
  %v1517 = vsel %vm83, %v1486, 0.0
  %v1518 = vadd.f32 %v1516, %v1517
  %v1519 = vsel %vm83, %v1488, 0.0
  %v1520 = vadd.f32 %v1518, %v1519
  %v1521 = vsel %vm83, %v1459, 0.0
  %v1522 = vsel %vm83, %v1461, 0.0
  %v1523 = vadd.f32 %v1521, %v1522
  %v1524 = vsel %vm83, %v1463, 0.0
  %v1525 = vadd.f32 %v1523, %v1524
  %v1526 = vsel %vm83, %v1465, 0.0
  %v1527 = vadd.f32 %v1525, %v1526
  %v1528 = vsel %vm83, %v1467, 0.0
  %v1529 = vadd.f32 %v1527, %v1528
  %v1530 = vsel %vm83, %v1469, 0.0
  %v1531 = vadd.f32 %v1529, %v1530
  %v1532 = vsel %vm83, %v1471, 0.0
  %v1533 = vadd.f32 %v1531, %v1532
  %v1534 = vsel %vm83, %v1473, 0.0
  %v1535 = vadd.f32 %v1533, %v1534
  %v1536 = vsel %vm83, %v1475, 0.0
  %v1537 = vadd.f32 %v1535, %v1536
  %v1538 = vsel %vm83, %v1477, 0.0
  %v1539 = vadd.f32 %v1537, %v1538
  %v1540 = vsel %vm83, %v1479, 0.0
  %v1541 = vadd.f32 %v1539, %v1540
  %v1542 = vsel %vm83, %v1481, 0.0
  %v1543 = vadd.f32 %v1541, %v1542
  %v1544 = vsel %vm83, %v1483, 0.0
  %v1545 = vadd.f32 %v1543, %v1544
  %v1546 = vsel %vm83, %v1485, 0.0
  %v1547 = vadd.f32 %v1545, %v1546
  %v1548 = vsel %vm83, %v1487, 0.0
  %v1549 = vadd.f32 %v1547, %v1548
  %v1550 = vsel %vm83, %v1489, 0.0
  %v1551 = vadd.f32 %v1549, %v1550
  %1552 = vmatpush.msra.mxu0 0.0
  %1553 = vmatpush.msra.mxu0 0.0
  %1554 = vmatpush.msra.mxu0 0.0
  %1555 = vmatpush.msra.mxu0 0.0
  %1556 = vmatpush.msra.mxu0 0.0
  %1557 = vmatpush.msra.mxu0 0.0
  %1558 = vmatpush.msra.mxu0 0.0
  %1559 = vmatpush.msra.mxu0 0.0
  %1560 = vmatpush.msra.mxu0 0.0
  %1561 = vmatpush.msra.mxu0 0.0
  %1562 = vmatpush.msra.mxu0 0.0
  %1563 = vmatpush.msra.mxu0 0.0
  %1564 = vmatpush.msra.mxu0 0.0
  %1565 = vmatpush.msra.mxu0 0.0
  %1566 = vmatpush.msra.mxu0 %v1551
  %1567 = vmatpush.msra.mxu0 %v1520
  %1568 = vmatmul.f32.gmra.mxu0 %v1194
  %v1569 = vpop.f32.mrf.mxu0
  %v1570 = vadd.f32 %v1155, %v1569
  %1571 = vmatmul.f32.gmra.mxu0 %v1197
  %v1572 = vpop.f32.mrf.mxu0
  %v1573 = vadd.f32 %v1160, %v1572
  %1574 = vmatmul.f32.gmra.mxu0 %v1200
  %v1575 = vpop.f32.mrf.mxu0
  %v1576 = vadd.f32 %v1165, %v1575
  %1577 = vmatmul.f32.gmra.mxu0 %v1203
  %v1578 = vpop.f32.mrf.mxu0
  %v1579 = vadd.f32 %v1170, %v1578
  %1580 = vmatmul.f32.gmra.mxu0 %v1206
  %v1581 = vpop.f32.mrf.mxu0
  %v1582 = vadd.f32 %v1175, %v1581
  %1583 = vmatmul.f32.gmra.mxu0 %v1209
  %v1584 = vpop.f32.mrf.mxu0
  %v1585 = vadd.f32 %v1180, %v1584
  %1586 = vmatmul.f32.gmra.mxu0 %v1212
  %v1587 = vpop.f32.mrf.mxu0
  %v1588 = vadd.f32 %v1185, %v1587
  %1589 = vmatmul.f32.gmra.mxu0 %v1215
  %v1590 = vpop.f32.mrf.mxu0
  %v1591 = vadd.f32 %v1190, %v1590
  %1592 = vdwg.mxu0
  %v1593 = vmul.f32 %v1570, %v1261
  %v1594 = vmul.f32 %v1573, %v1266
  %v1595 = vmul.f32 %v1576, %v1271
  %v1596 = vmul.f32 %v1579, %v1276
  %v1597 = vmul.f32 %v1582, %v1281
  %v1598 = vmul.f32 %v1585, %v1286
  %v1599 = vmul.f32 %v1588, %v1291
  %v1600 = vmul.f32 %v1591, %v1296
  %v1601 = vadd.f32 %v1593, %v1309
  %v1602 = vadd.f32 %v1594, %v1314
  %v1603 = vadd.f32 %v1595, %v1319
  %v1604 = vadd.f32 %v1596, %v1324
  %v1605 = vadd.f32 %v1597, %v1329
  %v1606 = vadd.f32 %v1598, %v1334
  %v1607 = vadd.f32 %v1599, %v1339
  %v1608 = vadd.f32 %v1600, %v1344
  %v1609 = vand.u32 2147483647, %v1601
  %v1610 = vand.u32 2147483647, %v1602
  %v1611 = vand.u32 2147483647, %v1603
  %v1612 = vand.u32 2147483647, %v1604
  %v1613 = vand.u32 2147483647, %v1605
  %v1614 = vand.u32 2147483647, %v1606
  %v1615 = vand.u32 2147483647, %v1607
  %v1616 = vand.u32 2147483647, %v1608
  %v1617 = vadd.f32 %v1609, 1.0
  %v1618 = vadd.f32 %v1610, 1.0
  %v1619 = vadd.f32 %v1611, 1.0
  %v1620 = vadd.f32 %v1612, 1.0
  %v1621 = vadd.f32 %v1613, 1.0
  %v1622 = vadd.f32 %v1614, 1.0
  %v1623 = vadd.f32 %v1615, 1.0
  %v1624 = vadd.f32 %v1616, 1.0
  %v1625 = vrcp.pop %v1617
  %v1626 = vrcp.pop %v1618
  %v1627 = vrcp.pop %v1619
  %v1628 = vrcp.pop %v1620
  %v1629 = vrcp.pop %v1621
  %v1630 = vrcp.pop %v1622
  %v1631 = vrcp.pop %v1623
  %v1632 = vrcp.pop %v1624
  %v1633 = vmul.f32 %v1617, %v1625
  %v1634 = vmul.f32 %v1618, %v1626
  %v1635 = vmul.f32 %v1619, %v1627
  %v1636 = vmul.f32 %v1620, %v1628
  %v1637 = vmul.f32 %v1621, %v1629
  %v1638 = vmul.f32 %v1622, %v1630
  %v1639 = vmul.f32 %v1623, %v1631
  %v1640 = vmul.f32 %v1624, %v1632
  %v1641 = vsub.f32 2.0, %v1633
  %v1642 = vsub.f32 2.0, %v1634
  %v1643 = vsub.f32 2.0, %v1635
  %v1644 = vsub.f32 2.0, %v1636
  %v1645 = vsub.f32 2.0, %v1637
  %v1646 = vsub.f32 2.0, %v1638
  %v1647 = vsub.f32 2.0, %v1639
  %v1648 = vsub.f32 2.0, %v1640
  %v1649 = vmul.f32 %v1625, %v1641
  %v1650 = vmul.f32 %v1626, %v1642
  %v1651 = vmul.f32 %v1627, %v1643
  %v1652 = vmul.f32 %v1628, %v1644
  %v1653 = vmul.f32 %v1629, %v1645
  %v1654 = vmul.f32 %v1630, %v1646
  %v1655 = vmul.f32 %v1631, %v1647
  %v1656 = vmul.f32 %v1632, %v1648
  %v1657 = vmul.f32 %v1601, %v1649
  %v1658 = vmul.f32 %v1602, %v1650
  %v1659 = vmul.f32 %v1603, %v1651
  %v1660 = vmul.f32 %v1604, %v1652
  %v1661 = vmul.f32 %v1605, %v1653
  %v1662 = vmul.f32 %v1606, %v1654
  %v1663 = vmul.f32 %v1607, %v1655
  %v1664 = vmul.f32 %v1608, %v1656
  %v1667 = vrot.slane %v45, 1
  %v1668 = vrot.slane %v45, 2
  %v1669 = vrot.slane %v45, 3
  %v1670 = vrot.slane %v45, 4
  %v1671 = vrot.slane %v45, 5
  %v1672 = vrot.slane %v45, 6
  %v1673 = vrot.slane %v45, 7
  %v1674 = vrot.slane %v46, 1
  %v1675 = vrot.slane %v46, 2
  %v1676 = vrot.slane %v46, 3
  %v1677 = vrot.slane %v46, 4
  %v1678 = vrot.slane %v46, 5
  %v1679 = vrot.slane %v46, 6
  %v1680 = vrot.slane %v46, 7
  %v1681 = vperm.slane %v45, 0
  %v1682 = vperm.slane %v1667, 0
  %v1683 = vperm.slane %v1668, 0
  %v1684 = vperm.slane %v1669, 0
  %v1685 = vperm.slane %v1670, 0
  %v1686 = vperm.slane %v1671, 0
  %v1687 = vperm.slane %v1672, 0
  %v1688 = vperm.slane %v1673, 0
  %v1689 = vperm.slane %v46, 0
  %v1690 = vperm.slane %v1674, 0
  %v1691 = vperm.slane %v1675, 0
  %v1692 = vperm.slane %v1676, 0
  %v1693 = vperm.slane %v1677, 0
  %v1694 = vperm.slane %v1678, 0
  %v1695 = vperm.slane %v1679, 0
  %v1696 = vperm.slane %v1680, 0
  %v1713 = vmul.f32 %v1681, %v1026
  %v1714 = vmul.f32 %v1681, %v1027
  %v1715 = vmul.f32 %v1682, %v1028
  %v1716 = vmul.f32 %v1682, %v1029
  %v1717 = vmul.f32 %v1683, %v1030
  %v1718 = vmul.f32 %v1683, %v1031
  %v1719 = vmul.f32 %v1684, %v1032
  %v1720 = vmul.f32 %v1684, %v1033
  %v1721 = vmul.f32 %v1685, %v1034
  %v1722 = vmul.f32 %v1685, %v1035
  %v1723 = vmul.f32 %v1686, %v1036
  %v1724 = vmul.f32 %v1686, %v1037
  %v1725 = vmul.f32 %v1687, %v1038
  %v1726 = vmul.f32 %v1687, %v1039
  %v1727 = vmul.f32 %v1688, %v1040
  %v1728 = vmul.f32 %v1688, %v1041
  %v1729 = vmul.f32 %v1689, %v1042
  %v1730 = vmul.f32 %v1689, %v1043
  %v1731 = vmul.f32 %v1690, %v1044
  %v1732 = vmul.f32 %v1690, %v1045
  %v1733 = vmul.f32 %v1691, %v1046
  %v1734 = vmul.f32 %v1691, %v1047
  %v1735 = vmul.f32 %v1692, %v1048
  %v1736 = vmul.f32 %v1692, %v1049
  %v1737 = vmul.f32 %v1693, %v1050
  %v1738 = vmul.f32 %v1693, %v1051
  %v1739 = vmul.f32 %v1694, %v1052
  %v1740 = vmul.f32 %v1694, %v1053
  %v1741 = vmul.f32 %v1695, %v1054
  %v1742 = vmul.f32 %v1695, %v1055
  %v1743 = vmul.f32 %v1696, %v1056
  %v1744 = vmul.f32 %v1696, %v1057
  %v1745 = vsel %vm83, %v1713, 0.0
  %v1746 = vsel %vm83, %v1715, 0.0
  %v1747 = vadd.f32 %v1745, %v1746
  %v1748 = vsel %vm83, %v1717, 0.0
  %v1749 = vadd.f32 %v1747, %v1748
  %v1750 = vsel %vm83, %v1719, 0.0
  %v1751 = vadd.f32 %v1749, %v1750
  %v1752 = vsel %vm83, %v1721, 0.0
  %v1753 = vadd.f32 %v1751, %v1752
  %v1754 = vsel %vm83, %v1723, 0.0
  %v1755 = vadd.f32 %v1753, %v1754
  %v1756 = vsel %vm83, %v1725, 0.0
  %v1757 = vadd.f32 %v1755, %v1756
  %v1758 = vsel %vm83, %v1727, 0.0
  %v1759 = vadd.f32 %v1757, %v1758
  %v1760 = vsel %vm83, %v1729, 0.0
  %v1761 = vadd.f32 %v1759, %v1760
  %v1762 = vsel %vm83, %v1731, 0.0
  %v1763 = vadd.f32 %v1761, %v1762
  %v1764 = vsel %vm83, %v1733, 0.0
  %v1765 = vadd.f32 %v1763, %v1764
  %v1766 = vsel %vm83, %v1735, 0.0
  %v1767 = vadd.f32 %v1765, %v1766
  %v1768 = vsel %vm83, %v1737, 0.0
  %v1769 = vadd.f32 %v1767, %v1768
  %v1770 = vsel %vm83, %v1739, 0.0
  %v1771 = vadd.f32 %v1769, %v1770
  %v1772 = vsel %vm83, %v1741, 0.0
  %v1773 = vadd.f32 %v1771, %v1772
  %v1774 = vsel %vm83, %v1743, 0.0
  %v1775 = vadd.f32 %v1773, %v1774
  %v1776 = vsel %vm83, %v1714, 0.0
  %v1777 = vsel %vm83, %v1716, 0.0
  %v1778 = vadd.f32 %v1776, %v1777
  %v1779 = vsel %vm83, %v1718, 0.0
  %v1780 = vadd.f32 %v1778, %v1779
  %v1781 = vsel %vm83, %v1720, 0.0
  %v1782 = vadd.f32 %v1780, %v1781
  %v1783 = vsel %vm83, %v1722, 0.0
  %v1784 = vadd.f32 %v1782, %v1783
  %v1785 = vsel %vm83, %v1724, 0.0
  %v1786 = vadd.f32 %v1784, %v1785
  %v1787 = vsel %vm83, %v1726, 0.0
  %v1788 = vadd.f32 %v1786, %v1787
  %v1789 = vsel %vm83, %v1728, 0.0
  %v1790 = vadd.f32 %v1788, %v1789
  %v1791 = vsel %vm83, %v1730, 0.0
  %v1792 = vadd.f32 %v1790, %v1791
  %v1793 = vsel %vm83, %v1732, 0.0
  %v1794 = vadd.f32 %v1792, %v1793
  %v1795 = vsel %vm83, %v1734, 0.0
  %v1796 = vadd.f32 %v1794, %v1795
  %v1797 = vsel %vm83, %v1736, 0.0
  %v1798 = vadd.f32 %v1796, %v1797
  %v1799 = vsel %vm83, %v1738, 0.0
  %v1800 = vadd.f32 %v1798, %v1799
  %v1801 = vsel %vm83, %v1740, 0.0
  %v1802 = vadd.f32 %v1800, %v1801
  %v1803 = vsel %vm83, %v1742, 0.0
  %v1804 = vadd.f32 %v1802, %v1803
  %v1805 = vsel %vm83, %v1744, 0.0
  %v1806 = vadd.f32 %v1804, %v1805
  %1807 = vmatpush.msra.mxu0 0.0
  %1808 = vmatpush.msra.mxu0 0.0
  %1809 = vmatpush.msra.mxu0 0.0
  %1810 = vmatpush.msra.mxu0 0.0
  %1811 = vmatpush.msra.mxu0 0.0
  %1812 = vmatpush.msra.mxu0 0.0
  %1813 = vmatpush.msra.mxu0 0.0
  %1814 = vmatpush.msra.mxu0 0.0
  %1815 = vmatpush.msra.mxu0 0.0
  %1816 = vmatpush.msra.mxu0 0.0
  %1817 = vmatpush.msra.mxu0 0.0
  %1818 = vmatpush.msra.mxu0 0.0
  %1819 = vmatpush.msra.mxu0 0.0
  %1820 = vmatpush.msra.mxu0 0.0
  %1821 = vmatpush.msra.mxu0 %v1806
  %1822 = vmatpush.msra.mxu0 %v1775
  %1823 = vmatmul.f32.gmra.mxu0 %v1194
  %v1824 = vpop.f32.mrf.mxu0
  %v1825 = vadd.f32 %v1155, %v1824
  %1826 = vmatmul.f32.gmra.mxu0 %v1197
  %v1827 = vpop.f32.mrf.mxu0
  %v1828 = vadd.f32 %v1160, %v1827
  %1829 = vmatmul.f32.gmra.mxu0 %v1200
  %v1830 = vpop.f32.mrf.mxu0
  %v1831 = vadd.f32 %v1165, %v1830
  %1832 = vmatmul.f32.gmra.mxu0 %v1203
  %v1833 = vpop.f32.mrf.mxu0
  %v1834 = vadd.f32 %v1170, %v1833
  %1835 = vmatmul.f32.gmra.mxu0 %v1206
  %v1836 = vpop.f32.mrf.mxu0
  %v1837 = vadd.f32 %v1175, %v1836
  %1838 = vmatmul.f32.gmra.mxu0 %v1209
  %v1839 = vpop.f32.mrf.mxu0
  %v1840 = vadd.f32 %v1180, %v1839
  %1841 = vmatmul.f32.gmra.mxu0 %v1212
  %v1842 = vpop.f32.mrf.mxu0
  %v1843 = vadd.f32 %v1185, %v1842
  %1844 = vmatmul.f32.gmra.mxu0 %v1215
  %v1845 = vpop.f32.mrf.mxu0
  %v1846 = vadd.f32 %v1190, %v1845
  %1847 = vdwg.mxu0
  %v1848 = vmul.f32 %v1825, %v1261
  %v1849 = vmul.f32 %v1828, %v1266
  %v1850 = vmul.f32 %v1831, %v1271
  %v1851 = vmul.f32 %v1834, %v1276
  %v1852 = vmul.f32 %v1837, %v1281
  %v1853 = vmul.f32 %v1840, %v1286
  %v1854 = vmul.f32 %v1843, %v1291
  %v1855 = vmul.f32 %v1846, %v1296
  %v1856 = vadd.f32 %v1848, %v1309
  %v1857 = vadd.f32 %v1849, %v1314
  %v1858 = vadd.f32 %v1850, %v1319
  %v1859 = vadd.f32 %v1851, %v1324
  %v1860 = vadd.f32 %v1852, %v1329
  %v1861 = vadd.f32 %v1853, %v1334
  %v1862 = vadd.f32 %v1854, %v1339
  %v1863 = vadd.f32 %v1855, %v1344
  %v1864 = vand.u32 2147483647, %v1856
  %v1865 = vand.u32 2147483647, %v1857
  %v1866 = vand.u32 2147483647, %v1858
  %v1867 = vand.u32 2147483647, %v1859
  %v1868 = vand.u32 2147483647, %v1860
  %v1869 = vand.u32 2147483647, %v1861
  %v1870 = vand.u32 2147483647, %v1862
  %v1871 = vand.u32 2147483647, %v1863
  %v1872 = vadd.f32 %v1864, 1.0
  %v1873 = vadd.f32 %v1865, 1.0
  %v1874 = vadd.f32 %v1866, 1.0
  %v1875 = vadd.f32 %v1867, 1.0
  %v1876 = vadd.f32 %v1868, 1.0
  %v1877 = vadd.f32 %v1869, 1.0
  %v1878 = vadd.f32 %v1870, 1.0
  %v1879 = vadd.f32 %v1871, 1.0
  %v1880 = vrcp.pop %v1872
  %v1881 = vrcp.pop %v1873
  %v1882 = vrcp.pop %v1874
  %v1883 = vrcp.pop %v1875
  %v1884 = vrcp.pop %v1876
  %v1885 = vrcp.pop %v1877
  %v1886 = vrcp.pop %v1878
  %v1887 = vrcp.pop %v1879
  %v1888 = vmul.f32 %v1872, %v1880
  %v1889 = vmul.f32 %v1873, %v1881
  %v1890 = vmul.f32 %v1874, %v1882
  %v1891 = vmul.f32 %v1875, %v1883
  %v1892 = vmul.f32 %v1876, %v1884
  %v1893 = vmul.f32 %v1877, %v1885
  %v1894 = vmul.f32 %v1878, %v1886
  %v1895 = vmul.f32 %v1879, %v1887
  %v1896 = vsub.f32 2.0, %v1888
  %v1897 = vsub.f32 2.0, %v1889
  %v1898 = vsub.f32 2.0, %v1890
  %v1899 = vsub.f32 2.0, %v1891
  %v1900 = vsub.f32 2.0, %v1892
  %v1901 = vsub.f32 2.0, %v1893
  %v1902 = vsub.f32 2.0, %v1894
  %v1903 = vsub.f32 2.0, %v1895
  %v1904 = vmul.f32 %v1880, %v1896
  %v1905 = vmul.f32 %v1881, %v1897
  %v1906 = vmul.f32 %v1882, %v1898
  %v1907 = vmul.f32 %v1883, %v1899
  %v1908 = vmul.f32 %v1884, %v1900
  %v1909 = vmul.f32 %v1885, %v1901
  %v1910 = vmul.f32 %v1886, %v1902
  %v1911 = vmul.f32 %v1887, %v1903
  %v1912 = vmul.f32 %v1856, %v1904
  %v1913 = vmul.f32 %v1857, %v1905
  %v1914 = vmul.f32 %v1858, %v1906
  %v1915 = vmul.f32 %v1859, %v1907
  %v1916 = vmul.f32 %v1860, %v1908
  %v1917 = vmul.f32 %v1861, %v1909
  %v1918 = vmul.f32 %v1862, %v1910
  %v1919 = vmul.f32 %v1863, %v1911
  %v1920 = vadd.f32 %v1657, %v1912
  %v1921 = vadd.f32 %v1658, %v1913
  %v1922 = vadd.f32 %v1659, %v1914
  %v1923 = vadd.f32 %v1660, %v1915
  %v1924 = vadd.f32 %v1661, %v1916
  %v1925 = vadd.f32 %v1662, %v1917
  %v1926 = vadd.f32 %v1663, %v1918
  %v1927 = vadd.f32 %v1664, %v1919
  %v1930 = vrot.slane %v47, 1
  %v1931 = vrot.slane %v47, 2
  %v1932 = vrot.slane %v47, 3
  %v1933 = vrot.slane %v47, 4
  %v1934 = vrot.slane %v47, 5
  %v1935 = vrot.slane %v47, 6
  %v1936 = vrot.slane %v47, 7
  %v1937 = vrot.slane %v48, 1
  %v1938 = vrot.slane %v48, 2
  %v1939 = vrot.slane %v48, 3
  %v1940 = vrot.slane %v48, 4
  %v1941 = vrot.slane %v48, 5
  %v1942 = vrot.slane %v48, 6
  %v1943 = vrot.slane %v48, 7
  %v1944 = vperm.slane %v47, 0
  %v1945 = vperm.slane %v1930, 0
  %v1946 = vperm.slane %v1931, 0
  %v1947 = vperm.slane %v1932, 0
  %v1948 = vperm.slane %v1933, 0
  %v1949 = vperm.slane %v1934, 0
  %v1950 = vperm.slane %v1935, 0
  %v1951 = vperm.slane %v1936, 0
  %v1952 = vperm.slane %v48, 0
  %v1953 = vperm.slane %v1937, 0
  %v1954 = vperm.slane %v1938, 0
  %v1955 = vperm.slane %v1939, 0
  %v1956 = vperm.slane %v1940, 0
  %v1957 = vperm.slane %v1941, 0
  %v1958 = vperm.slane %v1942, 0
  %v1959 = vperm.slane %v1943, 0
  %v1976 = vmul.f32 %v1944, %v1026
  %v1977 = vmul.f32 %v1944, %v1027
  %v1978 = vmul.f32 %v1945, %v1028
  %v1979 = vmul.f32 %v1945, %v1029
  %v1980 = vmul.f32 %v1946, %v1030
  %v1981 = vmul.f32 %v1946, %v1031
  %v1982 = vmul.f32 %v1947, %v1032
  %v1983 = vmul.f32 %v1947, %v1033
  %v1984 = vmul.f32 %v1948, %v1034
  %v1985 = vmul.f32 %v1948, %v1035
  %v1986 = vmul.f32 %v1949, %v1036
  %v1987 = vmul.f32 %v1949, %v1037
  %v1988 = vmul.f32 %v1950, %v1038
  %v1989 = vmul.f32 %v1950, %v1039
  %v1990 = vmul.f32 %v1951, %v1040
  %v1991 = vmul.f32 %v1951, %v1041
  %v1992 = vmul.f32 %v1952, %v1042
  %v1993 = vmul.f32 %v1952, %v1043
  %v1994 = vmul.f32 %v1953, %v1044
  %v1995 = vmul.f32 %v1953, %v1045
  %v1996 = vmul.f32 %v1954, %v1046
  %v1997 = vmul.f32 %v1954, %v1047
  %v1998 = vmul.f32 %v1955, %v1048
  %v1999 = vmul.f32 %v1955, %v1049
  %v2000 = vmul.f32 %v1956, %v1050
  %v2001 = vmul.f32 %v1956, %v1051
  %v2002 = vmul.f32 %v1957, %v1052
  %v2003 = vmul.f32 %v1957, %v1053
  %v2004 = vmul.f32 %v1958, %v1054
  %v2005 = vmul.f32 %v1958, %v1055
  %v2006 = vmul.f32 %v1959, %v1056
  %v2007 = vmul.f32 %v1959, %v1057
  %v2008 = vsel %vm83, %v1976, 0.0
  %v2009 = vsel %vm83, %v1978, 0.0
  %v2010 = vadd.f32 %v2008, %v2009
  %v2011 = vsel %vm83, %v1980, 0.0
  %v2012 = vadd.f32 %v2010, %v2011
  %v2013 = vsel %vm83, %v1982, 0.0
  %v2014 = vadd.f32 %v2012, %v2013
  %v2015 = vsel %vm83, %v1984, 0.0
  %v2016 = vadd.f32 %v2014, %v2015
  %v2017 = vsel %vm83, %v1986, 0.0
  %v2018 = vadd.f32 %v2016, %v2017
  %v2019 = vsel %vm83, %v1988, 0.0
  %v2020 = vadd.f32 %v2018, %v2019
  %v2021 = vsel %vm83, %v1990, 0.0
  %v2022 = vadd.f32 %v2020, %v2021
  %v2023 = vsel %vm83, %v1992, 0.0
  %v2024 = vadd.f32 %v2022, %v2023
  %v2025 = vsel %vm83, %v1994, 0.0
  %v2026 = vadd.f32 %v2024, %v2025
  %v2027 = vsel %vm83, %v1996, 0.0
  %v2028 = vadd.f32 %v2026, %v2027
  %v2029 = vsel %vm83, %v1998, 0.0
  %v2030 = vadd.f32 %v2028, %v2029
  %v2031 = vsel %vm83, %v2000, 0.0
  %v2032 = vadd.f32 %v2030, %v2031
  %v2033 = vsel %vm83, %v2002, 0.0
  %v2034 = vadd.f32 %v2032, %v2033
  %v2035 = vsel %vm83, %v2004, 0.0
  %v2036 = vadd.f32 %v2034, %v2035
  %v2037 = vsel %vm83, %v2006, 0.0
  %v2038 = vadd.f32 %v2036, %v2037
  %v2039 = vsel %vm83, %v1977, 0.0
  %v2040 = vsel %vm83, %v1979, 0.0
  %v2041 = vadd.f32 %v2039, %v2040
  %v2042 = vsel %vm83, %v1981, 0.0
  %v2043 = vadd.f32 %v2041, %v2042
  %v2044 = vsel %vm83, %v1983, 0.0
  %v2045 = vadd.f32 %v2043, %v2044
  %v2046 = vsel %vm83, %v1985, 0.0
  %v2047 = vadd.f32 %v2045, %v2046
  %v2048 = vsel %vm83, %v1987, 0.0
  %v2049 = vadd.f32 %v2047, %v2048
  %v2050 = vsel %vm83, %v1989, 0.0
  %v2051 = vadd.f32 %v2049, %v2050
  %v2052 = vsel %vm83, %v1991, 0.0
  %v2053 = vadd.f32 %v2051, %v2052
  %v2054 = vsel %vm83, %v1993, 0.0
  %v2055 = vadd.f32 %v2053, %v2054
  %v2056 = vsel %vm83, %v1995, 0.0
  %v2057 = vadd.f32 %v2055, %v2056
  %v2058 = vsel %vm83, %v1997, 0.0
  %v2059 = vadd.f32 %v2057, %v2058
  %v2060 = vsel %vm83, %v1999, 0.0
  %v2061 = vadd.f32 %v2059, %v2060
  %v2062 = vsel %vm83, %v2001, 0.0
  %v2063 = vadd.f32 %v2061, %v2062
  %v2064 = vsel %vm83, %v2003, 0.0
  %v2065 = vadd.f32 %v2063, %v2064
  %v2066 = vsel %vm83, %v2005, 0.0
  %v2067 = vadd.f32 %v2065, %v2066
  %v2068 = vsel %vm83, %v2007, 0.0
  %v2069 = vadd.f32 %v2067, %v2068
  %2070 = vmatpush.msra.mxu0 0.0
  %2071 = vmatpush.msra.mxu0 0.0
  %2072 = vmatpush.msra.mxu0 0.0
  %2073 = vmatpush.msra.mxu0 0.0
  %2074 = vmatpush.msra.mxu0 0.0
  %2075 = vmatpush.msra.mxu0 0.0
  %2076 = vmatpush.msra.mxu0 0.0
  %2077 = vmatpush.msra.mxu0 0.0
  %2078 = vmatpush.msra.mxu0 0.0
  %2079 = vmatpush.msra.mxu0 0.0
  %2080 = vmatpush.msra.mxu0 0.0
  %2081 = vmatpush.msra.mxu0 0.0
  %2082 = vmatpush.msra.mxu0 0.0
  %2083 = vmatpush.msra.mxu0 0.0
  %2084 = vmatpush.msra.mxu0 %v2069
  %2085 = vmatpush.msra.mxu0 %v2038
  %2086 = vmatmul.f32.gmra.mxu0 %v1194
  %v2087 = vpop.f32.mrf.mxu0
  %v2088 = vadd.f32 %v1155, %v2087
  %2089 = vmatmul.f32.gmra.mxu0 %v1197
  %v2090 = vpop.f32.mrf.mxu0
  %v2091 = vadd.f32 %v1160, %v2090
  %2092 = vmatmul.f32.gmra.mxu0 %v1200
  %v2093 = vpop.f32.mrf.mxu0
  %v2094 = vadd.f32 %v1165, %v2093
  %2095 = vmatmul.f32.gmra.mxu0 %v1203
  %v2096 = vpop.f32.mrf.mxu0
  %v2097 = vadd.f32 %v1170, %v2096
  %2098 = vmatmul.f32.gmra.mxu0 %v1206
  %v2099 = vpop.f32.mrf.mxu0
  %v2100 = vadd.f32 %v1175, %v2099
  %2101 = vmatmul.f32.gmra.mxu0 %v1209
  %v2102 = vpop.f32.mrf.mxu0
  %v2103 = vadd.f32 %v1180, %v2102
  %2104 = vmatmul.f32.gmra.mxu0 %v1212
  %v2105 = vpop.f32.mrf.mxu0
  %v2106 = vadd.f32 %v1185, %v2105
  %2107 = vmatmul.f32.gmra.mxu0 %v1215
  %v2108 = vpop.f32.mrf.mxu0
  %v2109 = vadd.f32 %v1190, %v2108
  %2110 = vdwg.mxu0
  %v2111 = vmul.f32 %v2088, %v1261
  %v2112 = vmul.f32 %v2091, %v1266
  %v2113 = vmul.f32 %v2094, %v1271
  %v2114 = vmul.f32 %v2097, %v1276
  %v2115 = vmul.f32 %v2100, %v1281
  %v2116 = vmul.f32 %v2103, %v1286
  %v2117 = vmul.f32 %v2106, %v1291
  %v2118 = vmul.f32 %v2109, %v1296
  %v2119 = vadd.f32 %v2111, %v1309
  %v2120 = vadd.f32 %v2112, %v1314
  %v2121 = vadd.f32 %v2113, %v1319
  %v2122 = vadd.f32 %v2114, %v1324
  %v2123 = vadd.f32 %v2115, %v1329
  %v2124 = vadd.f32 %v2116, %v1334
  %v2125 = vadd.f32 %v2117, %v1339
  %v2126 = vadd.f32 %v2118, %v1344
  %v2127 = vand.u32 2147483647, %v2119
  %v2128 = vand.u32 2147483647, %v2120
  %v2129 = vand.u32 2147483647, %v2121
  %v2130 = vand.u32 2147483647, %v2122
  %v2131 = vand.u32 2147483647, %v2123
  %v2132 = vand.u32 2147483647, %v2124
  %v2133 = vand.u32 2147483647, %v2125
  %v2134 = vand.u32 2147483647, %v2126
  %v2135 = vadd.f32 %v2127, 1.0
  %v2136 = vadd.f32 %v2128, 1.0
  %v2137 = vadd.f32 %v2129, 1.0
  %v2138 = vadd.f32 %v2130, 1.0
  %v2139 = vadd.f32 %v2131, 1.0
  %v2140 = vadd.f32 %v2132, 1.0
  %v2141 = vadd.f32 %v2133, 1.0
  %v2142 = vadd.f32 %v2134, 1.0
  %v2143 = vrcp.pop %v2135
  %v2144 = vrcp.pop %v2136
  %v2145 = vrcp.pop %v2137
  %v2146 = vrcp.pop %v2138
  %v2147 = vrcp.pop %v2139
  %v2148 = vrcp.pop %v2140
  %v2149 = vrcp.pop %v2141
  %v2150 = vrcp.pop %v2142
  %v2151 = vmul.f32 %v2135, %v2143
  %v2152 = vmul.f32 %v2136, %v2144
  %v2153 = vmul.f32 %v2137, %v2145
  %v2154 = vmul.f32 %v2138, %v2146
  %v2155 = vmul.f32 %v2139, %v2147
  %v2156 = vmul.f32 %v2140, %v2148
  %v2157 = vmul.f32 %v2141, %v2149
  %v2158 = vmul.f32 %v2142, %v2150
  %v2159 = vsub.f32 2.0, %v2151
  %v2160 = vsub.f32 2.0, %v2152
  %v2161 = vsub.f32 2.0, %v2153
  %v2162 = vsub.f32 2.0, %v2154
  %v2163 = vsub.f32 2.0, %v2155
  %v2164 = vsub.f32 2.0, %v2156
  %v2165 = vsub.f32 2.0, %v2157
  %v2166 = vsub.f32 2.0, %v2158
  %v2167 = vmul.f32 %v2143, %v2159
  %v2168 = vmul.f32 %v2144, %v2160
  %v2169 = vmul.f32 %v2145, %v2161
  %v2170 = vmul.f32 %v2146, %v2162
  %v2171 = vmul.f32 %v2147, %v2163
  %v2172 = vmul.f32 %v2148, %v2164
  %v2173 = vmul.f32 %v2149, %v2165
  %v2174 = vmul.f32 %v2150, %v2166
  %v2175 = vmul.f32 %v2119, %v2167
  %v2176 = vmul.f32 %v2120, %v2168
  %v2177 = vmul.f32 %v2121, %v2169
  %v2178 = vmul.f32 %v2122, %v2170
  %v2179 = vmul.f32 %v2123, %v2171
  %v2180 = vmul.f32 %v2124, %v2172
  %v2181 = vmul.f32 %v2125, %v2173
  %v2182 = vmul.f32 %v2126, %v2174
  %v2183 = vadd.f32 %v1920, %v2175
  %v2184 = vadd.f32 %v1921, %v2176
  %v2185 = vadd.f32 %v1922, %v2177
  %v2186 = vadd.f32 %v1923, %v2178
  %v2187 = vadd.f32 %v1924, %v2179
  %v2188 = vadd.f32 %v1925, %v2180
  %v2189 = vadd.f32 %v1926, %v2181
  %v2190 = vadd.f32 %v1927, %v2182
  %v2193 = vrot.slane %v49, 1
  %v2194 = vrot.slane %v49, 2
  %v2195 = vrot.slane %v49, 3
  %v2196 = vrot.slane %v49, 4
  %v2197 = vrot.slane %v49, 5
  %v2198 = vrot.slane %v49, 6
  %v2199 = vrot.slane %v49, 7
  %v2200 = vrot.slane %v50, 1
  %v2201 = vrot.slane %v50, 2
  %v2202 = vrot.slane %v50, 3
  %v2203 = vrot.slane %v50, 4
  %v2204 = vrot.slane %v50, 5
  %v2205 = vrot.slane %v50, 6
  %v2206 = vrot.slane %v50, 7
  %v2207 = vperm.slane %v49, 0
  %v2208 = vperm.slane %v2193, 0
  %v2209 = vperm.slane %v2194, 0
  %v2210 = vperm.slane %v2195, 0
  %v2211 = vperm.slane %v2196, 0
  %v2212 = vperm.slane %v2197, 0
  %v2213 = vperm.slane %v2198, 0
  %v2214 = vperm.slane %v2199, 0
  %v2215 = vperm.slane %v50, 0
  %v2216 = vperm.slane %v2200, 0
  %v2217 = vperm.slane %v2201, 0
  %v2218 = vperm.slane %v2202, 0
  %v2219 = vperm.slane %v2203, 0
  %v2220 = vperm.slane %v2204, 0
  %v2221 = vperm.slane %v2205, 0
  %v2222 = vperm.slane %v2206, 0
  %v2239 = vmul.f32 %v2207, %v1026
  %v2240 = vmul.f32 %v2207, %v1027
  %v2241 = vmul.f32 %v2208, %v1028
  %v2242 = vmul.f32 %v2208, %v1029
  %v2243 = vmul.f32 %v2209, %v1030
  %v2244 = vmul.f32 %v2209, %v1031
  %v2245 = vmul.f32 %v2210, %v1032
  %v2246 = vmul.f32 %v2210, %v1033
  %v2247 = vmul.f32 %v2211, %v1034
  %v2248 = vmul.f32 %v2211, %v1035
  %v2249 = vmul.f32 %v2212, %v1036
  %v2250 = vmul.f32 %v2212, %v1037
  %v2251 = vmul.f32 %v2213, %v1038
  %v2252 = vmul.f32 %v2213, %v1039
  %v2253 = vmul.f32 %v2214, %v1040
  %v2254 = vmul.f32 %v2214, %v1041
  %v2255 = vmul.f32 %v2215, %v1042
  %v2256 = vmul.f32 %v2215, %v1043
  %v2257 = vmul.f32 %v2216, %v1044
  %v2258 = vmul.f32 %v2216, %v1045
  %v2259 = vmul.f32 %v2217, %v1046
  %v2260 = vmul.f32 %v2217, %v1047
  %v2261 = vmul.f32 %v2218, %v1048
  %v2262 = vmul.f32 %v2218, %v1049
  %v2263 = vmul.f32 %v2219, %v1050
  %v2264 = vmul.f32 %v2219, %v1051
  %v2265 = vmul.f32 %v2220, %v1052
  %v2266 = vmul.f32 %v2220, %v1053
  %v2267 = vmul.f32 %v2221, %v1054
  %v2268 = vmul.f32 %v2221, %v1055
  %v2269 = vmul.f32 %v2222, %v1056
  %v2270 = vmul.f32 %v2222, %v1057
  %v2271 = vsel %vm83, %v2239, 0.0
  %v2272 = vsel %vm83, %v2241, 0.0
  %v2273 = vadd.f32 %v2271, %v2272
  %v2274 = vsel %vm83, %v2243, 0.0
  %v2275 = vadd.f32 %v2273, %v2274
  %v2276 = vsel %vm83, %v2245, 0.0
  %v2277 = vadd.f32 %v2275, %v2276
  %v2278 = vsel %vm83, %v2247, 0.0
  %v2279 = vadd.f32 %v2277, %v2278
  %v2280 = vsel %vm83, %v2249, 0.0
  %v2281 = vadd.f32 %v2279, %v2280
  %v2282 = vsel %vm83, %v2251, 0.0
  %v2283 = vadd.f32 %v2281, %v2282
  %v2284 = vsel %vm83, %v2253, 0.0
  %v2285 = vadd.f32 %v2283, %v2284
  %v2286 = vsel %vm83, %v2255, 0.0
  %v2287 = vadd.f32 %v2285, %v2286
  %v2288 = vsel %vm83, %v2257, 0.0
  %v2289 = vadd.f32 %v2287, %v2288
  %v2290 = vsel %vm83, %v2259, 0.0
  %v2291 = vadd.f32 %v2289, %v2290
  %v2292 = vsel %vm83, %v2261, 0.0
  %v2293 = vadd.f32 %v2291, %v2292
  %v2294 = vsel %vm83, %v2263, 0.0
  %v2295 = vadd.f32 %v2293, %v2294
  %v2296 = vsel %vm83, %v2265, 0.0
  %v2297 = vadd.f32 %v2295, %v2296
  %v2298 = vsel %vm83, %v2267, 0.0
  %v2299 = vadd.f32 %v2297, %v2298
  %v2300 = vsel %vm83, %v2269, 0.0
  %v2301 = vadd.f32 %v2299, %v2300
  %v2302 = vsel %vm83, %v2240, 0.0
  %v2303 = vsel %vm83, %v2242, 0.0
  %v2304 = vadd.f32 %v2302, %v2303
  %v2305 = vsel %vm83, %v2244, 0.0
  %v2306 = vadd.f32 %v2304, %v2305
  %v2307 = vsel %vm83, %v2246, 0.0
  %v2308 = vadd.f32 %v2306, %v2307
  %v2309 = vsel %vm83, %v2248, 0.0
  %v2310 = vadd.f32 %v2308, %v2309
  %v2311 = vsel %vm83, %v2250, 0.0
  %v2312 = vadd.f32 %v2310, %v2311
  %v2313 = vsel %vm83, %v2252, 0.0
  %v2314 = vadd.f32 %v2312, %v2313
  %v2315 = vsel %vm83, %v2254, 0.0
  %v2316 = vadd.f32 %v2314, %v2315
  %v2317 = vsel %vm83, %v2256, 0.0
  %v2318 = vadd.f32 %v2316, %v2317
  %v2319 = vsel %vm83, %v2258, 0.0
  %v2320 = vadd.f32 %v2318, %v2319
  %v2321 = vsel %vm83, %v2260, 0.0
  %v2322 = vadd.f32 %v2320, %v2321
  %v2323 = vsel %vm83, %v2262, 0.0
  %v2324 = vadd.f32 %v2322, %v2323
  %v2325 = vsel %vm83, %v2264, 0.0
  %v2326 = vadd.f32 %v2324, %v2325
  %v2327 = vsel %vm83, %v2266, 0.0
  %v2328 = vadd.f32 %v2326, %v2327
  %v2329 = vsel %vm83, %v2268, 0.0
  %v2330 = vadd.f32 %v2328, %v2329
  %v2331 = vsel %vm83, %v2270, 0.0
  %v2332 = vadd.f32 %v2330, %v2331
  %2333 = vmatpush.msra.mxu0 0.0
  %2334 = vmatpush.msra.mxu0 0.0
  %2335 = vmatpush.msra.mxu0 0.0
  %2336 = vmatpush.msra.mxu0 0.0
  %2337 = vmatpush.msra.mxu0 0.0
  %2338 = vmatpush.msra.mxu0 0.0
  %2339 = vmatpush.msra.mxu0 0.0
  %2340 = vmatpush.msra.mxu0 0.0
  %2341 = vmatpush.msra.mxu0 0.0
  %2342 = vmatpush.msra.mxu0 0.0
  %2343 = vmatpush.msra.mxu0 0.0
  %2344 = vmatpush.msra.mxu0 0.0
  %2345 = vmatpush.msra.mxu0 0.0
  %2346 = vmatpush.msra.mxu0 0.0
  %2347 = vmatpush.msra.mxu0 %v2332
  %2348 = vmatpush.msra.mxu0 %v2301
  %2349 = vmatmul.f32.gmra.mxu0 %v1194
  %v2350 = vpop.f32.mrf.mxu0
  %v2351 = vadd.f32 %v1155, %v2350
  %2352 = vmatmul.f32.gmra.mxu0 %v1197
  %v2353 = vpop.f32.mrf.mxu0
  %v2354 = vadd.f32 %v1160, %v2353
  %2355 = vmatmul.f32.gmra.mxu0 %v1200
  %v2356 = vpop.f32.mrf.mxu0
  %v2357 = vadd.f32 %v1165, %v2356
  %2358 = vmatmul.f32.gmra.mxu0 %v1203
  %v2359 = vpop.f32.mrf.mxu0
  %v2360 = vadd.f32 %v1170, %v2359
  %2361 = vmatmul.f32.gmra.mxu0 %v1206
  %v2362 = vpop.f32.mrf.mxu0
  %v2363 = vadd.f32 %v1175, %v2362
  %2364 = vmatmul.f32.gmra.mxu0 %v1209
  %v2365 = vpop.f32.mrf.mxu0
  %v2366 = vadd.f32 %v1180, %v2365
  %2367 = vmatmul.f32.gmra.mxu0 %v1212
  %v2368 = vpop.f32.mrf.mxu0
  %v2369 = vadd.f32 %v1185, %v2368
  %2370 = vmatmul.f32.gmra.mxu0 %v1215
  %v2371 = vpop.f32.mrf.mxu0
  %v2372 = vadd.f32 %v1190, %v2371
  %2373 = vdwg.mxu0
  %v2374 = vmul.f32 %v2351, %v1261
  %v2375 = vmul.f32 %v2354, %v1266
  %v2376 = vmul.f32 %v2357, %v1271
  %v2377 = vmul.f32 %v2360, %v1276
  %v2378 = vmul.f32 %v2363, %v1281
  %v2379 = vmul.f32 %v2366, %v1286
  %v2380 = vmul.f32 %v2369, %v1291
  %v2381 = vmul.f32 %v2372, %v1296
  %v2382 = vadd.f32 %v2374, %v1309
  %v2383 = vadd.f32 %v2375, %v1314
  %v2384 = vadd.f32 %v2376, %v1319
  %v2385 = vadd.f32 %v2377, %v1324
  %v2386 = vadd.f32 %v2378, %v1329
  %v2387 = vadd.f32 %v2379, %v1334
  %v2388 = vadd.f32 %v2380, %v1339
  %v2389 = vadd.f32 %v2381, %v1344
  %v2390 = vand.u32 2147483647, %v2382
  %v2391 = vand.u32 2147483647, %v2383
  %v2392 = vand.u32 2147483647, %v2384
  %v2393 = vand.u32 2147483647, %v2385
  %v2394 = vand.u32 2147483647, %v2386
  %v2395 = vand.u32 2147483647, %v2387
  %v2396 = vand.u32 2147483647, %v2388
  %v2397 = vand.u32 2147483647, %v2389
  %v2398 = vadd.f32 %v2390, 1.0
  %v2399 = vadd.f32 %v2391, 1.0
  %v2400 = vadd.f32 %v2392, 1.0
  %v2401 = vadd.f32 %v2393, 1.0
  %v2402 = vadd.f32 %v2394, 1.0
  %v2403 = vadd.f32 %v2395, 1.0
  %v2404 = vadd.f32 %v2396, 1.0
  %v2405 = vadd.f32 %v2397, 1.0
  %v2406 = vrcp.pop %v2398
  %v2407 = vrcp.pop %v2399
  %v2408 = vrcp.pop %v2400
  %v2409 = vrcp.pop %v2401
  %v2410 = vrcp.pop %v2402
  %v2411 = vrcp.pop %v2403
  %v2412 = vrcp.pop %v2404
  %v2413 = vrcp.pop %v2405
  %v2414 = vmul.f32 %v2398, %v2406
  %v2415 = vmul.f32 %v2399, %v2407
  %v2416 = vmul.f32 %v2400, %v2408
  %v2417 = vmul.f32 %v2401, %v2409
  %v2418 = vmul.f32 %v2402, %v2410
  %v2419 = vmul.f32 %v2403, %v2411
  %v2420 = vmul.f32 %v2404, %v2412
  %v2421 = vmul.f32 %v2405, %v2413
  %v2422 = vsub.f32 2.0, %v2414
  %v2423 = vsub.f32 2.0, %v2415
  %v2424 = vsub.f32 2.0, %v2416
  %v2425 = vsub.f32 2.0, %v2417
  %v2426 = vsub.f32 2.0, %v2418
  %v2427 = vsub.f32 2.0, %v2419
  %v2428 = vsub.f32 2.0, %v2420
  %v2429 = vsub.f32 2.0, %v2421
  %v2430 = vmul.f32 %v2406, %v2422
  %v2431 = vmul.f32 %v2407, %v2423
  %v2432 = vmul.f32 %v2408, %v2424
  %v2433 = vmul.f32 %v2409, %v2425
  %v2434 = vmul.f32 %v2410, %v2426
  %v2435 = vmul.f32 %v2411, %v2427
  %v2436 = vmul.f32 %v2412, %v2428
  %v2437 = vmul.f32 %v2413, %v2429
  %v2438 = vmul.f32 %v2382, %v2430
  %v2439 = vmul.f32 %v2383, %v2431
  %v2440 = vmul.f32 %v2384, %v2432
  %v2441 = vmul.f32 %v2385, %v2433
  %v2442 = vmul.f32 %v2386, %v2434
  %v2443 = vmul.f32 %v2387, %v2435
  %v2444 = vmul.f32 %v2388, %v2436
  %v2445 = vmul.f32 %v2389, %v2437
  %v2446 = vadd.f32 %v2183, %v2438
  %v2447 = vadd.f32 %v2184, %v2439
  %v2448 = vadd.f32 %v2185, %v2440
  %v2449 = vadd.f32 %v2186, %v2441
  %v2450 = vadd.f32 %v2187, %v2442
  %v2451 = vadd.f32 %v2188, %v2443
  %v2452 = vadd.f32 %v2189, %v2444
  %v2453 = vadd.f32 %v2190, %v2445
  %v2456 = vrot.slane %v1402, 1
  %v2457 = vrot.slane %v1402, 2
  %v2458 = vrot.slane %v1402, 3
  %v2459 = vrot.slane %v1402, 4
  %v2460 = vrot.slane %v1402, 5
  %v2461 = vrot.slane %v1402, 6
  %v2462 = vrot.slane %v1402, 7
  %v2463 = vrot.slane %v1403, 1
  %v2464 = vrot.slane %v1403, 2
  %v2465 = vrot.slane %v1403, 3
  %v2466 = vrot.slane %v1403, 4
  %v2467 = vrot.slane %v1403, 5
  %v2468 = vrot.slane %v1403, 6
  %v2469 = vrot.slane %v1403, 7
  %v2470 = vperm.slane %v1402, 0
  %v2471 = vperm.slane %v2456, 0
  %v2472 = vperm.slane %v2457, 0
  %v2473 = vperm.slane %v2458, 0
  %v2474 = vperm.slane %v2459, 0
  %v2475 = vperm.slane %v2460, 0
  %v2476 = vperm.slane %v2461, 0
  %v2477 = vperm.slane %v2462, 0
  %v2478 = vperm.slane %v1403, 0
  %v2479 = vperm.slane %v2463, 0
  %v2480 = vperm.slane %v2464, 0
  %v2481 = vperm.slane %v2465, 0
  %v2482 = vperm.slane %v2466, 0
  %v2483 = vperm.slane %v2467, 0
  %v2484 = vperm.slane %v2468, 0
  %v2485 = vperm.slane %v2469, 0
  %v2502 = vmul.f32 %v2470, %v2446
  %v2503 = vmul.f32 %v2470, %v2447
  %v2504 = vmul.f32 %v2471, %v2446
  %v2505 = vmul.f32 %v2471, %v2447
  %v2506 = vmul.f32 %v2472, %v2446
  %v2507 = vmul.f32 %v2472, %v2447
  %v2508 = vmul.f32 %v2473, %v2446
  %v2509 = vmul.f32 %v2473, %v2447
  %v2510 = vmul.f32 %v2474, %v2446
  %v2511 = vmul.f32 %v2474, %v2447
  %v2512 = vmul.f32 %v2475, %v2446
  %v2513 = vmul.f32 %v2475, %v2447
  %v2514 = vmul.f32 %v2476, %v2446
  %v2515 = vmul.f32 %v2476, %v2447
  %v2516 = vmul.f32 %v2477, %v2446
  %v2517 = vmul.f32 %v2477, %v2447
  %v2518 = vmul.f32 %v2478, %v2446
  %v2519 = vmul.f32 %v2478, %v2447
  %v2520 = vmul.f32 %v2479, %v2446
  %v2521 = vmul.f32 %v2479, %v2447
  %v2522 = vmul.f32 %v2480, %v2446
  %v2523 = vmul.f32 %v2480, %v2447
  %v2524 = vmul.f32 %v2481, %v2446
  %v2525 = vmul.f32 %v2481, %v2447
  %v2526 = vmul.f32 %v2482, %v2446
  %v2527 = vmul.f32 %v2482, %v2447
  %v2528 = vmul.f32 %v2483, %v2446
  %v2529 = vmul.f32 %v2483, %v2447
  %v2530 = vmul.f32 %v2484, %v2446
  %v2531 = vmul.f32 %v2484, %v2447
  %v2532 = vmul.f32 %v2485, %v2446
  %v2533 = vmul.f32 %v2485, %v2447
  %v2536 = vrot.slane %v2446, 1
  %v2537 = vrot.slane %v2446, 2
  %v2538 = vrot.slane %v2446, 3
  %v2539 = vrot.slane %v2446, 4
  %v2540 = vrot.slane %v2446, 5
  %v2541 = vrot.slane %v2446, 6
  %v2542 = vrot.slane %v2446, 7
  %v2543 = vrot.slane %v2447, 1
  %v2544 = vrot.slane %v2447, 2
  %v2545 = vrot.slane %v2447, 3
  %v2546 = vrot.slane %v2447, 4
  %v2547 = vrot.slane %v2447, 5
  %v2548 = vrot.slane %v2447, 6
  %v2549 = vrot.slane %v2447, 7
  %v2550 = vperm.slane %v2446, 0
  %v2551 = vperm.slane %v2536, 0
  %v2552 = vperm.slane %v2537, 0
  %v2553 = vperm.slane %v2538, 0
  %v2554 = vperm.slane %v2539, 0
  %v2555 = vperm.slane %v2540, 0
  %v2556 = vperm.slane %v2541, 0
  %v2557 = vperm.slane %v2542, 0
  %v2558 = vperm.slane %v2447, 0
  %v2559 = vperm.slane %v2543, 0
  %v2560 = vperm.slane %v2544, 0
  %v2561 = vperm.slane %v2545, 0
  %v2562 = vperm.slane %v2546, 0
  %v2563 = vperm.slane %v2547, 0
  %v2564 = vperm.slane %v2548, 0
  %v2565 = vperm.slane %v2549, 0
  %v2582 = vmul.f32 %v2550, %v1402
  %v2583 = vmul.f32 %v2550, %v1403
  %v2584 = vmul.f32 %v2551, %v1402
  %v2585 = vmul.f32 %v2551, %v1403
  %v2586 = vmul.f32 %v2552, %v1402
  %v2587 = vmul.f32 %v2552, %v1403
  %v2588 = vmul.f32 %v2553, %v1402
  %v2589 = vmul.f32 %v2553, %v1403
  %v2590 = vmul.f32 %v2554, %v1402
  %v2591 = vmul.f32 %v2554, %v1403
  %v2592 = vmul.f32 %v2555, %v1402
  %v2593 = vmul.f32 %v2555, %v1403
  %v2594 = vmul.f32 %v2556, %v1402
  %v2595 = vmul.f32 %v2556, %v1403
  %v2596 = vmul.f32 %v2557, %v1402
  %v2597 = vmul.f32 %v2557, %v1403
  %v2598 = vmul.f32 %v2558, %v1402
  %v2599 = vmul.f32 %v2558, %v1403
  %v2600 = vmul.f32 %v2559, %v1402
  %v2601 = vmul.f32 %v2559, %v1403
  %v2602 = vmul.f32 %v2560, %v1402
  %v2603 = vmul.f32 %v2560, %v1403
  %v2604 = vmul.f32 %v2561, %v1402
  %v2605 = vmul.f32 %v2561, %v1403
  %v2606 = vmul.f32 %v2562, %v1402
  %v2607 = vmul.f32 %v2562, %v1403
  %v2608 = vmul.f32 %v2563, %v1402
  %v2609 = vmul.f32 %v2563, %v1403
  %v2610 = vmul.f32 %v2564, %v1402
  %v2611 = vmul.f32 %v2564, %v1403
  %v2612 = vmul.f32 %v2565, %v1402
  %v2613 = vmul.f32 %v2565, %v1403
  %v2614 = vadd.f32 %v2502, %v2582
  %v2615 = vadd.f32 %v2503, %v2583
  %v2616 = vadd.f32 %v2504, %v2584
  %v2617 = vadd.f32 %v2505, %v2585
  %v2618 = vadd.f32 %v2506, %v2586
  %v2619 = vadd.f32 %v2507, %v2587
  %v2620 = vadd.f32 %v2508, %v2588
  %v2621 = vadd.f32 %v2509, %v2589
  %v2622 = vadd.f32 %v2510, %v2590
  %v2623 = vadd.f32 %v2511, %v2591
  %v2624 = vadd.f32 %v2512, %v2592
  %v2625 = vadd.f32 %v2513, %v2593
  %v2626 = vadd.f32 %v2514, %v2594
  %v2627 = vadd.f32 %v2515, %v2595
  %v2628 = vadd.f32 %v2516, %v2596
  %v2629 = vadd.f32 %v2517, %v2597
  %v2630 = vadd.f32 %v2518, %v2598
  %v2631 = vadd.f32 %v2519, %v2599
  %v2632 = vadd.f32 %v2520, %v2600
  %v2633 = vadd.f32 %v2521, %v2601
  %v2634 = vadd.f32 %v2522, %v2602
  %v2635 = vadd.f32 %v2523, %v2603
  %v2636 = vadd.f32 %v2524, %v2604
  %v2637 = vadd.f32 %v2525, %v2605
  %v2638 = vadd.f32 %v2526, %v2606
  %v2639 = vadd.f32 %v2527, %v2607
  %v2640 = vadd.f32 %v2528, %v2608
  %v2641 = vadd.f32 %v2529, %v2609
  %v2642 = vadd.f32 %v2530, %v2610
  %v2643 = vadd.f32 %v2531, %v2611
  %v2644 = vadd.f32 %v2532, %v2612
  %v2645 = vadd.f32 %v2533, %v2613
  %v2648 = vrot.slane %v1404, 1
  %v2649 = vrot.slane %v1404, 2
  %v2650 = vrot.slane %v1404, 3
  %v2651 = vrot.slane %v1404, 4
  %v2652 = vrot.slane %v1404, 5
  %v2653 = vrot.slane %v1404, 6
  %v2654 = vrot.slane %v1404, 7
  %v2655 = vrot.slane %v1405, 1
  %v2656 = vrot.slane %v1405, 2
  %v2657 = vrot.slane %v1405, 3
  %v2658 = vrot.slane %v1405, 4
  %v2659 = vrot.slane %v1405, 5
  %v2660 = vrot.slane %v1405, 6
  %v2661 = vrot.slane %v1405, 7
  %v2662 = vperm.slane %v1404, 0
  %v2663 = vperm.slane %v2648, 0
  %v2664 = vperm.slane %v2649, 0
  %v2665 = vperm.slane %v2650, 0
  %v2666 = vperm.slane %v2651, 0
  %v2667 = vperm.slane %v2652, 0
  %v2668 = vperm.slane %v2653, 0
  %v2669 = vperm.slane %v2654, 0
  %v2670 = vperm.slane %v1405, 0
  %v2671 = vperm.slane %v2655, 0
  %v2672 = vperm.slane %v2656, 0
  %v2673 = vperm.slane %v2657, 0
  %v2674 = vperm.slane %v2658, 0
  %v2675 = vperm.slane %v2659, 0
  %v2676 = vperm.slane %v2660, 0
  %v2677 = vperm.slane %v2661, 0
  %v2694 = vmul.f32 %v2662, %v2448
  %v2695 = vmul.f32 %v2662, %v2449
  %v2696 = vmul.f32 %v2663, %v2448
  %v2697 = vmul.f32 %v2663, %v2449
  %v2698 = vmul.f32 %v2664, %v2448
  %v2699 = vmul.f32 %v2664, %v2449
  %v2700 = vmul.f32 %v2665, %v2448
  %v2701 = vmul.f32 %v2665, %v2449
  %v2702 = vmul.f32 %v2666, %v2448
  %v2703 = vmul.f32 %v2666, %v2449
  %v2704 = vmul.f32 %v2667, %v2448
  %v2705 = vmul.f32 %v2667, %v2449
  %v2706 = vmul.f32 %v2668, %v2448
  %v2707 = vmul.f32 %v2668, %v2449
  %v2708 = vmul.f32 %v2669, %v2448
  %v2709 = vmul.f32 %v2669, %v2449
  %v2710 = vmul.f32 %v2670, %v2448
  %v2711 = vmul.f32 %v2670, %v2449
  %v2712 = vmul.f32 %v2671, %v2448
  %v2713 = vmul.f32 %v2671, %v2449
  %v2714 = vmul.f32 %v2672, %v2448
  %v2715 = vmul.f32 %v2672, %v2449
  %v2716 = vmul.f32 %v2673, %v2448
  %v2717 = vmul.f32 %v2673, %v2449
  %v2718 = vmul.f32 %v2674, %v2448
  %v2719 = vmul.f32 %v2674, %v2449
  %v2720 = vmul.f32 %v2675, %v2448
  %v2721 = vmul.f32 %v2675, %v2449
  %v2722 = vmul.f32 %v2676, %v2448
  %v2723 = vmul.f32 %v2676, %v2449
  %v2724 = vmul.f32 %v2677, %v2448
  %v2725 = vmul.f32 %v2677, %v2449
  %v2726 = vadd.f32 %v2614, %v2694
  %v2727 = vadd.f32 %v2615, %v2695
  %v2728 = vadd.f32 %v2616, %v2696
  %v2729 = vadd.f32 %v2617, %v2697
  %v2730 = vadd.f32 %v2618, %v2698
  %v2731 = vadd.f32 %v2619, %v2699
  %v2732 = vadd.f32 %v2620, %v2700
  %v2733 = vadd.f32 %v2621, %v2701
  %v2734 = vadd.f32 %v2622, %v2702
  %v2735 = vadd.f32 %v2623, %v2703
  %v2736 = vadd.f32 %v2624, %v2704
  %v2737 = vadd.f32 %v2625, %v2705
  %v2738 = vadd.f32 %v2626, %v2706
  %v2739 = vadd.f32 %v2627, %v2707
  %v2740 = vadd.f32 %v2628, %v2708
  %v2741 = vadd.f32 %v2629, %v2709
  %v2742 = vadd.f32 %v2630, %v2710
  %v2743 = vadd.f32 %v2631, %v2711
  %v2744 = vadd.f32 %v2632, %v2712
  %v2745 = vadd.f32 %v2633, %v2713
  %v2746 = vadd.f32 %v2634, %v2714
  %v2747 = vadd.f32 %v2635, %v2715
  %v2748 = vadd.f32 %v2636, %v2716
  %v2749 = vadd.f32 %v2637, %v2717
  %v2750 = vadd.f32 %v2638, %v2718
  %v2751 = vadd.f32 %v2639, %v2719
  %v2752 = vadd.f32 %v2640, %v2720
  %v2753 = vadd.f32 %v2641, %v2721
  %v2754 = vadd.f32 %v2642, %v2722
  %v2755 = vadd.f32 %v2643, %v2723
  %v2756 = vadd.f32 %v2644, %v2724
  %v2757 = vadd.f32 %v2645, %v2725
  %v2760 = vrot.slane %v2448, 1
  %v2761 = vrot.slane %v2448, 2
  %v2762 = vrot.slane %v2448, 3
  %v2763 = vrot.slane %v2448, 4
  %v2764 = vrot.slane %v2448, 5
  %v2765 = vrot.slane %v2448, 6
  %v2766 = vrot.slane %v2448, 7
  %v2767 = vrot.slane %v2449, 1
  %v2768 = vrot.slane %v2449, 2
  %v2769 = vrot.slane %v2449, 3
  %v2770 = vrot.slane %v2449, 4
  %v2771 = vrot.slane %v2449, 5
  %v2772 = vrot.slane %v2449, 6
  %v2773 = vrot.slane %v2449, 7
  %v2774 = vperm.slane %v2448, 0
  %v2775 = vperm.slane %v2760, 0
  %v2776 = vperm.slane %v2761, 0
  %v2777 = vperm.slane %v2762, 0
  %v2778 = vperm.slane %v2763, 0
  %v2779 = vperm.slane %v2764, 0
  %v2780 = vperm.slane %v2765, 0
  %v2781 = vperm.slane %v2766, 0
  %v2782 = vperm.slane %v2449, 0
  %v2783 = vperm.slane %v2767, 0
  %v2784 = vperm.slane %v2768, 0
  %v2785 = vperm.slane %v2769, 0
  %v2786 = vperm.slane %v2770, 0
  %v2787 = vperm.slane %v2771, 0
  %v2788 = vperm.slane %v2772, 0
  %v2789 = vperm.slane %v2773, 0
  %v2806 = vmul.f32 %v2774, %v1404
  %v2807 = vmul.f32 %v2774, %v1405
  %v2808 = vmul.f32 %v2775, %v1404
  %v2809 = vmul.f32 %v2775, %v1405
  %v2810 = vmul.f32 %v2776, %v1404
  %v2811 = vmul.f32 %v2776, %v1405
  %v2812 = vmul.f32 %v2777, %v1404
  %v2813 = vmul.f32 %v2777, %v1405
  %v2814 = vmul.f32 %v2778, %v1404
  %v2815 = vmul.f32 %v2778, %v1405
  %v2816 = vmul.f32 %v2779, %v1404
  %v2817 = vmul.f32 %v2779, %v1405
  %v2818 = vmul.f32 %v2780, %v1404
  %v2819 = vmul.f32 %v2780, %v1405
  %v2820 = vmul.f32 %v2781, %v1404
  %v2821 = vmul.f32 %v2781, %v1405
  %v2822 = vmul.f32 %v2782, %v1404
  %v2823 = vmul.f32 %v2782, %v1405
  %v2824 = vmul.f32 %v2783, %v1404
  %v2825 = vmul.f32 %v2783, %v1405
  %v2826 = vmul.f32 %v2784, %v1404
  %v2827 = vmul.f32 %v2784, %v1405
  %v2828 = vmul.f32 %v2785, %v1404
  %v2829 = vmul.f32 %v2785, %v1405
  %v2830 = vmul.f32 %v2786, %v1404
  %v2831 = vmul.f32 %v2786, %v1405
  %v2832 = vmul.f32 %v2787, %v1404
  %v2833 = vmul.f32 %v2787, %v1405
  %v2834 = vmul.f32 %v2788, %v1404
  %v2835 = vmul.f32 %v2788, %v1405
  %v2836 = vmul.f32 %v2789, %v1404
  %v2837 = vmul.f32 %v2789, %v1405
  %v2838 = vadd.f32 %v2726, %v2806
  %v2839 = vadd.f32 %v2727, %v2807
  %v2840 = vadd.f32 %v2728, %v2808
  %v2841 = vadd.f32 %v2729, %v2809
  %v2842 = vadd.f32 %v2730, %v2810
  %v2843 = vadd.f32 %v2731, %v2811
  %v2844 = vadd.f32 %v2732, %v2812
  %v2845 = vadd.f32 %v2733, %v2813
  %v2846 = vadd.f32 %v2734, %v2814
  %v2847 = vadd.f32 %v2735, %v2815
  %v2848 = vadd.f32 %v2736, %v2816
  %v2849 = vadd.f32 %v2737, %v2817
  %v2850 = vadd.f32 %v2738, %v2818
  %v2851 = vadd.f32 %v2739, %v2819
  %v2852 = vadd.f32 %v2740, %v2820
  %v2853 = vadd.f32 %v2741, %v2821
  %v2854 = vadd.f32 %v2742, %v2822
  %v2855 = vadd.f32 %v2743, %v2823
  %v2856 = vadd.f32 %v2744, %v2824
  %v2857 = vadd.f32 %v2745, %v2825
  %v2858 = vadd.f32 %v2746, %v2826
  %v2859 = vadd.f32 %v2747, %v2827
  %v2860 = vadd.f32 %v2748, %v2828
  %v2861 = vadd.f32 %v2749, %v2829
  %v2862 = vadd.f32 %v2750, %v2830
  %v2863 = vadd.f32 %v2751, %v2831
  %v2864 = vadd.f32 %v2752, %v2832
  %v2865 = vadd.f32 %v2753, %v2833
  %v2866 = vadd.f32 %v2754, %v2834
  %v2867 = vadd.f32 %v2755, %v2835
  %v2868 = vadd.f32 %v2756, %v2836
  %v2869 = vadd.f32 %v2757, %v2837
  %v2872 = vrot.slane %v1406, 1
  %v2873 = vrot.slane %v1406, 2
  %v2874 = vrot.slane %v1406, 3
  %v2875 = vrot.slane %v1406, 4
  %v2876 = vrot.slane %v1406, 5
  %v2877 = vrot.slane %v1406, 6
  %v2878 = vrot.slane %v1406, 7
  %v2879 = vrot.slane %v1407, 1
  %v2880 = vrot.slane %v1407, 2
  %v2881 = vrot.slane %v1407, 3
  %v2882 = vrot.slane %v1407, 4
  %v2883 = vrot.slane %v1407, 5
  %v2884 = vrot.slane %v1407, 6
  %v2885 = vrot.slane %v1407, 7
  %v2886 = vperm.slane %v1406, 0
  %v2887 = vperm.slane %v2872, 0
  %v2888 = vperm.slane %v2873, 0
  %v2889 = vperm.slane %v2874, 0
  %v2890 = vperm.slane %v2875, 0
  %v2891 = vperm.slane %v2876, 0
  %v2892 = vperm.slane %v2877, 0
  %v2893 = vperm.slane %v2878, 0
  %v2894 = vperm.slane %v1407, 0
  %v2895 = vperm.slane %v2879, 0
  %v2896 = vperm.slane %v2880, 0
  %v2897 = vperm.slane %v2881, 0
  %v2898 = vperm.slane %v2882, 0
  %v2899 = vperm.slane %v2883, 0
  %v2900 = vperm.slane %v2884, 0
  %v2901 = vperm.slane %v2885, 0
  %v2918 = vmul.f32 %v2886, %v2450
  %v2919 = vmul.f32 %v2886, %v2451
  %v2920 = vmul.f32 %v2887, %v2450
  %v2921 = vmul.f32 %v2887, %v2451
  %v2922 = vmul.f32 %v2888, %v2450
  %v2923 = vmul.f32 %v2888, %v2451
  %v2924 = vmul.f32 %v2889, %v2450
  %v2925 = vmul.f32 %v2889, %v2451
  %v2926 = vmul.f32 %v2890, %v2450
  %v2927 = vmul.f32 %v2890, %v2451
  %v2928 = vmul.f32 %v2891, %v2450
  %v2929 = vmul.f32 %v2891, %v2451
  %v2930 = vmul.f32 %v2892, %v2450
  %v2931 = vmul.f32 %v2892, %v2451
  %v2932 = vmul.f32 %v2893, %v2450
  %v2933 = vmul.f32 %v2893, %v2451
  %v2934 = vmul.f32 %v2894, %v2450
  %v2935 = vmul.f32 %v2894, %v2451
  %v2936 = vmul.f32 %v2895, %v2450
  %v2937 = vmul.f32 %v2895, %v2451
  %v2938 = vmul.f32 %v2896, %v2450
  %v2939 = vmul.f32 %v2896, %v2451
  %v2940 = vmul.f32 %v2897, %v2450
  %v2941 = vmul.f32 %v2897, %v2451
  %v2942 = vmul.f32 %v2898, %v2450
  %v2943 = vmul.f32 %v2898, %v2451
  %v2944 = vmul.f32 %v2899, %v2450
  %v2945 = vmul.f32 %v2899, %v2451
  %v2946 = vmul.f32 %v2900, %v2450
  %v2947 = vmul.f32 %v2900, %v2451
  %v2948 = vmul.f32 %v2901, %v2450
  %v2949 = vmul.f32 %v2901, %v2451
  %v2950 = vadd.f32 %v2838, %v2918
  %v2951 = vadd.f32 %v2839, %v2919
  %v2952 = vadd.f32 %v2840, %v2920
  %v2953 = vadd.f32 %v2841, %v2921
  %v2954 = vadd.f32 %v2842, %v2922
  %v2955 = vadd.f32 %v2843, %v2923
  %v2956 = vadd.f32 %v2844, %v2924
  %v2957 = vadd.f32 %v2845, %v2925
  %v2958 = vadd.f32 %v2846, %v2926
  %v2959 = vadd.f32 %v2847, %v2927
  %v2960 = vadd.f32 %v2848, %v2928
  %v2961 = vadd.f32 %v2849, %v2929
  %v2962 = vadd.f32 %v2850, %v2930
  %v2963 = vadd.f32 %v2851, %v2931
  %v2964 = vadd.f32 %v2852, %v2932
  %v2965 = vadd.f32 %v2853, %v2933
  %v2966 = vadd.f32 %v2854, %v2934
  %v2967 = vadd.f32 %v2855, %v2935
  %v2968 = vadd.f32 %v2856, %v2936
  %v2969 = vadd.f32 %v2857, %v2937
  %v2970 = vadd.f32 %v2858, %v2938
  %v2971 = vadd.f32 %v2859, %v2939
  %v2972 = vadd.f32 %v2860, %v2940
  %v2973 = vadd.f32 %v2861, %v2941
  %v2974 = vadd.f32 %v2862, %v2942
  %v2975 = vadd.f32 %v2863, %v2943
  %v2976 = vadd.f32 %v2864, %v2944
  %v2977 = vadd.f32 %v2865, %v2945
  %v2978 = vadd.f32 %v2866, %v2946
  %v2979 = vadd.f32 %v2867, %v2947
  %v2980 = vadd.f32 %v2868, %v2948
  %v2981 = vadd.f32 %v2869, %v2949
  %v2984 = vrot.slane %v2450, 1
  %v2985 = vrot.slane %v2450, 2
  %v2986 = vrot.slane %v2450, 3
  %v2987 = vrot.slane %v2450, 4
  %v2988 = vrot.slane %v2450, 5
  %v2989 = vrot.slane %v2450, 6
  %v2990 = vrot.slane %v2450, 7
  %v2991 = vrot.slane %v2451, 1
  %v2992 = vrot.slane %v2451, 2
  %v2993 = vrot.slane %v2451, 3
  %v2994 = vrot.slane %v2451, 4
  %v2995 = vrot.slane %v2451, 5
  %v2996 = vrot.slane %v2451, 6
  %v2997 = vrot.slane %v2451, 7
  %v2998 = vperm.slane %v2450, 0
  %v2999 = vperm.slane %v2984, 0
  %v3000 = vperm.slane %v2985, 0
  %v3001 = vperm.slane %v2986, 0
  %v3002 = vperm.slane %v2987, 0
  %v3003 = vperm.slane %v2988, 0
  %v3004 = vperm.slane %v2989, 0
  %v3005 = vperm.slane %v2990, 0
  %v3006 = vperm.slane %v2451, 0
  %v3007 = vperm.slane %v2991, 0
  %v3008 = vperm.slane %v2992, 0
  %v3009 = vperm.slane %v2993, 0
  %v3010 = vperm.slane %v2994, 0
  %v3011 = vperm.slane %v2995, 0
  %v3012 = vperm.slane %v2996, 0
  %v3013 = vperm.slane %v2997, 0
  %v3030 = vmul.f32 %v2998, %v1406
  %v3031 = vmul.f32 %v2998, %v1407
  %v3032 = vmul.f32 %v2999, %v1406
  %v3033 = vmul.f32 %v2999, %v1407
  %v3034 = vmul.f32 %v3000, %v1406
  %v3035 = vmul.f32 %v3000, %v1407
  %v3036 = vmul.f32 %v3001, %v1406
  %v3037 = vmul.f32 %v3001, %v1407
  %v3038 = vmul.f32 %v3002, %v1406
  %v3039 = vmul.f32 %v3002, %v1407
  %v3040 = vmul.f32 %v3003, %v1406
  %v3041 = vmul.f32 %v3003, %v1407
  %v3042 = vmul.f32 %v3004, %v1406
  %v3043 = vmul.f32 %v3004, %v1407
  %v3044 = vmul.f32 %v3005, %v1406
  %v3045 = vmul.f32 %v3005, %v1407
  %v3046 = vmul.f32 %v3006, %v1406
  %v3047 = vmul.f32 %v3006, %v1407
  %v3048 = vmul.f32 %v3007, %v1406
  %v3049 = vmul.f32 %v3007, %v1407
  %v3050 = vmul.f32 %v3008, %v1406
  %v3051 = vmul.f32 %v3008, %v1407
  %v3052 = vmul.f32 %v3009, %v1406
  %v3053 = vmul.f32 %v3009, %v1407
  %v3054 = vmul.f32 %v3010, %v1406
  %v3055 = vmul.f32 %v3010, %v1407
  %v3056 = vmul.f32 %v3011, %v1406
  %v3057 = vmul.f32 %v3011, %v1407
  %v3058 = vmul.f32 %v3012, %v1406
  %v3059 = vmul.f32 %v3012, %v1407
  %v3060 = vmul.f32 %v3013, %v1406
  %v3061 = vmul.f32 %v3013, %v1407
  %v3062 = vadd.f32 %v2950, %v3030
  %v3063 = vadd.f32 %v2951, %v3031
  %v3064 = vadd.f32 %v2952, %v3032
  %v3065 = vadd.f32 %v2953, %v3033
  %v3066 = vadd.f32 %v2954, %v3034
  %v3067 = vadd.f32 %v2955, %v3035
  %v3068 = vadd.f32 %v2956, %v3036
  %v3069 = vadd.f32 %v2957, %v3037
  %v3070 = vadd.f32 %v2958, %v3038
  %v3071 = vadd.f32 %v2959, %v3039
  %v3072 = vadd.f32 %v2960, %v3040
  %v3073 = vadd.f32 %v2961, %v3041
  %v3074 = vadd.f32 %v2962, %v3042
  %v3075 = vadd.f32 %v2963, %v3043
  %v3076 = vadd.f32 %v2964, %v3044
  %v3077 = vadd.f32 %v2965, %v3045
  %v3078 = vadd.f32 %v2966, %v3046
  %v3079 = vadd.f32 %v2967, %v3047
  %v3080 = vadd.f32 %v2968, %v3048
  %v3081 = vadd.f32 %v2969, %v3049
  %v3082 = vadd.f32 %v2970, %v3050
  %v3083 = vadd.f32 %v2971, %v3051
  %v3084 = vadd.f32 %v2972, %v3052
  %v3085 = vadd.f32 %v2973, %v3053
  %v3086 = vadd.f32 %v2974, %v3054
  %v3087 = vadd.f32 %v2975, %v3055
  %v3088 = vadd.f32 %v2976, %v3056
  %v3089 = vadd.f32 %v2977, %v3057
  %v3090 = vadd.f32 %v2978, %v3058
  %v3091 = vadd.f32 %v2979, %v3059
  %v3092 = vadd.f32 %v2980, %v3060
  %v3093 = vadd.f32 %v2981, %v3061
  %v3096 = vrot.slane %v1408, 1
  %v3097 = vrot.slane %v1408, 2
  %v3098 = vrot.slane %v1408, 3
  %v3099 = vrot.slane %v1408, 4
  %v3100 = vrot.slane %v1408, 5
  %v3101 = vrot.slane %v1408, 6
  %v3102 = vrot.slane %v1408, 7
  %v3103 = vrot.slane %v1409, 1
  %v3104 = vrot.slane %v1409, 2
  %v3105 = vrot.slane %v1409, 3
  %v3106 = vrot.slane %v1409, 4
  %v3107 = vrot.slane %v1409, 5
  %v3108 = vrot.slane %v1409, 6
  %v3109 = vrot.slane %v1409, 7
  %v3110 = vperm.slane %v1408, 0
  %v3111 = vperm.slane %v3096, 0
  %v3112 = vperm.slane %v3097, 0
  %v3113 = vperm.slane %v3098, 0
  %v3114 = vperm.slane %v3099, 0
  %v3115 = vperm.slane %v3100, 0
  %v3116 = vperm.slane %v3101, 0
  %v3117 = vperm.slane %v3102, 0
  %v3118 = vperm.slane %v1409, 0
  %v3119 = vperm.slane %v3103, 0
  %v3120 = vperm.slane %v3104, 0
  %v3121 = vperm.slane %v3105, 0
  %v3122 = vperm.slane %v3106, 0
  %v3123 = vperm.slane %v3107, 0
  %v3124 = vperm.slane %v3108, 0
  %v3125 = vperm.slane %v3109, 0
  %v3142 = vmul.f32 %v3110, %v2452
  %v3143 = vmul.f32 %v3110, %v2453
  %v3144 = vmul.f32 %v3111, %v2452
  %v3145 = vmul.f32 %v3111, %v2453
  %v3146 = vmul.f32 %v3112, %v2452
  %v3147 = vmul.f32 %v3112, %v2453
  %v3148 = vmul.f32 %v3113, %v2452
  %v3149 = vmul.f32 %v3113, %v2453
  %v3150 = vmul.f32 %v3114, %v2452
  %v3151 = vmul.f32 %v3114, %v2453
  %v3152 = vmul.f32 %v3115, %v2452
  %v3153 = vmul.f32 %v3115, %v2453
  %v3154 = vmul.f32 %v3116, %v2452
  %v3155 = vmul.f32 %v3116, %v2453
  %v3156 = vmul.f32 %v3117, %v2452
  %v3157 = vmul.f32 %v3117, %v2453
  %v3158 = vmul.f32 %v3118, %v2452
  %v3159 = vmul.f32 %v3118, %v2453
  %v3160 = vmul.f32 %v3119, %v2452
  %v3161 = vmul.f32 %v3119, %v2453
  %v3162 = vmul.f32 %v3120, %v2452
  %v3163 = vmul.f32 %v3120, %v2453
  %v3164 = vmul.f32 %v3121, %v2452
  %v3165 = vmul.f32 %v3121, %v2453
  %v3166 = vmul.f32 %v3122, %v2452
  %v3167 = vmul.f32 %v3122, %v2453
  %v3168 = vmul.f32 %v3123, %v2452
  %v3169 = vmul.f32 %v3123, %v2453
  %v3170 = vmul.f32 %v3124, %v2452
  %v3171 = vmul.f32 %v3124, %v2453
  %v3172 = vmul.f32 %v3125, %v2452
  %v3173 = vmul.f32 %v3125, %v2453
  %v3174 = vadd.f32 %v3062, %v3142
  %v3175 = vadd.f32 %v3063, %v3143
  %v3176 = vadd.f32 %v3064, %v3144
  %v3177 = vadd.f32 %v3065, %v3145
  %v3178 = vadd.f32 %v3066, %v3146
  %v3179 = vadd.f32 %v3067, %v3147
  %v3180 = vadd.f32 %v3068, %v3148
  %v3181 = vadd.f32 %v3069, %v3149
  %v3182 = vadd.f32 %v3070, %v3150
  %v3183 = vadd.f32 %v3071, %v3151
  %v3184 = vadd.f32 %v3072, %v3152
  %v3185 = vadd.f32 %v3073, %v3153
  %v3186 = vadd.f32 %v3074, %v3154
  %v3187 = vadd.f32 %v3075, %v3155
  %v3188 = vadd.f32 %v3076, %v3156
  %v3189 = vadd.f32 %v3077, %v3157
  %v3190 = vadd.f32 %v3078, %v3158
  %v3191 = vadd.f32 %v3079, %v3159
  %v3192 = vadd.f32 %v3080, %v3160
  %v3193 = vadd.f32 %v3081, %v3161
  %v3194 = vadd.f32 %v3082, %v3162
  %v3195 = vadd.f32 %v3083, %v3163
  %v3196 = vadd.f32 %v3084, %v3164
  %v3197 = vadd.f32 %v3085, %v3165
  %v3198 = vadd.f32 %v3086, %v3166
  %v3199 = vadd.f32 %v3087, %v3167
  %v3200 = vadd.f32 %v3088, %v3168
  %v3201 = vadd.f32 %v3089, %v3169
  %v3202 = vadd.f32 %v3090, %v3170
  %v3203 = vadd.f32 %v3091, %v3171
  %v3204 = vadd.f32 %v3092, %v3172
  %v3205 = vadd.f32 %v3093, %v3173
  %v3208 = vrot.slane %v2452, 1
  %v3209 = vrot.slane %v2452, 2
  %v3210 = vrot.slane %v2452, 3
  %v3211 = vrot.slane %v2452, 4
  %v3212 = vrot.slane %v2452, 5
  %v3213 = vrot.slane %v2452, 6
  %v3214 = vrot.slane %v2452, 7
  %v3215 = vrot.slane %v2453, 1
  %v3216 = vrot.slane %v2453, 2
  %v3217 = vrot.slane %v2453, 3
  %v3218 = vrot.slane %v2453, 4
  %v3219 = vrot.slane %v2453, 5
  %v3220 = vrot.slane %v2453, 6
  %v3221 = vrot.slane %v2453, 7
  %v3222 = vperm.slane %v2452, 0
  %v3223 = vperm.slane %v3208, 0
  %v3224 = vperm.slane %v3209, 0
  %v3225 = vperm.slane %v3210, 0
  %v3226 = vperm.slane %v3211, 0
  %v3227 = vperm.slane %v3212, 0
  %v3228 = vperm.slane %v3213, 0
  %v3229 = vperm.slane %v3214, 0
  %v3230 = vperm.slane %v2453, 0
  %v3231 = vperm.slane %v3215, 0
  %v3232 = vperm.slane %v3216, 0
  %v3233 = vperm.slane %v3217, 0
  %v3234 = vperm.slane %v3218, 0
  %v3235 = vperm.slane %v3219, 0
  %v3236 = vperm.slane %v3220, 0
  %v3237 = vperm.slane %v3221, 0
  %v3254 = vmul.f32 %v3222, %v1408
  %v3255 = vmul.f32 %v3222, %v1409
  %v3256 = vmul.f32 %v3223, %v1408
  %v3257 = vmul.f32 %v3223, %v1409
  %v3258 = vmul.f32 %v3224, %v1408
  %v3259 = vmul.f32 %v3224, %v1409
  %v3260 = vmul.f32 %v3225, %v1408
  %v3261 = vmul.f32 %v3225, %v1409
  %v3262 = vmul.f32 %v3226, %v1408
  %v3263 = vmul.f32 %v3226, %v1409
  %v3264 = vmul.f32 %v3227, %v1408
  %v3265 = vmul.f32 %v3227, %v1409
  %v3266 = vmul.f32 %v3228, %v1408
  %v3267 = vmul.f32 %v3228, %v1409
  %v3268 = vmul.f32 %v3229, %v1408
  %v3269 = vmul.f32 %v3229, %v1409
  %v3270 = vmul.f32 %v3230, %v1408
  %v3271 = vmul.f32 %v3230, %v1409
  %v3272 = vmul.f32 %v3231, %v1408
  %v3273 = vmul.f32 %v3231, %v1409
  %v3274 = vmul.f32 %v3232, %v1408
  %v3275 = vmul.f32 %v3232, %v1409
  %v3276 = vmul.f32 %v3233, %v1408
  %v3277 = vmul.f32 %v3233, %v1409
  %v3278 = vmul.f32 %v3234, %v1408
  %v3279 = vmul.f32 %v3234, %v1409
  %v3280 = vmul.f32 %v3235, %v1408
  %v3281 = vmul.f32 %v3235, %v1409
  %v3282 = vmul.f32 %v3236, %v1408
  %v3283 = vmul.f32 %v3236, %v1409
  %v3284 = vmul.f32 %v3237, %v1408
  %v3285 = vmul.f32 %v3237, %v1409
  %v3286 = vadd.f32 %v3174, %v3254
  %v3287 = vadd.f32 %v3175, %v3255
  %v3288 = vadd.f32 %v3176, %v3256
  %v3289 = vadd.f32 %v3177, %v3257
  %v3290 = vadd.f32 %v3178, %v3258
  %v3291 = vadd.f32 %v3179, %v3259
  %v3292 = vadd.f32 %v3180, %v3260
  %v3293 = vadd.f32 %v3181, %v3261
  %v3294 = vadd.f32 %v3182, %v3262
  %v3295 = vadd.f32 %v3183, %v3263
  %v3296 = vadd.f32 %v3184, %v3264
  %v3297 = vadd.f32 %v3185, %v3265
  %v3298 = vadd.f32 %v3186, %v3266
  %v3299 = vadd.f32 %v3187, %v3267
  %v3300 = vadd.f32 %v3188, %v3268
  %v3301 = vadd.f32 %v3189, %v3269
  %v3302 = vadd.f32 %v3190, %v3270
  %v3303 = vadd.f32 %v3191, %v3271
  %v3304 = vadd.f32 %v3192, %v3272
  %v3305 = vadd.f32 %v3193, %v3273
  %v3306 = vadd.f32 %v3194, %v3274
  %v3307 = vadd.f32 %v3195, %v3275
  %v3308 = vadd.f32 %v3196, %v3276
  %v3309 = vadd.f32 %v3197, %v3277
  %v3310 = vadd.f32 %v3198, %v3278
  %v3311 = vadd.f32 %v3199, %v3279
  %v3312 = vadd.f32 %v3200, %v3280
  %v3313 = vadd.f32 %v3201, %v3281
  %v3314 = vadd.f32 %v3202, %v3282
  %v3315 = vadd.f32 %v3203, %v3283
  %v3316 = vadd.f32 %v3204, %v3284
  %v3317 = vadd.f32 %v3205, %v3285
  %v3318 = vand.u32 2147483647, %v3286
  %v3319 = vand.u32 2147483647, %v3287
  %v3320 = vand.u32 2147483647, %v3288
  %v3321 = vand.u32 2147483647, %v3289
  %v3322 = vand.u32 2147483647, %v3290
  %v3323 = vand.u32 2147483647, %v3291
  %v3324 = vand.u32 2147483647, %v3292
  %v3325 = vand.u32 2147483647, %v3293
  %v3326 = vand.u32 2147483647, %v3294
  %v3327 = vand.u32 2147483647, %v3295
  %v3328 = vand.u32 2147483647, %v3296
  %v3329 = vand.u32 2147483647, %v3297
  %v3330 = vand.u32 2147483647, %v3298
  %v3331 = vand.u32 2147483647, %v3299
  %v3332 = vand.u32 2147483647, %v3300
  %v3333 = vand.u32 2147483647, %v3301
  %v3334 = vand.u32 2147483647, %v3302
  %v3335 = vand.u32 2147483647, %v3303
  %v3336 = vand.u32 2147483647, %v3304
  %v3337 = vand.u32 2147483647, %v3305
  %v3338 = vand.u32 2147483647, %v3306
  %v3339 = vand.u32 2147483647, %v3307
  %v3340 = vand.u32 2147483647, %v3308
  %v3341 = vand.u32 2147483647, %v3309
  %v3342 = vand.u32 2147483647, %v3310
  %v3343 = vand.u32 2147483647, %v3311
  %v3344 = vand.u32 2147483647, %v3312
  %v3345 = vand.u32 2147483647, %v3313
  %v3346 = vand.u32 2147483647, %v3314
  %v3347 = vand.u32 2147483647, %v3315
  %v3348 = vand.u32 2147483647, %v3316
  %v3349 = vand.u32 2147483647, %v3317
  %v3350 = vrsqrt.pop %v3318
  %v3351 = vmul.f32 %v3350, %v3318
  %v3352 = vmul.f32 %v3351, %v3350
  %v3353 = vmul.f32 0.5, %v3352
  %v3354 = vsub.f32 1.5, %v3353
  %v3355 = vmul.f32 %v3350, %v3354
  %v3356 = vmul.f32 %v3318, %v3355
  %vm3357 = vcmp.eq.f32.partialorder %v3318, inf
  %v3358 = vsel %vm3357, %v3318, %v3356
  %vm3359 = vcmp.eq.f32.partialorder %v3318, 0.0
  %v3360 = vand.u32 %v3318, 2147483648
  %v3361 = vsel %vm3359, %v3360, %v3358
  %v3362 = vrsqrt.pop %v3319
  %v3363 = vmul.f32 %v3362, %v3319
  %v3364 = vmul.f32 %v3363, %v3362
  %v3365 = vmul.f32 0.5, %v3364
  %v3366 = vsub.f32 1.5, %v3365
  %v3367 = vmul.f32 %v3362, %v3366
  %v3368 = vmul.f32 %v3319, %v3367
  %vm3369 = vcmp.eq.f32.partialorder %v3319, inf
  %v3370 = vsel %vm3369, %v3319, %v3368
  %vm3371 = vcmp.eq.f32.partialorder %v3319, 0.0
  %v3372 = vand.u32 %v3319, 2147483648
  %v3373 = vsel %vm3371, %v3372, %v3370
  %v3374 = vrsqrt.pop %v3320
  %v3375 = vmul.f32 %v3374, %v3320
  %v3376 = vmul.f32 %v3375, %v3374
  %v3377 = vmul.f32 0.5, %v3376
  %v3378 = vsub.f32 1.5, %v3377
  %v3379 = vmul.f32 %v3374, %v3378
  %v3380 = vmul.f32 %v3320, %v3379
  %vm3381 = vcmp.eq.f32.partialorder %v3320, inf
  %v3382 = vsel %vm3381, %v3320, %v3380
  %vm3383 = vcmp.eq.f32.partialorder %v3320, 0.0
  %v3384 = vand.u32 %v3320, 2147483648
  %v3385 = vsel %vm3383, %v3384, %v3382
  %v3386 = vrsqrt.pop %v3321
  %v3387 = vmul.f32 %v3386, %v3321
  %v3388 = vmul.f32 %v3387, %v3386
  %v3389 = vmul.f32 0.5, %v3388
  %v3390 = vsub.f32 1.5, %v3389
  %v3391 = vmul.f32 %v3386, %v3390
  %v3392 = vmul.f32 %v3321, %v3391
  %vm3393 = vcmp.eq.f32.partialorder %v3321, inf
  %v3394 = vsel %vm3393, %v3321, %v3392
  %vm3395 = vcmp.eq.f32.partialorder %v3321, 0.0
  %v3396 = vand.u32 %v3321, 2147483648
  %v3397 = vsel %vm3395, %v3396, %v3394
  %v3398 = vrsqrt.pop %v3322
  %v3399 = vmul.f32 %v3398, %v3322
  %v3400 = vmul.f32 %v3399, %v3398
  %v3401 = vmul.f32 0.5, %v3400
  %v3402 = vsub.f32 1.5, %v3401
  %v3403 = vmul.f32 %v3398, %v3402
  %v3404 = vmul.f32 %v3322, %v3403
  %vm3405 = vcmp.eq.f32.partialorder %v3322, inf
  %v3406 = vsel %vm3405, %v3322, %v3404
  %vm3407 = vcmp.eq.f32.partialorder %v3322, 0.0
  %v3408 = vand.u32 %v3322, 2147483648
  %v3409 = vsel %vm3407, %v3408, %v3406
  %v3410 = vrsqrt.pop %v3323
  %v3411 = vmul.f32 %v3410, %v3323
  %v3412 = vmul.f32 %v3411, %v3410
  %v3413 = vmul.f32 0.5, %v3412
  %v3414 = vsub.f32 1.5, %v3413
  %v3415 = vmul.f32 %v3410, %v3414
  %v3416 = vmul.f32 %v3323, %v3415
  %vm3417 = vcmp.eq.f32.partialorder %v3323, inf
  %v3418 = vsel %vm3417, %v3323, %v3416
  %vm3419 = vcmp.eq.f32.partialorder %v3323, 0.0
  %v3420 = vand.u32 %v3323, 2147483648
  %v3421 = vsel %vm3419, %v3420, %v3418
  %v3422 = vrsqrt.pop %v3324
  %v3423 = vmul.f32 %v3422, %v3324
  %v3424 = vmul.f32 %v3423, %v3422
  %v3425 = vmul.f32 0.5, %v3424
  %v3426 = vsub.f32 1.5, %v3425
  %v3427 = vmul.f32 %v3422, %v3426
  %v3428 = vmul.f32 %v3324, %v3427
  %vm3429 = vcmp.eq.f32.partialorder %v3324, inf
  %v3430 = vsel %vm3429, %v3324, %v3428
  %vm3431 = vcmp.eq.f32.partialorder %v3324, 0.0
  %v3432 = vand.u32 %v3324, 2147483648
  %v3433 = vsel %vm3431, %v3432, %v3430
  %v3434 = vrsqrt.pop %v3325
  %v3435 = vmul.f32 %v3434, %v3325
  %v3436 = vmul.f32 %v3435, %v3434
  %v3437 = vmul.f32 0.5, %v3436
  %v3438 = vsub.f32 1.5, %v3437
  %v3439 = vmul.f32 %v3434, %v3438
  %v3440 = vmul.f32 %v3325, %v3439
  %vm3441 = vcmp.eq.f32.partialorder %v3325, inf
  %v3442 = vsel %vm3441, %v3325, %v3440
  %vm3443 = vcmp.eq.f32.partialorder %v3325, 0.0
  %v3444 = vand.u32 %v3325, 2147483648
  %v3445 = vsel %vm3443, %v3444, %v3442
  %v3446 = vrsqrt.pop %v3326
  %v3447 = vmul.f32 %v3446, %v3326
  %v3448 = vmul.f32 %v3447, %v3446
  %v3449 = vmul.f32 0.5, %v3448
  %v3450 = vsub.f32 1.5, %v3449
  %v3451 = vmul.f32 %v3446, %v3450
  %v3452 = vmul.f32 %v3326, %v3451
  %vm3453 = vcmp.eq.f32.partialorder %v3326, inf
  %v3454 = vsel %vm3453, %v3326, %v3452
  %vm3455 = vcmp.eq.f32.partialorder %v3326, 0.0
  %v3456 = vand.u32 %v3326, 2147483648
  %v3457 = vsel %vm3455, %v3456, %v3454
  %v3458 = vrsqrt.pop %v3327
  %v3459 = vmul.f32 %v3458, %v3327
  %v3460 = vmul.f32 %v3459, %v3458
  %v3461 = vmul.f32 0.5, %v3460
  %v3462 = vsub.f32 1.5, %v3461
  %v3463 = vmul.f32 %v3458, %v3462
  %v3464 = vmul.f32 %v3327, %v3463
  %vm3465 = vcmp.eq.f32.partialorder %v3327, inf
  %v3466 = vsel %vm3465, %v3327, %v3464
  %vm3467 = vcmp.eq.f32.partialorder %v3327, 0.0
  %v3468 = vand.u32 %v3327, 2147483648
  %v3469 = vsel %vm3467, %v3468, %v3466
  %v3470 = vrsqrt.pop %v3328
  %v3471 = vmul.f32 %v3470, %v3328
  %v3472 = vmul.f32 %v3471, %v3470
  %v3473 = vmul.f32 0.5, %v3472
  %v3474 = vsub.f32 1.5, %v3473
  %v3475 = vmul.f32 %v3470, %v3474
  %v3476 = vmul.f32 %v3328, %v3475
  %vm3477 = vcmp.eq.f32.partialorder %v3328, inf
  %v3478 = vsel %vm3477, %v3328, %v3476
  %vm3479 = vcmp.eq.f32.partialorder %v3328, 0.0
  %v3480 = vand.u32 %v3328, 2147483648
  %v3481 = vsel %vm3479, %v3480, %v3478
  %v3482 = vrsqrt.pop %v3329
  %v3483 = vmul.f32 %v3482, %v3329
  %v3484 = vmul.f32 %v3483, %v3482
  %v3485 = vmul.f32 0.5, %v3484
  %v3486 = vsub.f32 1.5, %v3485
  %v3487 = vmul.f32 %v3482, %v3486
  %v3488 = vmul.f32 %v3329, %v3487
  %vm3489 = vcmp.eq.f32.partialorder %v3329, inf
  %v3490 = vsel %vm3489, %v3329, %v3488
  %vm3491 = vcmp.eq.f32.partialorder %v3329, 0.0
  %v3492 = vand.u32 %v3329, 2147483648
  %v3493 = vsel %vm3491, %v3492, %v3490
  %v3494 = vrsqrt.pop %v3330
  %v3495 = vmul.f32 %v3494, %v3330
  %v3496 = vmul.f32 %v3495, %v3494
  %v3497 = vmul.f32 0.5, %v3496
  %v3498 = vsub.f32 1.5, %v3497
  %v3499 = vmul.f32 %v3494, %v3498
  %v3500 = vmul.f32 %v3330, %v3499
  %vm3501 = vcmp.eq.f32.partialorder %v3330, inf
  %v3502 = vsel %vm3501, %v3330, %v3500
  %vm3503 = vcmp.eq.f32.partialorder %v3330, 0.0
  %v3504 = vand.u32 %v3330, 2147483648
  %v3505 = vsel %vm3503, %v3504, %v3502
  %v3506 = vrsqrt.pop %v3331
  %v3507 = vmul.f32 %v3506, %v3331
  %v3508 = vmul.f32 %v3507, %v3506
  %v3509 = vmul.f32 0.5, %v3508
  %v3510 = vsub.f32 1.5, %v3509
  %v3511 = vmul.f32 %v3506, %v3510
  %v3512 = vmul.f32 %v3331, %v3511
  %vm3513 = vcmp.eq.f32.partialorder %v3331, inf
  %v3514 = vsel %vm3513, %v3331, %v3512
  %vm3515 = vcmp.eq.f32.partialorder %v3331, 0.0
  %v3516 = vand.u32 %v3331, 2147483648
  %v3517 = vsel %vm3515, %v3516, %v3514
  %v3518 = vrsqrt.pop %v3332
  %v3519 = vmul.f32 %v3518, %v3332
  %v3520 = vmul.f32 %v3519, %v3518
  %v3521 = vmul.f32 0.5, %v3520
  %v3522 = vsub.f32 1.5, %v3521
  %v3523 = vmul.f32 %v3518, %v3522
  %v3524 = vmul.f32 %v3332, %v3523
  %vm3525 = vcmp.eq.f32.partialorder %v3332, inf
  %v3526 = vsel %vm3525, %v3332, %v3524
  %vm3527 = vcmp.eq.f32.partialorder %v3332, 0.0
  %v3528 = vand.u32 %v3332, 2147483648
  %v3529 = vsel %vm3527, %v3528, %v3526
  %v3530 = vrsqrt.pop %v3333
  %v3531 = vmul.f32 %v3530, %v3333
  %v3532 = vmul.f32 %v3531, %v3530
  %v3533 = vmul.f32 0.5, %v3532
  %v3534 = vsub.f32 1.5, %v3533
  %v3535 = vmul.f32 %v3530, %v3534
  %v3536 = vmul.f32 %v3333, %v3535
  %vm3537 = vcmp.eq.f32.partialorder %v3333, inf
  %v3538 = vsel %vm3537, %v3333, %v3536
  %vm3539 = vcmp.eq.f32.partialorder %v3333, 0.0
  %v3540 = vand.u32 %v3333, 2147483648
  %v3541 = vsel %vm3539, %v3540, %v3538
  %v3542 = vrsqrt.pop %v3334
  %v3543 = vmul.f32 %v3542, %v3334
  %v3544 = vmul.f32 %v3543, %v3542
  %v3545 = vmul.f32 0.5, %v3544
  %v3546 = vsub.f32 1.5, %v3545
  %v3547 = vmul.f32 %v3542, %v3546
  %v3548 = vmul.f32 %v3334, %v3547
  %vm3549 = vcmp.eq.f32.partialorder %v3334, inf
  %v3550 = vsel %vm3549, %v3334, %v3548
  %vm3551 = vcmp.eq.f32.partialorder %v3334, 0.0
  %v3552 = vand.u32 %v3334, 2147483648
  %v3553 = vsel %vm3551, %v3552, %v3550
  %v3554 = vrsqrt.pop %v3335
  %v3555 = vmul.f32 %v3554, %v3335
  %v3556 = vmul.f32 %v3555, %v3554
  %v3557 = vmul.f32 0.5, %v3556
  %v3558 = vsub.f32 1.5, %v3557
  %v3559 = vmul.f32 %v3554, %v3558
  %v3560 = vmul.f32 %v3335, %v3559
  %vm3561 = vcmp.eq.f32.partialorder %v3335, inf
  %v3562 = vsel %vm3561, %v3335, %v3560
  %vm3563 = vcmp.eq.f32.partialorder %v3335, 0.0
  %v3564 = vand.u32 %v3335, 2147483648
  %v3565 = vsel %vm3563, %v3564, %v3562
  %v3566 = vrsqrt.pop %v3336
  %v3567 = vmul.f32 %v3566, %v3336
  %v3568 = vmul.f32 %v3567, %v3566
  %v3569 = vmul.f32 0.5, %v3568
  %v3570 = vsub.f32 1.5, %v3569
  %v3571 = vmul.f32 %v3566, %v3570
  %v3572 = vmul.f32 %v3336, %v3571
  %vm3573 = vcmp.eq.f32.partialorder %v3336, inf
  %v3574 = vsel %vm3573, %v3336, %v3572
  %vm3575 = vcmp.eq.f32.partialorder %v3336, 0.0
  %v3576 = vand.u32 %v3336, 2147483648
  %v3577 = vsel %vm3575, %v3576, %v3574
  %v3578 = vrsqrt.pop %v3337
  %v3579 = vmul.f32 %v3578, %v3337
  %v3580 = vmul.f32 %v3579, %v3578
  %v3581 = vmul.f32 0.5, %v3580
  %v3582 = vsub.f32 1.5, %v3581
  %v3583 = vmul.f32 %v3578, %v3582
  %v3584 = vmul.f32 %v3337, %v3583
  %vm3585 = vcmp.eq.f32.partialorder %v3337, inf
  %v3586 = vsel %vm3585, %v3337, %v3584
  %vm3587 = vcmp.eq.f32.partialorder %v3337, 0.0
  %v3588 = vand.u32 %v3337, 2147483648
  %v3589 = vsel %vm3587, %v3588, %v3586
  %v3590 = vrsqrt.pop %v3338
  %v3591 = vmul.f32 %v3590, %v3338
  %v3592 = vmul.f32 %v3591, %v3590
  %v3593 = vmul.f32 0.5, %v3592
  %v3594 = vsub.f32 1.5, %v3593
  %v3595 = vmul.f32 %v3590, %v3594
  %v3596 = vmul.f32 %v3338, %v3595
  %vm3597 = vcmp.eq.f32.partialorder %v3338, inf
  %v3598 = vsel %vm3597, %v3338, %v3596
  %vm3599 = vcmp.eq.f32.partialorder %v3338, 0.0
  %v3600 = vand.u32 %v3338, 2147483648
  %v3601 = vsel %vm3599, %v3600, %v3598
  %v3602 = vrsqrt.pop %v3339
  %v3603 = vmul.f32 %v3602, %v3339
  %v3604 = vmul.f32 %v3603, %v3602
  %v3605 = vmul.f32 0.5, %v3604
  %v3606 = vsub.f32 1.5, %v3605
  %v3607 = vmul.f32 %v3602, %v3606
  %v3608 = vmul.f32 %v3339, %v3607
  %vm3609 = vcmp.eq.f32.partialorder %v3339, inf
  %v3610 = vsel %vm3609, %v3339, %v3608
  %vm3611 = vcmp.eq.f32.partialorder %v3339, 0.0
  %v3612 = vand.u32 %v3339, 2147483648
  %v3613 = vsel %vm3611, %v3612, %v3610
  %v3614 = vrsqrt.pop %v3340
  %v3615 = vmul.f32 %v3614, %v3340
  %v3616 = vmul.f32 %v3615, %v3614
  %v3617 = vmul.f32 0.5, %v3616
  %v3618 = vsub.f32 1.5, %v3617
  %v3619 = vmul.f32 %v3614, %v3618
  %v3620 = vmul.f32 %v3340, %v3619
  %vm3621 = vcmp.eq.f32.partialorder %v3340, inf
  %v3622 = vsel %vm3621, %v3340, %v3620
  %vm3623 = vcmp.eq.f32.partialorder %v3340, 0.0
  %v3624 = vand.u32 %v3340, 2147483648
  %v3625 = vsel %vm3623, %v3624, %v3622
  %v3626 = vrsqrt.pop %v3341
  %v3627 = vmul.f32 %v3626, %v3341
  %v3628 = vmul.f32 %v3627, %v3626
  %v3629 = vmul.f32 0.5, %v3628
  %v3630 = vsub.f32 1.5, %v3629
  %v3631 = vmul.f32 %v3626, %v3630
  %v3632 = vmul.f32 %v3341, %v3631
  %vm3633 = vcmp.eq.f32.partialorder %v3341, inf
  %v3634 = vsel %vm3633, %v3341, %v3632
  %vm3635 = vcmp.eq.f32.partialorder %v3341, 0.0
  %v3636 = vand.u32 %v3341, 2147483648
  %v3637 = vsel %vm3635, %v3636, %v3634
  %v3638 = vrsqrt.pop %v3342
  %v3639 = vmul.f32 %v3638, %v3342
  %v3640 = vmul.f32 %v3639, %v3638
  %v3641 = vmul.f32 0.5, %v3640
  %v3642 = vsub.f32 1.5, %v3641
  %v3643 = vmul.f32 %v3638, %v3642
  %v3644 = vmul.f32 %v3342, %v3643
  %vm3645 = vcmp.eq.f32.partialorder %v3342, inf
  %v3646 = vsel %vm3645, %v3342, %v3644
  %vm3647 = vcmp.eq.f32.partialorder %v3342, 0.0
  %v3648 = vand.u32 %v3342, 2147483648
  %v3649 = vsel %vm3647, %v3648, %v3646
  %v3650 = vrsqrt.pop %v3343
  %v3651 = vmul.f32 %v3650, %v3343
  %v3652 = vmul.f32 %v3651, %v3650
  %v3653 = vmul.f32 0.5, %v3652
  %v3654 = vsub.f32 1.5, %v3653
  %v3655 = vmul.f32 %v3650, %v3654
  %v3656 = vmul.f32 %v3343, %v3655
  %vm3657 = vcmp.eq.f32.partialorder %v3343, inf
  %v3658 = vsel %vm3657, %v3343, %v3656
  %vm3659 = vcmp.eq.f32.partialorder %v3343, 0.0
  %v3660 = vand.u32 %v3343, 2147483648
  %v3661 = vsel %vm3659, %v3660, %v3658
  %v3662 = vrsqrt.pop %v3344
  %v3663 = vmul.f32 %v3662, %v3344
  %v3664 = vmul.f32 %v3663, %v3662
  %v3665 = vmul.f32 0.5, %v3664
  %v3666 = vsub.f32 1.5, %v3665
  %v3667 = vmul.f32 %v3662, %v3666
  %v3668 = vmul.f32 %v3344, %v3667
  %vm3669 = vcmp.eq.f32.partialorder %v3344, inf
  %v3670 = vsel %vm3669, %v3344, %v3668
  %vm3671 = vcmp.eq.f32.partialorder %v3344, 0.0
  %v3672 = vand.u32 %v3344, 2147483648
  %v3673 = vsel %vm3671, %v3672, %v3670
  %v3674 = vrsqrt.pop %v3345
  %v3675 = vmul.f32 %v3674, %v3345
  %v3676 = vmul.f32 %v3675, %v3674
  %v3677 = vmul.f32 0.5, %v3676
  %v3678 = vsub.f32 1.5, %v3677
  %v3679 = vmul.f32 %v3674, %v3678
  %v3680 = vmul.f32 %v3345, %v3679
  %vm3681 = vcmp.eq.f32.partialorder %v3345, inf
  %v3682 = vsel %vm3681, %v3345, %v3680
  %vm3683 = vcmp.eq.f32.partialorder %v3345, 0.0
  %v3684 = vand.u32 %v3345, 2147483648
  %v3685 = vsel %vm3683, %v3684, %v3682
  %v3686 = vrsqrt.pop %v3346
  %v3687 = vmul.f32 %v3686, %v3346
  %v3688 = vmul.f32 %v3687, %v3686
  %v3689 = vmul.f32 0.5, %v3688
  %v3690 = vsub.f32 1.5, %v3689
  %v3691 = vmul.f32 %v3686, %v3690
  %v3692 = vmul.f32 %v3346, %v3691
  %vm3693 = vcmp.eq.f32.partialorder %v3346, inf
  %v3694 = vsel %vm3693, %v3346, %v3692
  %vm3695 = vcmp.eq.f32.partialorder %v3346, 0.0
  %v3696 = vand.u32 %v3346, 2147483648
  %v3697 = vsel %vm3695, %v3696, %v3694
  %v3698 = vrsqrt.pop %v3347
  %v3699 = vmul.f32 %v3698, %v3347
  %v3700 = vmul.f32 %v3699, %v3698
  %v3701 = vmul.f32 0.5, %v3700
  %v3702 = vsub.f32 1.5, %v3701
  %v3703 = vmul.f32 %v3698, %v3702
  %v3704 = vmul.f32 %v3347, %v3703
  %vm3705 = vcmp.eq.f32.partialorder %v3347, inf
  %v3706 = vsel %vm3705, %v3347, %v3704
  %vm3707 = vcmp.eq.f32.partialorder %v3347, 0.0
  %v3708 = vand.u32 %v3347, 2147483648
  %v3709 = vsel %vm3707, %v3708, %v3706
  %v3710 = vrsqrt.pop %v3348
  %v3711 = vmul.f32 %v3710, %v3348
  %v3712 = vmul.f32 %v3711, %v3710
  %v3713 = vmul.f32 0.5, %v3712
  %v3714 = vsub.f32 1.5, %v3713
  %v3715 = vmul.f32 %v3710, %v3714
  %v3716 = vmul.f32 %v3348, %v3715
  %vm3717 = vcmp.eq.f32.partialorder %v3348, inf
  %v3718 = vsel %vm3717, %v3348, %v3716
  %vm3719 = vcmp.eq.f32.partialorder %v3348, 0.0
  %v3720 = vand.u32 %v3348, 2147483648
  %v3721 = vsel %vm3719, %v3720, %v3718
  %v3722 = vrsqrt.pop %v3349
  %v3723 = vmul.f32 %v3722, %v3349
  %v3724 = vmul.f32 %v3723, %v3722
  %v3725 = vmul.f32 0.5, %v3724
  %v3726 = vsub.f32 1.5, %v3725
  %v3727 = vmul.f32 %v3722, %v3726
  %v3728 = vmul.f32 %v3349, %v3727
  %vm3729 = vcmp.eq.f32.partialorder %v3349, inf
  %v3730 = vsel %vm3729, %v3349, %v3728
  %vm3731 = vcmp.eq.f32.partialorder %v3349, 0.0
  %v3732 = vand.u32 %v3349, 2147483648
  %v3733 = vsel %vm3731, %v3732, %v3730
  %vm3734 = vcmp.lt.f32.partialorder %v3286, 0.0
  %vm3735 = vcmp.lt.f32.partialorder %v3287, 0.0
  %vm3736 = vcmp.lt.f32.partialorder %v3288, 0.0
  %vm3737 = vcmp.lt.f32.partialorder %v3289, 0.0
  %vm3738 = vcmp.lt.f32.partialorder %v3290, 0.0
  %vm3739 = vcmp.lt.f32.partialorder %v3291, 0.0
  %vm3740 = vcmp.lt.f32.partialorder %v3292, 0.0
  %vm3741 = vcmp.lt.f32.partialorder %v3293, 0.0
  %vm3742 = vcmp.lt.f32.partialorder %v3294, 0.0
  %vm3743 = vcmp.lt.f32.partialorder %v3295, 0.0
  %vm3744 = vcmp.lt.f32.partialorder %v3296, 0.0
  %vm3745 = vcmp.lt.f32.partialorder %v3297, 0.0
  %vm3746 = vcmp.lt.f32.partialorder %v3298, 0.0
  %vm3747 = vcmp.lt.f32.partialorder %v3299, 0.0
  %vm3748 = vcmp.lt.f32.partialorder %v3300, 0.0
  %vm3749 = vcmp.lt.f32.partialorder %v3301, 0.0
  %vm3750 = vcmp.lt.f32.partialorder %v3302, 0.0
  %vm3751 = vcmp.lt.f32.partialorder %v3303, 0.0
  %vm3752 = vcmp.lt.f32.partialorder %v3304, 0.0
  %vm3753 = vcmp.lt.f32.partialorder %v3305, 0.0
  %vm3754 = vcmp.lt.f32.partialorder %v3306, 0.0
  %vm3755 = vcmp.lt.f32.partialorder %v3307, 0.0
  %vm3756 = vcmp.lt.f32.partialorder %v3308, 0.0
  %vm3757 = vcmp.lt.f32.partialorder %v3309, 0.0
  %vm3758 = vcmp.lt.f32.partialorder %v3310, 0.0
  %vm3759 = vcmp.lt.f32.partialorder %v3311, 0.0
  %vm3760 = vcmp.lt.f32.partialorder %v3312, 0.0
  %vm3761 = vcmp.lt.f32.partialorder %v3313, 0.0
  %vm3762 = vcmp.lt.f32.partialorder %v3314, 0.0
  %vm3763 = vcmp.lt.f32.partialorder %v3315, 0.0
  %vm3764 = vcmp.lt.f32.partialorder %v3316, 0.0
  %vm3765 = vcmp.lt.f32.partialorder %v3317, 0.0
  %v3766 = vsub.f32 0.0, %v3361
  %v3767 = vsub.f32 0.0, %v3373
  %v3768 = vsub.f32 0.0, %v3385
  %v3769 = vsub.f32 0.0, %v3397
  %v3770 = vsub.f32 0.0, %v3409
  %v3771 = vsub.f32 0.0, %v3421
  %v3772 = vsub.f32 0.0, %v3433
  %v3773 = vsub.f32 0.0, %v3445
  %v3774 = vsub.f32 0.0, %v3457
  %v3775 = vsub.f32 0.0, %v3469
  %v3776 = vsub.f32 0.0, %v3481
  %v3777 = vsub.f32 0.0, %v3493
  %v3778 = vsub.f32 0.0, %v3505
  %v3779 = vsub.f32 0.0, %v3517
  %v3780 = vsub.f32 0.0, %v3529
  %v3781 = vsub.f32 0.0, %v3541
  %v3782 = vsub.f32 0.0, %v3553
  %v3783 = vsub.f32 0.0, %v3565
  %v3784 = vsub.f32 0.0, %v3577
  %v3785 = vsub.f32 0.0, %v3589
  %v3786 = vsub.f32 0.0, %v3601
  %v3787 = vsub.f32 0.0, %v3613
  %v3788 = vsub.f32 0.0, %v3625
  %v3789 = vsub.f32 0.0, %v3637
  %v3790 = vsub.f32 0.0, %v3649
  %v3791 = vsub.f32 0.0, %v3661
  %v3792 = vsub.f32 0.0, %v3673
  %v3793 = vsub.f32 0.0, %v3685
  %v3794 = vsub.f32 0.0, %v3697
  %v3795 = vsub.f32 0.0, %v3709
  %v3796 = vsub.f32 0.0, %v3721
  %v3797 = vsub.f32 0.0, %v3733
  %v3798 = vsel %vm3734, %v3766, %v3361
  %v3799 = vsel %vm3735, %v3767, %v3373
  %v3800 = vsel %vm3736, %v3768, %v3385
  %v3801 = vsel %vm3737, %v3769, %v3397
  %v3802 = vsel %vm3738, %v3770, %v3409
  %v3803 = vsel %vm3739, %v3771, %v3421
  %v3804 = vsel %vm3740, %v3772, %v3433
  %v3805 = vsel %vm3741, %v3773, %v3445
  %v3806 = vsel %vm3742, %v3774, %v3457
  %v3807 = vsel %vm3743, %v3775, %v3469
  %v3808 = vsel %vm3744, %v3776, %v3481
  %v3809 = vsel %vm3745, %v3777, %v3493
  %v3810 = vsel %vm3746, %v3778, %v3505
  %v3811 = vsel %vm3747, %v3779, %v3517
  %v3812 = vsel %vm3748, %v3780, %v3529
  %v3813 = vsel %vm3749, %v3781, %v3541
  %v3814 = vsel %vm3750, %v3782, %v3553
  %v3815 = vsel %vm3751, %v3783, %v3565
  %v3816 = vsel %vm3752, %v3784, %v3577
  %v3817 = vsel %vm3753, %v3785, %v3589
  %v3818 = vsel %vm3754, %v3786, %v3601
  %v3819 = vsel %vm3755, %v3787, %v3613
  %v3820 = vsel %vm3756, %v3788, %v3625
  %v3821 = vsel %vm3757, %v3789, %v3637
  %v3822 = vsel %vm3758, %v3790, %v3649
  %v3823 = vsel %vm3759, %v3791, %v3661
  %v3824 = vsel %vm3760, %v3792, %v3673
  %v3825 = vsel %vm3761, %v3793, %v3685
  %v3826 = vsel %vm3762, %v3794, %v3697
  %v3827 = vsel %vm3763, %v3795, %v3709
  %v3828 = vsel %vm3764, %v3796, %v3721
  %v3829 = vsel %vm3765, %v3797, %v3733
  %v3830 = vsel %vm83, %v3361, 0.0
  %v3831 = vsel %vm83, %v3373, 0.0
  %v3832 = vadd.f32 %v3830, %v3831
  %v3833 = vrot.slane %v3832, 4
  %v3834 = vadd.f32 %v3832, %v3833
  %v3835 = vrot.slane %v3834, 2
  %v3836 = vadd.f32 %v3834, %v3835
  %v3837 = vrot.slane %v3836, 1
  %v3838 = vadd.f32 %v3836, %v3837
  %v3839 = vsel %vm83, %v3385, 0.0
  %v3840 = vsel %vm83, %v3397, 0.0
  %v3841 = vadd.f32 %v3839, %v3840
  %v3842 = vrot.slane %v3841, 4
  %v3843 = vadd.f32 %v3841, %v3842
  %v3844 = vrot.slane %v3843, 2
  %v3845 = vadd.f32 %v3843, %v3844
  %v3846 = vrot.slane %v3845, 1
  %v3847 = vadd.f32 %v3845, %v3846
  %v3848 = vsel %vm83, %v3409, 0.0
  %v3849 = vsel %vm83, %v3421, 0.0
  %v3850 = vadd.f32 %v3848, %v3849
  %v3851 = vrot.slane %v3850, 4
  %v3852 = vadd.f32 %v3850, %v3851
  %v3853 = vrot.slane %v3852, 2
  %v3854 = vadd.f32 %v3852, %v3853
  %v3855 = vrot.slane %v3854, 1
  %v3856 = vadd.f32 %v3854, %v3855
  %v3857 = vsel %vm83, %v3433, 0.0
  %v3858 = vsel %vm83, %v3445, 0.0
  %v3859 = vadd.f32 %v3857, %v3858
  %v3860 = vrot.slane %v3859, 4
  %v3861 = vadd.f32 %v3859, %v3860
  %v3862 = vrot.slane %v3861, 2
  %v3863 = vadd.f32 %v3861, %v3862
  %v3864 = vrot.slane %v3863, 1
  %v3865 = vadd.f32 %v3863, %v3864
  %v3866 = vsel %vm83, %v3457, 0.0
  %v3867 = vsel %vm83, %v3469, 0.0
  %v3868 = vadd.f32 %v3866, %v3867
  %v3869 = vrot.slane %v3868, 4
  %v3870 = vadd.f32 %v3868, %v3869
  %v3871 = vrot.slane %v3870, 2
  %v3872 = vadd.f32 %v3870, %v3871
  %v3873 = vrot.slane %v3872, 1
  %v3874 = vadd.f32 %v3872, %v3873
  %v3875 = vsel %vm83, %v3481, 0.0
  %v3876 = vsel %vm83, %v3493, 0.0
  %v3877 = vadd.f32 %v3875, %v3876
  %v3878 = vrot.slane %v3877, 4
  %v3879 = vadd.f32 %v3877, %v3878
  %v3880 = vrot.slane %v3879, 2
  %v3881 = vadd.f32 %v3879, %v3880
  %v3882 = vrot.slane %v3881, 1
  %v3883 = vadd.f32 %v3881, %v3882
  %v3884 = vsel %vm83, %v3505, 0.0
  %v3885 = vsel %vm83, %v3517, 0.0
  %v3886 = vadd.f32 %v3884, %v3885
  %v3887 = vrot.slane %v3886, 4
  %v3888 = vadd.f32 %v3886, %v3887
  %v3889 = vrot.slane %v3888, 2
  %v3890 = vadd.f32 %v3888, %v3889
  %v3891 = vrot.slane %v3890, 1
  %v3892 = vadd.f32 %v3890, %v3891
  %v3893 = vsel %vm83, %v3529, 0.0
  %v3894 = vsel %vm83, %v3541, 0.0
  %v3895 = vadd.f32 %v3893, %v3894
  %v3896 = vrot.slane %v3895, 4
  %v3897 = vadd.f32 %v3895, %v3896
  %v3898 = vrot.slane %v3897, 2
  %v3899 = vadd.f32 %v3897, %v3898
  %v3900 = vrot.slane %v3899, 1
  %v3901 = vadd.f32 %v3899, %v3900
  %v3902 = vsel %vm83, %v3553, 0.0
  %v3903 = vsel %vm83, %v3565, 0.0
  %v3904 = vadd.f32 %v3902, %v3903
  %v3905 = vrot.slane %v3904, 4
  %v3906 = vadd.f32 %v3904, %v3905
  %v3907 = vrot.slane %v3906, 2
  %v3908 = vadd.f32 %v3906, %v3907
  %v3909 = vrot.slane %v3908, 1
  %v3910 = vadd.f32 %v3908, %v3909
  %v3911 = vsel %vm83, %v3577, 0.0
  %v3912 = vsel %vm83, %v3589, 0.0
  %v3913 = vadd.f32 %v3911, %v3912
  %v3914 = vrot.slane %v3913, 4
  %v3915 = vadd.f32 %v3913, %v3914
  %v3916 = vrot.slane %v3915, 2
  %v3917 = vadd.f32 %v3915, %v3916
  %v3918 = vrot.slane %v3917, 1
  %v3919 = vadd.f32 %v3917, %v3918
  %v3920 = vsel %vm83, %v3601, 0.0
  %v3921 = vsel %vm83, %v3613, 0.0
  %v3922 = vadd.f32 %v3920, %v3921
  %v3923 = vrot.slane %v3922, 4
  %v3924 = vadd.f32 %v3922, %v3923
  %v3925 = vrot.slane %v3924, 2
  %v3926 = vadd.f32 %v3924, %v3925
  %v3927 = vrot.slane %v3926, 1
  %v3928 = vadd.f32 %v3926, %v3927
  %v3929 = vsel %vm83, %v3625, 0.0
  %v3930 = vsel %vm83, %v3637, 0.0
  %v3931 = vadd.f32 %v3929, %v3930
  %v3932 = vrot.slane %v3931, 4
  %v3933 = vadd.f32 %v3931, %v3932
  %v3934 = vrot.slane %v3933, 2
  %v3935 = vadd.f32 %v3933, %v3934
  %v3936 = vrot.slane %v3935, 1
  %v3937 = vadd.f32 %v3935, %v3936
  %v3938 = vsel %vm83, %v3649, 0.0
  %v3939 = vsel %vm83, %v3661, 0.0
  %v3940 = vadd.f32 %v3938, %v3939
  %v3941 = vrot.slane %v3940, 4
  %v3942 = vadd.f32 %v3940, %v3941
  %v3943 = vrot.slane %v3942, 2
  %v3944 = vadd.f32 %v3942, %v3943
  %v3945 = vrot.slane %v3944, 1
  %v3946 = vadd.f32 %v3944, %v3945
  %v3947 = vsel %vm83, %v3673, 0.0
  %v3948 = vsel %vm83, %v3685, 0.0
  %v3949 = vadd.f32 %v3947, %v3948
  %v3950 = vrot.slane %v3949, 4
  %v3951 = vadd.f32 %v3949, %v3950
  %v3952 = vrot.slane %v3951, 2
  %v3953 = vadd.f32 %v3951, %v3952
  %v3954 = vrot.slane %v3953, 1
  %v3955 = vadd.f32 %v3953, %v3954
  %v3956 = vsel %vm83, %v3697, 0.0
  %v3957 = vsel %vm83, %v3709, 0.0
  %v3958 = vadd.f32 %v3956, %v3957
  %v3959 = vrot.slane %v3958, 4
  %v3960 = vadd.f32 %v3958, %v3959
  %v3961 = vrot.slane %v3960, 2
  %v3962 = vadd.f32 %v3960, %v3961
  %v3963 = vrot.slane %v3962, 1
  %v3964 = vadd.f32 %v3962, %v3963
  %v3965 = vsel %vm83, %v3721, 0.0
  %v3966 = vsel %vm83, %v3733, 0.0
  %v3967 = vadd.f32 %v3965, %v3966
  %v3968 = vrot.slane %v3967, 4
  %v3969 = vadd.f32 %v3967, %v3968
  %v3970 = vrot.slane %v3969, 2
  %v3971 = vadd.f32 %v3969, %v3970
  %v3972 = vrot.slane %v3971, 1
  %v3973 = vadd.f32 %v3971, %v3972
  %v3974 = vadd.f32 %v3838, 1e-07
  %v3975 = vadd.f32 %v3847, 1e-07
  %v3976 = vadd.f32 %v3856, 1e-07
  %v3977 = vadd.f32 %v3865, 1e-07
  %v3978 = vadd.f32 %v3874, 1e-07
  %v3979 = vadd.f32 %v3883, 1e-07
  %v3980 = vadd.f32 %v3892, 1e-07
  %v3981 = vadd.f32 %v3901, 1e-07
  %v3982 = vadd.f32 %v3910, 1e-07
  %v3983 = vadd.f32 %v3919, 1e-07
  %v3984 = vadd.f32 %v3928, 1e-07
  %v3985 = vadd.f32 %v3937, 1e-07
  %v3986 = vadd.f32 %v3946, 1e-07
  %v3987 = vadd.f32 %v3955, 1e-07
  %v3988 = vadd.f32 %v3964, 1e-07
  %v3989 = vadd.f32 %v3973, 1e-07
  %v3990 = vrcp.pop %v3974
  %v3991 = vrcp.pop %v3975
  %v3992 = vrcp.pop %v3976
  %v3993 = vrcp.pop %v3977
  %v3994 = vrcp.pop %v3978
  %v3995 = vrcp.pop %v3979
  %v3996 = vrcp.pop %v3980
  %v3997 = vrcp.pop %v3981
  %v3998 = vrcp.pop %v3982
  %v3999 = vrcp.pop %v3983
  %v4000 = vrcp.pop %v3984
  %v4001 = vrcp.pop %v3985
  %v4002 = vrcp.pop %v3986
  %v4003 = vrcp.pop %v3987
  %v4004 = vrcp.pop %v3988
  %v4005 = vrcp.pop %v3989
  %v4006 = vmul.f32 %v3974, %v3990
  %v4007 = vmul.f32 %v3975, %v3991
  %v4008 = vmul.f32 %v3976, %v3992
  %v4009 = vmul.f32 %v3977, %v3993
  %v4010 = vmul.f32 %v3978, %v3994
  %v4011 = vmul.f32 %v3979, %v3995
  %v4012 = vmul.f32 %v3980, %v3996
  %v4013 = vmul.f32 %v3981, %v3997
  %v4014 = vmul.f32 %v3982, %v3998
  %v4015 = vmul.f32 %v3983, %v3999
  %v4016 = vmul.f32 %v3984, %v4000
  %v4017 = vmul.f32 %v3985, %v4001
  %v4018 = vmul.f32 %v3986, %v4002
  %v4019 = vmul.f32 %v3987, %v4003
  %v4020 = vmul.f32 %v3988, %v4004
  %v4021 = vmul.f32 %v3989, %v4005
  %v4022 = vsub.f32 2.0, %v4006
  %v4023 = vsub.f32 2.0, %v4007
  %v4024 = vsub.f32 2.0, %v4008
  %v4025 = vsub.f32 2.0, %v4009
  %v4026 = vsub.f32 2.0, %v4010
  %v4027 = vsub.f32 2.0, %v4011
  %v4028 = vsub.f32 2.0, %v4012
  %v4029 = vsub.f32 2.0, %v4013
  %v4030 = vsub.f32 2.0, %v4014
  %v4031 = vsub.f32 2.0, %v4015
  %v4032 = vsub.f32 2.0, %v4016
  %v4033 = vsub.f32 2.0, %v4017
  %v4034 = vsub.f32 2.0, %v4018
  %v4035 = vsub.f32 2.0, %v4019
  %v4036 = vsub.f32 2.0, %v4020
  %v4037 = vsub.f32 2.0, %v4021
  %v4038 = vmul.f32 %v3990, %v4022
  %v4039 = vmul.f32 %v3991, %v4023
  %v4040 = vmul.f32 %v3992, %v4024
  %v4041 = vmul.f32 %v3993, %v4025
  %v4042 = vmul.f32 %v3994, %v4026
  %v4043 = vmul.f32 %v3995, %v4027
  %v4044 = vmul.f32 %v3996, %v4028
  %v4045 = vmul.f32 %v3997, %v4029
  %v4046 = vmul.f32 %v3998, %v4030
  %v4047 = vmul.f32 %v3999, %v4031
  %v4048 = vmul.f32 %v4000, %v4032
  %v4049 = vmul.f32 %v4001, %v4033
  %v4050 = vmul.f32 %v4002, %v4034
  %v4051 = vmul.f32 %v4003, %v4035
  %v4052 = vmul.f32 %v4004, %v4036
  %v4053 = vmul.f32 %v4005, %v4037
  %v4054 = vmul.f32 %v3798, %v4038
  %v4055 = vmul.f32 %v3799, %v4038
  %v4056 = vmul.f32 %v3800, %v4039
  %v4057 = vmul.f32 %v3801, %v4039
  %v4058 = vmul.f32 %v3802, %v4040
  %v4059 = vmul.f32 %v3803, %v4040
  %v4060 = vmul.f32 %v3804, %v4041
  %v4061 = vmul.f32 %v3805, %v4041
  %v4062 = vmul.f32 %v3806, %v4042
  %v4063 = vmul.f32 %v3807, %v4042
  %v4064 = vmul.f32 %v3808, %v4043
  %v4065 = vmul.f32 %v3809, %v4043
  %v4066 = vmul.f32 %v3810, %v4044
  %v4067 = vmul.f32 %v3811, %v4044
  %v4068 = vmul.f32 %v3812, %v4045
  %v4069 = vmul.f32 %v3813, %v4045
  %v4070 = vmul.f32 %v3814, %v4046
  %v4071 = vmul.f32 %v3815, %v4046
  %v4072 = vmul.f32 %v3816, %v4047
  %v4073 = vmul.f32 %v3817, %v4047
  %v4074 = vmul.f32 %v3818, %v4048
  %v4075 = vmul.f32 %v3819, %v4048
  %v4076 = vmul.f32 %v3820, %v4049
  %v4077 = vmul.f32 %v3821, %v4049
  %v4078 = vmul.f32 %v3822, %v4050
  %v4079 = vmul.f32 %v3823, %v4050
  %v4080 = vmul.f32 %v3824, %v4051
  %v4081 = vmul.f32 %v3825, %v4051
  %v4082 = vmul.f32 %v3826, %v4052
  %v4083 = vmul.f32 %v3827, %v4052
  %v4084 = vmul.f32 %v3828, %v4053
  %v4085 = vmul.f32 %v3829, %v4053
  %v4086 = vmul.f32 %v2470, %v4054
  %v4087 = vmul.f32 %v2470, %v4055
  %v4088 = vmul.f32 %v2471, %v4056
  %v4089 = vmul.f32 %v2471, %v4057
  %v4090 = vmul.f32 %v2472, %v4058
  %v4091 = vmul.f32 %v2472, %v4059
  %v4092 = vmul.f32 %v2473, %v4060
  %v4093 = vmul.f32 %v2473, %v4061
  %v4094 = vmul.f32 %v2474, %v4062
  %v4095 = vmul.f32 %v2474, %v4063
  %v4096 = vmul.f32 %v2475, %v4064
  %v4097 = vmul.f32 %v2475, %v4065
  %v4098 = vmul.f32 %v2476, %v4066
  %v4099 = vmul.f32 %v2476, %v4067
  %v4100 = vmul.f32 %v2477, %v4068
  %v4101 = vmul.f32 %v2477, %v4069
  %v4102 = vmul.f32 %v2478, %v4070
  %v4103 = vmul.f32 %v2478, %v4071
  %v4104 = vmul.f32 %v2479, %v4072
  %v4105 = vmul.f32 %v2479, %v4073
  %v4106 = vmul.f32 %v2480, %v4074
  %v4107 = vmul.f32 %v2480, %v4075
  %v4108 = vmul.f32 %v2481, %v4076
  %v4109 = vmul.f32 %v2481, %v4077
  %v4110 = vmul.f32 %v2482, %v4078
  %v4111 = vmul.f32 %v2482, %v4079
  %v4112 = vmul.f32 %v2483, %v4080
  %v4113 = vmul.f32 %v2483, %v4081
  %v4114 = vmul.f32 %v2484, %v4082
  %v4115 = vmul.f32 %v2484, %v4083
  %v4116 = vmul.f32 %v2485, %v4084
  %v4117 = vmul.f32 %v2485, %v4085
  %v4118 = vmul.f32 %v2662, %v4054
  %v4119 = vmul.f32 %v2662, %v4055
  %v4120 = vmul.f32 %v2663, %v4056
  %v4121 = vmul.f32 %v2663, %v4057
  %v4122 = vmul.f32 %v2664, %v4058
  %v4123 = vmul.f32 %v2664, %v4059
  %v4124 = vmul.f32 %v2665, %v4060
  %v4125 = vmul.f32 %v2665, %v4061
  %v4126 = vmul.f32 %v2666, %v4062
  %v4127 = vmul.f32 %v2666, %v4063
  %v4128 = vmul.f32 %v2667, %v4064
  %v4129 = vmul.f32 %v2667, %v4065
  %v4130 = vmul.f32 %v2668, %v4066
  %v4131 = vmul.f32 %v2668, %v4067
  %v4132 = vmul.f32 %v2669, %v4068
  %v4133 = vmul.f32 %v2669, %v4069
  %v4134 = vmul.f32 %v2670, %v4070
  %v4135 = vmul.f32 %v2670, %v4071
  %v4136 = vmul.f32 %v2671, %v4072
  %v4137 = vmul.f32 %v2671, %v4073
  %v4138 = vmul.f32 %v2672, %v4074
  %v4139 = vmul.f32 %v2672, %v4075
  %v4140 = vmul.f32 %v2673, %v4076
  %v4141 = vmul.f32 %v2673, %v4077
  %v4142 = vmul.f32 %v2674, %v4078
  %v4143 = vmul.f32 %v2674, %v4079
  %v4144 = vmul.f32 %v2675, %v4080
  %v4145 = vmul.f32 %v2675, %v4081
  %v4146 = vmul.f32 %v2676, %v4082
  %v4147 = vmul.f32 %v2676, %v4083
  %v4148 = vmul.f32 %v2677, %v4084
  %v4149 = vmul.f32 %v2677, %v4085
  %v4150 = vmul.f32 %v2886, %v4054
  %v4151 = vmul.f32 %v2886, %v4055
  %v4152 = vmul.f32 %v2887, %v4056
  %v4153 = vmul.f32 %v2887, %v4057
  %v4154 = vmul.f32 %v2888, %v4058
  %v4155 = vmul.f32 %v2888, %v4059
  %v4156 = vmul.f32 %v2889, %v4060
  %v4157 = vmul.f32 %v2889, %v4061
  %v4158 = vmul.f32 %v2890, %v4062
  %v4159 = vmul.f32 %v2890, %v4063
  %v4160 = vmul.f32 %v2891, %v4064
  %v4161 = vmul.f32 %v2891, %v4065
  %v4162 = vmul.f32 %v2892, %v4066
  %v4163 = vmul.f32 %v2892, %v4067
  %v4164 = vmul.f32 %v2893, %v4068
  %v4165 = vmul.f32 %v2893, %v4069
  %v4166 = vmul.f32 %v2894, %v4070
  %v4167 = vmul.f32 %v2894, %v4071
  %v4168 = vmul.f32 %v2895, %v4072
  %v4169 = vmul.f32 %v2895, %v4073
  %v4170 = vmul.f32 %v2896, %v4074
  %v4171 = vmul.f32 %v2896, %v4075
  %v4172 = vmul.f32 %v2897, %v4076
  %v4173 = vmul.f32 %v2897, %v4077
  %v4174 = vmul.f32 %v2898, %v4078
  %v4175 = vmul.f32 %v2898, %v4079
  %v4176 = vmul.f32 %v2899, %v4080
  %v4177 = vmul.f32 %v2899, %v4081
  %v4178 = vmul.f32 %v2900, %v4082
  %v4179 = vmul.f32 %v2900, %v4083
  %v4180 = vmul.f32 %v2901, %v4084
  %v4181 = vmul.f32 %v2901, %v4085
  %v4182 = vmul.f32 %v3110, %v4054
  %v4183 = vmul.f32 %v3110, %v4055
  %v4184 = vmul.f32 %v3111, %v4056
  %v4185 = vmul.f32 %v3111, %v4057
  %v4186 = vmul.f32 %v3112, %v4058
  %v4187 = vmul.f32 %v3112, %v4059
  %v4188 = vmul.f32 %v3113, %v4060
  %v4189 = vmul.f32 %v3113, %v4061
  %v4190 = vmul.f32 %v3114, %v4062
  %v4191 = vmul.f32 %v3114, %v4063
  %v4192 = vmul.f32 %v3115, %v4064
  %v4193 = vmul.f32 %v3115, %v4065
  %v4194 = vmul.f32 %v3116, %v4066
  %v4195 = vmul.f32 %v3116, %v4067
  %v4196 = vmul.f32 %v3117, %v4068
  %v4197 = vmul.f32 %v3117, %v4069
  %v4198 = vmul.f32 %v3118, %v4070
  %v4199 = vmul.f32 %v3118, %v4071
  %v4200 = vmul.f32 %v3119, %v4072
  %v4201 = vmul.f32 %v3119, %v4073
  %v4202 = vmul.f32 %v3120, %v4074
  %v4203 = vmul.f32 %v3120, %v4075
  %v4204 = vmul.f32 %v3121, %v4076
  %v4205 = vmul.f32 %v3121, %v4077
  %v4206 = vmul.f32 %v3122, %v4078
  %v4207 = vmul.f32 %v3122, %v4079
  %v4208 = vmul.f32 %v3123, %v4080
  %v4209 = vmul.f32 %v3123, %v4081
  %v4210 = vmul.f32 %v3124, %v4082
  %v4211 = vmul.f32 %v3124, %v4083
  %v4212 = vmul.f32 %v3125, %v4084
  %v4213 = vmul.f32 %v3125, %v4085
  %v4214 = vsel %vm83, %v4086, 0.0
  %v4215 = vsel %vm83, %v4088, 0.0
  %v4216 = vadd.f32 %v4214, %v4215
  %v4217 = vsel %vm83, %v4090, 0.0
  %v4218 = vadd.f32 %v4216, %v4217
  %v4219 = vsel %vm83, %v4092, 0.0
  %v4220 = vadd.f32 %v4218, %v4219
  %v4221 = vsel %vm83, %v4094, 0.0
  %v4222 = vadd.f32 %v4220, %v4221
  %v4223 = vsel %vm83, %v4096, 0.0
  %v4224 = vadd.f32 %v4222, %v4223
  %v4225 = vsel %vm83, %v4098, 0.0
  %v4226 = vadd.f32 %v4224, %v4225
  %v4227 = vsel %vm83, %v4100, 0.0
  %v4228 = vadd.f32 %v4226, %v4227
  %v4229 = vsel %vm83, %v4102, 0.0
  %v4230 = vadd.f32 %v4228, %v4229
  %v4231 = vsel %vm83, %v4104, 0.0
  %v4232 = vadd.f32 %v4230, %v4231
  %v4233 = vsel %vm83, %v4106, 0.0
  %v4234 = vadd.f32 %v4232, %v4233
  %v4235 = vsel %vm83, %v4108, 0.0
  %v4236 = vadd.f32 %v4234, %v4235
  %v4237 = vsel %vm83, %v4110, 0.0
  %v4238 = vadd.f32 %v4236, %v4237
  %v4239 = vsel %vm83, %v4112, 0.0
  %v4240 = vadd.f32 %v4238, %v4239
  %v4241 = vsel %vm83, %v4114, 0.0
  %v4242 = vadd.f32 %v4240, %v4241
  %v4243 = vsel %vm83, %v4116, 0.0
  %v4244 = vadd.f32 %v4242, %v4243
  %v4245 = vsel %vm83, %v4087, 0.0
  %v4246 = vsel %vm83, %v4089, 0.0
  %v4247 = vadd.f32 %v4245, %v4246
  %v4248 = vsel %vm83, %v4091, 0.0
  %v4249 = vadd.f32 %v4247, %v4248
  %v4250 = vsel %vm83, %v4093, 0.0
  %v4251 = vadd.f32 %v4249, %v4250
  %v4252 = vsel %vm83, %v4095, 0.0
  %v4253 = vadd.f32 %v4251, %v4252
  %v4254 = vsel %vm83, %v4097, 0.0
  %v4255 = vadd.f32 %v4253, %v4254
  %v4256 = vsel %vm83, %v4099, 0.0
  %v4257 = vadd.f32 %v4255, %v4256
  %v4258 = vsel %vm83, %v4101, 0.0
  %v4259 = vadd.f32 %v4257, %v4258
  %v4260 = vsel %vm83, %v4103, 0.0
  %v4261 = vadd.f32 %v4259, %v4260
  %v4262 = vsel %vm83, %v4105, 0.0
  %v4263 = vadd.f32 %v4261, %v4262
  %v4264 = vsel %vm83, %v4107, 0.0
  %v4265 = vadd.f32 %v4263, %v4264
  %v4266 = vsel %vm83, %v4109, 0.0
  %v4267 = vadd.f32 %v4265, %v4266
  %v4268 = vsel %vm83, %v4111, 0.0
  %v4269 = vadd.f32 %v4267, %v4268
  %v4270 = vsel %vm83, %v4113, 0.0
  %v4271 = vadd.f32 %v4269, %v4270
  %v4272 = vsel %vm83, %v4115, 0.0
  %v4273 = vadd.f32 %v4271, %v4272
  %v4274 = vsel %vm83, %v4117, 0.0
  %v4275 = vadd.f32 %v4273, %v4274
  %v4276 = vsel %vm83, %v4118, 0.0
  %v4277 = vsel %vm83, %v4120, 0.0
  %v4278 = vadd.f32 %v4276, %v4277
  %v4279 = vsel %vm83, %v4122, 0.0
  %v4280 = vadd.f32 %v4278, %v4279
  %v4281 = vsel %vm83, %v4124, 0.0
  %v4282 = vadd.f32 %v4280, %v4281
  %v4283 = vsel %vm83, %v4126, 0.0
  %v4284 = vadd.f32 %v4282, %v4283
  %v4285 = vsel %vm83, %v4128, 0.0
  %v4286 = vadd.f32 %v4284, %v4285
  %v4287 = vsel %vm83, %v4130, 0.0
  %v4288 = vadd.f32 %v4286, %v4287
  %v4289 = vsel %vm83, %v4132, 0.0
  %v4290 = vadd.f32 %v4288, %v4289
  %v4291 = vsel %vm83, %v4134, 0.0
  %v4292 = vadd.f32 %v4290, %v4291
  %v4293 = vsel %vm83, %v4136, 0.0
  %v4294 = vadd.f32 %v4292, %v4293
  %v4295 = vsel %vm83, %v4138, 0.0
  %v4296 = vadd.f32 %v4294, %v4295
  %v4297 = vsel %vm83, %v4140, 0.0
  %v4298 = vadd.f32 %v4296, %v4297
  %v4299 = vsel %vm83, %v4142, 0.0
  %v4300 = vadd.f32 %v4298, %v4299
  %v4301 = vsel %vm83, %v4144, 0.0
  %v4302 = vadd.f32 %v4300, %v4301
  %v4303 = vsel %vm83, %v4146, 0.0
  %v4304 = vadd.f32 %v4302, %v4303
  %v4305 = vsel %vm83, %v4148, 0.0
  %v4306 = vadd.f32 %v4304, %v4305
  %v4307 = vsel %vm83, %v4119, 0.0
  %v4308 = vsel %vm83, %v4121, 0.0
  %v4309 = vadd.f32 %v4307, %v4308
  %v4310 = vsel %vm83, %v4123, 0.0
  %v4311 = vadd.f32 %v4309, %v4310
  %v4312 = vsel %vm83, %v4125, 0.0
  %v4313 = vadd.f32 %v4311, %v4312
  %v4314 = vsel %vm83, %v4127, 0.0
  %v4315 = vadd.f32 %v4313, %v4314
  %v4316 = vsel %vm83, %v4129, 0.0
  %v4317 = vadd.f32 %v4315, %v4316
  %v4318 = vsel %vm83, %v4131, 0.0
  %v4319 = vadd.f32 %v4317, %v4318
  %v4320 = vsel %vm83, %v4133, 0.0
  %v4321 = vadd.f32 %v4319, %v4320
  %v4322 = vsel %vm83, %v4135, 0.0
  %v4323 = vadd.f32 %v4321, %v4322
  %v4324 = vsel %vm83, %v4137, 0.0
  %v4325 = vadd.f32 %v4323, %v4324
  %v4326 = vsel %vm83, %v4139, 0.0
  %v4327 = vadd.f32 %v4325, %v4326
  %v4328 = vsel %vm83, %v4141, 0.0
  %v4329 = vadd.f32 %v4327, %v4328
  %v4330 = vsel %vm83, %v4143, 0.0
  %v4331 = vadd.f32 %v4329, %v4330
  %v4332 = vsel %vm83, %v4145, 0.0
  %v4333 = vadd.f32 %v4331, %v4332
  %v4334 = vsel %vm83, %v4147, 0.0
  %v4335 = vadd.f32 %v4333, %v4334
  %v4336 = vsel %vm83, %v4149, 0.0
  %v4337 = vadd.f32 %v4335, %v4336
  %v4338 = vsel %vm83, %v4150, 0.0
  %v4339 = vsel %vm83, %v4152, 0.0
  %v4340 = vadd.f32 %v4338, %v4339
  %v4341 = vsel %vm83, %v4154, 0.0
  %v4342 = vadd.f32 %v4340, %v4341
  %v4343 = vsel %vm83, %v4156, 0.0
  %v4344 = vadd.f32 %v4342, %v4343
  %v4345 = vsel %vm83, %v4158, 0.0
  %v4346 = vadd.f32 %v4344, %v4345
  %v4347 = vsel %vm83, %v4160, 0.0
  %v4348 = vadd.f32 %v4346, %v4347
  %v4349 = vsel %vm83, %v4162, 0.0
  %v4350 = vadd.f32 %v4348, %v4349
  %v4351 = vsel %vm83, %v4164, 0.0
  %v4352 = vadd.f32 %v4350, %v4351
  %v4353 = vsel %vm83, %v4166, 0.0
  %v4354 = vadd.f32 %v4352, %v4353
  %v4355 = vsel %vm83, %v4168, 0.0
  %v4356 = vadd.f32 %v4354, %v4355
  %v4357 = vsel %vm83, %v4170, 0.0
  %v4358 = vadd.f32 %v4356, %v4357
  %v4359 = vsel %vm83, %v4172, 0.0
  %v4360 = vadd.f32 %v4358, %v4359
  %v4361 = vsel %vm83, %v4174, 0.0
  %v4362 = vadd.f32 %v4360, %v4361
  %v4363 = vsel %vm83, %v4176, 0.0
  %v4364 = vadd.f32 %v4362, %v4363
  %v4365 = vsel %vm83, %v4178, 0.0
  %v4366 = vadd.f32 %v4364, %v4365
  %v4367 = vsel %vm83, %v4180, 0.0
  %v4368 = vadd.f32 %v4366, %v4367
  %v4369 = vsel %vm83, %v4151, 0.0
  %v4370 = vsel %vm83, %v4153, 0.0
  %v4371 = vadd.f32 %v4369, %v4370
  %v4372 = vsel %vm83, %v4155, 0.0
  %v4373 = vadd.f32 %v4371, %v4372
  %v4374 = vsel %vm83, %v4157, 0.0
  %v4375 = vadd.f32 %v4373, %v4374
  %v4376 = vsel %vm83, %v4159, 0.0
  %v4377 = vadd.f32 %v4375, %v4376
  %v4378 = vsel %vm83, %v4161, 0.0
  %v4379 = vadd.f32 %v4377, %v4378
  %v4380 = vsel %vm83, %v4163, 0.0
  %v4381 = vadd.f32 %v4379, %v4380
  %v4382 = vsel %vm83, %v4165, 0.0
  %v4383 = vadd.f32 %v4381, %v4382
  %v4384 = vsel %vm83, %v4167, 0.0
  %v4385 = vadd.f32 %v4383, %v4384
  %v4386 = vsel %vm83, %v4169, 0.0
  %v4387 = vadd.f32 %v4385, %v4386
  %v4388 = vsel %vm83, %v4171, 0.0
  %v4389 = vadd.f32 %v4387, %v4388
  %v4390 = vsel %vm83, %v4173, 0.0
  %v4391 = vadd.f32 %v4389, %v4390
  %v4392 = vsel %vm83, %v4175, 0.0
  %v4393 = vadd.f32 %v4391, %v4392
  %v4394 = vsel %vm83, %v4177, 0.0
  %v4395 = vadd.f32 %v4393, %v4394
  %v4396 = vsel %vm83, %v4179, 0.0
  %v4397 = vadd.f32 %v4395, %v4396
  %v4398 = vsel %vm83, %v4181, 0.0
  %v4399 = vadd.f32 %v4397, %v4398
  %v4400 = vsel %vm83, %v4182, 0.0
  %v4401 = vsel %vm83, %v4184, 0.0
  %v4402 = vadd.f32 %v4400, %v4401
  %v4403 = vsel %vm83, %v4186, 0.0
  %v4404 = vadd.f32 %v4402, %v4403
  %v4405 = vsel %vm83, %v4188, 0.0
  %v4406 = vadd.f32 %v4404, %v4405
  %v4407 = vsel %vm83, %v4190, 0.0
  %v4408 = vadd.f32 %v4406, %v4407
  %v4409 = vsel %vm83, %v4192, 0.0
  %v4410 = vadd.f32 %v4408, %v4409
  %v4411 = vsel %vm83, %v4194, 0.0
  %v4412 = vadd.f32 %v4410, %v4411
  %v4413 = vsel %vm83, %v4196, 0.0
  %v4414 = vadd.f32 %v4412, %v4413
  %v4415 = vsel %vm83, %v4198, 0.0
  %v4416 = vadd.f32 %v4414, %v4415
  %v4417 = vsel %vm83, %v4200, 0.0
  %v4418 = vadd.f32 %v4416, %v4417
  %v4419 = vsel %vm83, %v4202, 0.0
  %v4420 = vadd.f32 %v4418, %v4419
  %v4421 = vsel %vm83, %v4204, 0.0
  %v4422 = vadd.f32 %v4420, %v4421
  %v4423 = vsel %vm83, %v4206, 0.0
  %v4424 = vadd.f32 %v4422, %v4423
  %v4425 = vsel %vm83, %v4208, 0.0
  %v4426 = vadd.f32 %v4424, %v4425
  %v4427 = vsel %vm83, %v4210, 0.0
  %v4428 = vadd.f32 %v4426, %v4427
  %v4429 = vsel %vm83, %v4212, 0.0
  %v4430 = vadd.f32 %v4428, %v4429
  %v4431 = vsel %vm83, %v4183, 0.0
  %v4432 = vsel %vm83, %v4185, 0.0
  %v4433 = vadd.f32 %v4431, %v4432
  %v4434 = vsel %vm83, %v4187, 0.0
  %v4435 = vadd.f32 %v4433, %v4434
  %v4436 = vsel %vm83, %v4189, 0.0
  %v4437 = vadd.f32 %v4435, %v4436
  %v4438 = vsel %vm83, %v4191, 0.0
  %v4439 = vadd.f32 %v4437, %v4438
  %v4440 = vsel %vm83, %v4193, 0.0
  %v4441 = vadd.f32 %v4439, %v4440
  %v4442 = vsel %vm83, %v4195, 0.0
  %v4443 = vadd.f32 %v4441, %v4442
  %v4444 = vsel %vm83, %v4197, 0.0
  %v4445 = vadd.f32 %v4443, %v4444
  %v4446 = vsel %vm83, %v4199, 0.0
  %v4447 = vadd.f32 %v4445, %v4446
  %v4448 = vsel %vm83, %v4201, 0.0
  %v4449 = vadd.f32 %v4447, %v4448
  %v4450 = vsel %vm83, %v4203, 0.0
  %v4451 = vadd.f32 %v4449, %v4450
  %v4452 = vsel %vm83, %v4205, 0.0
  %v4453 = vadd.f32 %v4451, %v4452
  %v4454 = vsel %vm83, %v4207, 0.0
  %v4455 = vadd.f32 %v4453, %v4454
  %v4456 = vsel %vm83, %v4209, 0.0
  %v4457 = vadd.f32 %v4455, %v4456
  %v4458 = vsel %vm83, %v4211, 0.0
  %v4459 = vadd.f32 %v4457, %v4458
  %v4460 = vsel %vm83, %v4213, 0.0
  %v4461 = vadd.f32 %v4459, %v4460
  %v4462 = vld [vmem:[%s6] sm:$0xff]
  %v4463 = vld [vmem:[%s6 + $0x8] sm:$0xff]
  %v4464 = vld [vmem:[%s6 + $0x10] sm:$0xff]
  %v4465 = vld [vmem:[%s6 + $0x18] sm:$0xff]
  %v4466 = vld [vmem:[%s7] sm:$0xff]
  %v4467 = vld [vmem:[%s7 + $0x8] sm:$0xff]
  %v4468 = vld [vmem:[%s7 + $0x10] sm:$0xff]
  %v4469 = vld [vmem:[%s7 + $0x18] sm:$0xff]
  %4471 = vset.pattern.permute.xlu0 0
  %4472 = vperm.xlu0 %4471, %v4466
  %v4473 = vpop.permute.xlu0 %4472
  %4476 = vset.pattern.permute.xlu0 0
  %4477 = vperm.xlu0 %4476, %v4467
  %v4478 = vpop.permute.xlu0 %4477
  %4481 = vset.pattern.permute.xlu0 0
  %4482 = vperm.xlu0 %4481, %v4468
  %v4483 = vpop.permute.xlu0 %4482
  %4486 = vset.pattern.permute.xlu0 0
  %4487 = vperm.xlu0 %4486, %v4469
  %v4488 = vpop.permute.xlu0 %4487
  %vm4490 = vcmask 523264
  %v4492 = vsel %vm4490, %v4462, 0
  %v4495 = vsel %vm4490, %v4463, 0
  %v4498 = vsel %vm4490, %v4464, 0
  %v4501 = vsel %vm4490, %v4465, 0
  %4503 = vmatpush.msra.mxu0 0.0
  %4504 = vmatpush.msra.mxu0 0.0
  %4505 = vmatpush.msra.mxu0 0.0
  %4506 = vmatpush.msra.mxu0 0.0
  %4507 = vmatpush.msra.mxu0 0.0
  %4508 = vmatpush.msra.mxu0 0.0
  %4509 = vmatpush.msra.mxu0 0.0
  %4510 = vmatpush.msra.mxu0 0.0
  %4511 = vmatpush.msra.mxu0 %v4461
  %4512 = vmatpush.msra.mxu0 %v4430
  %4513 = vmatpush.msra.mxu0 %v4399
  %4514 = vmatpush.msra.mxu0 %v4368
  %4515 = vmatpush.msra.mxu0 %v4337
  %4516 = vmatpush.msra.mxu0 %v4306
  %4517 = vmatpush.msra.mxu0 %v4275
  %4518 = vmatpush.msra.mxu0 %v4244
  %4519 = vmatmul.f32.gmra.mxu0 %v4492
  %v4520 = vpop.f32.mrf.mxu0
  %v4521 = vadd.f32 %v4473, %v4520
  %4522 = vmatmul.f32.gmra.mxu0 %v4495
  %v4523 = vpop.f32.mrf.mxu0
  %v4524 = vadd.f32 %v4478, %v4523
  %4525 = vmatmul.f32.gmra.mxu0 %v4498
  %v4526 = vpop.f32.mrf.mxu0
  %v4527 = vadd.f32 %v4483, %v4526
  %4528 = vmatmul.f32.gmra.mxu0 %v4501
  %v4529 = vpop.f32.mrf.mxu0
  %v4530 = vadd.f32 %v4488, %v4529
  %4531 = vdwg.mxu0
  %v4532 = vld [vmem:[%s8] sm:$0xff]
  %v4533 = vld [vmem:[%s8 + $0x8] sm:$0xff]
  %v4534 = vld [vmem:[%s8 + $0x10] sm:$0xff]
  %v4535 = vld [vmem:[%s8 + $0x18] sm:$0xff]
  %4537 = vset.pattern.permute.xlu0 0
  %4538 = vperm.xlu0 %4537, %v4532
  %v4539 = vpop.permute.xlu0 %4538
  %4542 = vset.pattern.permute.xlu0 0
  %4543 = vperm.xlu0 %4542, %v4533
  %v4544 = vpop.permute.xlu0 %4543
  %4547 = vset.pattern.permute.xlu0 0
  %4548 = vperm.xlu0 %4547, %v4534
  %v4549 = vpop.permute.xlu0 %4548
  %4552 = vset.pattern.permute.xlu0 0
  %4553 = vperm.xlu0 %4552, %v4535
  %v4554 = vpop.permute.xlu0 %4553
  %v4556 = vmul.f32 %v4521, %v4539
  %v4557 = vmul.f32 %v4524, %v4544
  %v4558 = vmul.f32 %v4527, %v4549
  %v4559 = vmul.f32 %v4530, %v4554
  %v4560 = vld [vmem:[%s9] sm:$0xff]
  %v4561 = vld [vmem:[%s9 + $0x8] sm:$0xff]
  %v4562 = vld [vmem:[%s9 + $0x10] sm:$0xff]
  %v4563 = vld [vmem:[%s9 + $0x18] sm:$0xff]
  %4565 = vset.pattern.permute.xlu0 0
  %4566 = vperm.xlu0 %4565, %v4560
  %v4567 = vpop.permute.xlu0 %4566
  %4570 = vset.pattern.permute.xlu0 0
  %4571 = vperm.xlu0 %4570, %v4561
  %v4572 = vpop.permute.xlu0 %4571
  %4575 = vset.pattern.permute.xlu0 0
  %4576 = vperm.xlu0 %4575, %v4562
  %v4577 = vpop.permute.xlu0 %4576
  %4580 = vset.pattern.permute.xlu0 0
  %4581 = vperm.xlu0 %4580, %v4563
  %v4582 = vpop.permute.xlu0 %4581
  %v4584 = vadd.f32 %v4556, %v4567
  %v4585 = vadd.f32 %v4557, %v4572
  %v4586 = vadd.f32 %v4558, %v4577
  %v4587 = vadd.f32 %v4559, %v4582
  %v4588 = vand.u32 2147483647, %v4584
  %v4589 = vand.u32 2147483647, %v4585
  %v4590 = vand.u32 2147483647, %v4586
  %v4591 = vand.u32 2147483647, %v4587
  %v4592 = vadd.f32 %v4588, 1.0
  %v4593 = vadd.f32 %v4589, 1.0
  %v4594 = vadd.f32 %v4590, 1.0
  %v4595 = vadd.f32 %v4591, 1.0
  %v4596 = vrcp.pop %v4592
  %v4597 = vrcp.pop %v4593
  %v4598 = vrcp.pop %v4594
  %v4599 = vrcp.pop %v4595
  %v4600 = vmul.f32 %v4592, %v4596
  %v4601 = vmul.f32 %v4593, %v4597
  %v4602 = vmul.f32 %v4594, %v4598
  %v4603 = vmul.f32 %v4595, %v4599
  %v4604 = vsub.f32 2.0, %v4600
  %v4605 = vsub.f32 2.0, %v4601
  %v4606 = vsub.f32 2.0, %v4602
  %v4607 = vsub.f32 2.0, %v4603
  %v4608 = vmul.f32 %v4596, %v4604
  %v4609 = vmul.f32 %v4597, %v4605
  %v4610 = vmul.f32 %v4598, %v4606
  %v4611 = vmul.f32 %v4599, %v4607
  %v4612 = vmul.f32 %v4584, %v4608
  %v4613 = vmul.f32 %v4585, %v4609
  %v4614 = vmul.f32 %v4586, %v4610
  %v4615 = vmul.f32 %v4587, %v4611
  %v4616 = vld [vmem:[%s10] sm:$0xff]
  %v4617 = vld [vmem:[%s11] sm:$0xff]
  %4619 = vset.pattern.permute.xlu0 0
  %4620 = vperm.xlu0 %4619, %v4617
  %v4621 = vpop.permute.xlu0 %4620
  %vm4623 = vcmask 261120
  %v4625 = vsel %vm4623, %v4616, 0
  %4627 = vmatpush.msra.mxu0 0.0
  %4628 = vmatpush.msra.mxu0 0.0
  %4629 = vmatpush.msra.mxu0 0.0
  %4630 = vmatpush.msra.mxu0 0.0
  %4631 = vmatpush.msra.mxu0 0.0
  %4632 = vmatpush.msra.mxu0 0.0
  %4633 = vmatpush.msra.mxu0 0.0
  %4634 = vmatpush.msra.mxu0 0.0
  %4635 = vmatpush.msra.mxu0 0.0
  %4636 = vmatpush.msra.mxu0 0.0
  %4637 = vmatpush.msra.mxu0 0.0
  %4638 = vmatpush.msra.mxu0 0.0
  %4639 = vmatpush.msra.mxu0 %v4615
  %4640 = vmatpush.msra.mxu0 %v4614
  %4641 = vmatpush.msra.mxu0 %v4613
  %4642 = vmatpush.msra.mxu0 %v4612
  %4643 = vmatmul.f32.gmra.mxu0 %v4625
  %v4644 = vpop.f32.mrf.mxu0
  %v4645 = vadd.f32 %v4621, %v4644
  %4646 = vdwg.mxu0
  %4647 = vst.msk [vmem:[%s12] sm:$0xff] %vm83, %v4645
  // Predicated region
  $region50: #{lgl_forward.1} parent=0 // pred_check
    _
  $region51: #{lgl_forward.1} parent=0 // pred_check_branch
    %4649 = sbr.rel (0) target = $region53
  $region52: #{lgl_forward.1} parent=0 // pred_region
    _
  $region53: #{lgl_forward.1} parent=0 // pred_fallthru
    _
  // Predicated region
  $region54: #{lgl_forward.1} parent=0 // pred_check
    _
  $region55: #{lgl_forward.1} parent=0 // pred_check_branch
    %4651 = sbr.rel (0) target = $region57
  $region56: #{lgl_forward.1} parent=0 // pred_region
    _
  $region57: #{lgl_forward.1} parent=0 // pred_fallthru
    _

</llo_original>
